<compile_context>
chip_gen: v6e
topology: v6e:2x2x1
jax: 0.10.0
libtpu: 0.0.40
codegen_flags: <defaults>
</compile_context>

<pallas_src>
import functools

import jax
import jax.numpy as jnp
from jax.experimental import pallas as pl
from jax.experimental.pallas import tpu as pltpu

LN_EPS = 1e-5


def _round_up(n: int, m: int) -> int:
    return ((n + m - 1) // m) * m


# ---------------------------------------------------------------------------
# Kernel
# ---------------------------------------------------------------------------
def _mlp_kernel(x_ref,
                w1_ref, b1_ref, g1_ref, be1_ref,
                w2_ref, b2_ref, g2_ref, be2_ref,
                w3_ref, b3_ref, g3_ref, be3_ref,
                w4_ref, b4_ref,
                o_ref, *, hidden_true: int):
    cd = w1_ref.dtype                       # bf16: MXU-native on v5e/v6e/v7x
    inv_h = 1.0 / float(hidden_true)

    def ln_relu(h, gamma, beta):
        # h: f32 (tile, hid_pad). Padded hidden lanes of h are exactly 0
        # (weights/biases zero-padded by the wrapper), so plain lane sums
        # already equal sums over the true hidden width -> no mask needed.
        # Padded output lanes stay 0 because gamma/beta are zero-padded.
        mu = jnp.sum(h, axis=-1, keepdims=True) * inv_h
        ex2 = jnp.sum(h * h, axis=-1, keepdims=True) * inv_h
        var = jnp.maximum(ex2 - mu * mu, 0.0)       # clamp f32 cancellation
        hn = (h - mu) * jax.lax.rsqrt(var + LN_EPS) * gamma + beta
        return jnp.maximum(hn, 0.0)

    x = x_ref[...]                          # bf16, straight into the MXU

    # layer 1: Linear(in, hid) + LN + ReLU   (Dropout = identity, eval mode)
    h = jnp.dot(x, w1_ref[...], preferred_element_type=jnp.float32) + b1_ref[...]
    h = ln_relu(h, g1_ref[...], be1_ref[...])

    # layer 2
    h = jnp.dot(h.astype(cd), w2_ref[...],
                preferred_element_type=jnp.float32) + b2_ref[...]
    h = ln_relu(h, g2_ref[...], be2_ref[...])

    # layer 3
    h = jnp.dot(h.astype(cd), w3_ref[...],
                preferred_element_type=jnp.float32) + b3_ref[...]
    h = ln_relu(h, g3_ref[...], be3_ref[...])

    # final: Linear(hid, out)
    out = jnp.dot(h.astype(cd), w4_ref[...],
                  preferred_element_type=jnp.float32) + b4_ref[...]
    o_ref[...] = out.astype(o_ref.dtype)


# ---------------------------------------------------------------------------
# pallas_call builder (built once per configuration, cached)
# ---------------------------------------------------------------------------
@functools.lru_cache(maxsize=None)
def _build_call(tile, n_steps, in_dim, hid_pad, out_pad, hidden_true,
                compute_dtype_name, out_dtype_name):
    cd = jnp.dtype(compute_dtype_name)
    od = jnp.dtype(out_dtype_name)
    b_pad = tile * n_steps

    const_shapes = [
        (in_dim, hid_pad), (1, hid_pad), (1, hid_pad), (1, hid_pad),
        (hid_pad, hid_pad), (1, hid_pad), (1, hid_pad), (1, hid_pad),
        (hid_pad, hid_pad), (1, hid_pad), (1, hid_pad), (1, hid_pad),
        (hid_pad, out_pad), (1, out_pad),
    ]
    # x streamed per grid step (last dim == full array dim, no lane padding).
    in_specs = [pl.BlockSpec((tile, in_dim), lambda i: (i, 0))]
    # Constant block index -> resident, never re-DMA'd across grid steps.
    in_specs += [pl.BlockSpec(s, lambda i: (0, 0)) for s in const_shapes]
    out_spec = pl.BlockSpec((tile, out_pad), lambda i: (i, 0))

    # Advisory cost estimate so XLA overlaps surrounding ops.
    flops = 2 * b_pad * (in_dim * hid_pad + 2 * hid_pad * hid_pad
                         + hid_pad * out_pad)
    w_bytes = (in_dim * hid_pad + 2 * hid_pad * hid_pad
               + hid_pad * out_pad) * cd.itemsize
    vec_bytes = (10 * hid_pad + out_pad) * 4
    bytes_accessed = (b_pad * in_dim * cd.itemsize + w_bytes + vec_bytes
                      + b_pad * out_pad * od.itemsize)
    cost = pl.CostEstimate(flops=flops, transcendentals=3 * b_pad,
                           bytes_accessed=bytes_accessed)

    # VMEM budget sized from the actual pipelined buffers (+ headroom for
    # f32 temporaries); tiny on all generations, well under v7x's 64 MiB.
    buf_bytes = (2 * tile * in_dim * cd.itemsize          # x tile (2 bufs)
                 + 2 * tile * out_pad * od.itemsize       # out tile (2 bufs)
                 + 2 * (w_bytes + vec_bytes))             # resident consts
    vmem_limit = min(32 * 1024 * 1024,
                     _round_up(buf_bytes, 1 << 20) + 8 * 1024 * 1024)

    kernel = functools.partial(_mlp_kernel, hidden_true=hidden_true)
    return pl.pallas_call(
        kernel,
        out_shape=jax.ShapeDtypeStruct((b_pad, out_pad), od),
        grid_spec=pltpu.PrefetchScalarGridSpec(
            num_scalar_prefetch=0,
            grid=(n_steps,),
            in_specs=in_specs,
            out_specs=out_spec,
        ),
        compiler_params=pltpu.CompilerParams(
            dimension_semantics=("parallel",),
            vmem_limit_bytes=vmem_limit,
        ),
        cost_estimate=cost,
    )


# ---------------------------------------------------------------------------
# Generation-aware batch tiling
# ---------------------------------------------------------------------------
def _num_tensorcores() -> int:
    try:
        kind = jax.devices()[0].device_kind.lower()
        if "v7" in kind or "7x" in kind:
            return 2
    except Exception:
        pass
    return 1


def _choose_tiling(batch: int, batch_tile: int, n_cores: int):
    b16 = _round_up(max(batch, 16), 16)
    if n_cores >= 2:
        # >= 2 grid steps so "parallel" feeds both TensorCores.
        tile = max(16, min(_round_up(batch_tile, 16),
                           _round_up(pl.cdiv(b16, 2), 16)))
    else:
        # Single TensorCore: fewest grid steps (per-step overhead ~0.35 us).
        single_cap = max(_round_up(batch_tile, 16), 1024)
        tile = b16 if b16 <= single_cap else _round_up(batch_tile, 16)
    b_pad = _round_up(b16, tile)
    return tile, b_pad


# ---------------------------------------------------------------------------
# Wrapper: pad params once, build call once, jit the forward
# ---------------------------------------------------------------------------
def make_mlp_forward(params, *, batch_tile=512, compute_dtype=jnp.bfloat16,
                     out_dtype=jnp.bfloat16):
    input_dim, hidden_dim = params["w1"].shape
    output_dim = params["w4"].shape[1]
    hid_pad = _round_up(hidden_dim, 128)     # lane-dense hidden
    out_pad = _round_up(output_dim, 128)     # lane-dense (unmasked) stores
    n_cores = _num_tensorcores()

    def pad_mat(w, rows, cols):
        out = jnp.zeros((rows, cols), compute_dtype)
        return out.at[: w.shape[0], : w.shape[1]].set(w.astype(compute_dtype))

    def pad_vec(v, cols):
        out = jnp.zeros((1, cols), jnp.float32)
        return out.at[:, : v.shape[1]].set(v.astype(jnp.float32))

    # Pad/cast parameters ONCE (hoisted out of the per-call hot path).
    consts = (
        pad_mat(params["w1"], input_dim, hid_pad), pad_vec(params["b1"], hid_pad),
        pad_vec(params["g1"], hid_pad), pad_vec(params["be1"], hid_pad),
        pad_mat(params["w2"], hid_pad, hid_pad), pad_vec(params["b2"], hid_pad),
        pad_vec(params["g2"], hid_pad), pad_vec(params["be2"], hid_pad),
        pad_mat(params["w3"], hid_pad, hid_pad), pad_vec(params["b3"], hid_pad),
        pad_vec(params["g3"], hid_pad), pad_vec(params["be3"], hid_pad),
        pad_mat(params["w4"], hid_pad, out_pad), pad_vec(params["b4"], out_pad),
    )
    consts = jax.block_until_ready(consts)

    cd_name = jnp.dtype(compute_dtype).name
    od_name = jnp.dtype(out_dtype).name

    @jax.jit
    def forward(x):
        batch = x.shape[0]
        tile, b_pad = _choose_tiling(batch, batch_tile, n_cores)
        call = _build_call(tile, b_pad // tile, input_dim, hid_pad, out_pad,
                           hidden_dim, cd_name, od_name)
        xp = x.astype(compute_dtype)
        if b_pad != batch:
            xp = jnp.pad(xp, ((0, b_pad - batch), (0, 0)))
        out = call(xp, *consts)
        return out[:batch, :output_dim]

    return forward


# ---------------------------------------------------------------------------
# Params (matching MLP._init_weights) and precision-mirrored reference
# ---------------------------------------------------------------------------
def init_params(key, input_dim, hidden_dim, output_dim):
    """Linear weights: xavier_uniform_, Linear biases: 0.1.
    LayerNorm: weight=1, bias=0 (PyTorch default).
    Weights stored (in, out) = transpose of PyTorch's (out, in)."""
    def xavier_uniform(k, fan_in, fan_out):
        bound = (6.0 / (fan_in + fan_out)) ** 0.5
        return jax.random.uniform(k, (fan_in, fan_out), jnp.float32,
                                  minval=-bound, maxval=bound)

    k1, k2, k3, k4 = jax.random.split(key, 4)
    return {
        "w1": xavier_uniform(k1, input_dim, hidden_dim),
        "b1": jnp.full((1, hidden_dim), 0.1, jnp.float32),
        "g1": jnp.ones((1, hidden_dim), jnp.float32),
        "be1": jnp.zeros((1, hidden_dim), jnp.float32),
        "w2": xavier_uniform(k2, hidden_dim, hidden_dim),
        "b2": jnp.full((1, hidden_dim), 0.1, jnp.float32),
        "g2": jnp.ones((1, hidden_dim), jnp.float32),
        "be2": jnp.zeros((1, hidden_dim), jnp.float32),
        "w3": xavier_uniform(k3, hidden_dim, hidden_dim),
        "b3": jnp.full((1, hidden_dim), 0.1, jnp.float32),
        "g3": jnp.ones((1, hidden_dim), jnp.float32),
        "be3": jnp.zeros((1, hidden_dim), jnp.float32),
        "w4": xavier_uniform(k4, hidden_dim, output_dim),
        "b4": jnp.full((1, output_dim), 0.1, jnp.float32),
    }


def mlp_reference(x, p, compute_dtype=jnp.bfloat16):
    """Pure-JAX eval-mode forward mirroring the kernel's precision choices
    (bf16 matmul operands, f32 accumulation, f32 LayerNorm)."""
    cd = compute_dtype

    def dot(a, w):
        return jnp.dot(a.astype(cd), w.astype(cd),
                       preferred_element_type=jnp.float32)

    def ln_relu(h, g, b):
        mu = jnp.mean(h, axis=-1, keepdims=True)
        c = h - mu
        var = jnp.mean(c * c, axis=-1, keepdims=True)
        return jnp.maximum(c * jax.lax.rsqrt(var + LN_EPS) * g + b, 0.0)

    h = ln_relu(dot(x, p["w1"]) + p["b1"], p["g1"], p["be1"])
    h = ln_relu(dot(h, p["w2"]) + p["b2"], p["g2"], p["be2"])
    h = ln_relu(dot(h, p["w3"]) + p["b3"], p["g3"], p["be3"])
    return dot(h, p["w4"]) + p["b4"]


if __name__ == "__main__":
    # Module defaults: num_layers=4, hidden_dim=64.
    input_dim, hidden_dim, output_dim = 32, 64, 16
    batch = 512

    key = jax.random.PRNGKey(0)
    kx, kp = jax.random.split(key)
    x = jax.random.normal(kx, (batch, input_dim), jnp.float32)
    params = init_params(kp, input_dim, hidden_dim, output_dim)

    # TODO(synk): training-mode Dropout(p=0.1) masking (pltpu.prng_*) not
    # implemented; this is the eval/inference forward pass (Dropout = identity).
    forward = make_mlp_forward(params, batch_tile=512)
    out = jax.block_until_ready(forward(x))

    ref = mlp_reference(x, params)
    assert out.shape == (batch, output_dim)
    assert jnp.allclose(out.astype(jnp.float32), ref, atol=2e-2, rtol=2e-2), \
        "mismatch vs reference"

    print("KERNEL_OK")
</pallas_src>

<mosaic_0001>
module attributes {stable_mosaic.version = 11 : i64} {
  func.func @_mlp_kernel(%arg0: i32, %arg1: memref<512x32xbf16, #tpu.memory_space<vmem>>, %arg2: memref<32x128xbf16, #tpu.memory_space<vmem>>, %arg3: memref<1x128xf32, #tpu.memory_space<vmem>>, %arg4: memref<1x128xf32, #tpu.memory_space<vmem>>, %arg5: memref<1x128xf32, #tpu.memory_space<vmem>>, %arg6: memref<128x128xbf16, #tpu.memory_space<vmem>>, %arg7: memref<1x128xf32, #tpu.memory_space<vmem>>, %arg8: memref<1x128xf32, #tpu.memory_space<vmem>>, %arg9: memref<1x128xf32, #tpu.memory_space<vmem>>, %arg10: memref<128x128xbf16, #tpu.memory_space<vmem>>, %arg11: memref<1x128xf32, #tpu.memory_space<vmem>>, %arg12: memref<1x128xf32, #tpu.memory_space<vmem>>, %arg13: memref<1x128xf32, #tpu.memory_space<vmem>>, %arg14: memref<128x128xbf16, #tpu.memory_space<vmem>>, %arg15: memref<1x128xf32, #tpu.memory_space<vmem>>, %arg16: memref<512x128xbf16, #tpu.memory_space<vmem>>) attributes {dimension_semantics = [#tpu.dimension_semantics<parallel>], iteration_bounds = array<i64: 1>, scalar_prefetch = 0 : i64, scratch_operands = 0 : i64, tpu.core_type = #tpu.core_type<tc>, window_params = [{transform_indices = @transform_0, window_bounds = array<i64: 512, 32>}, {pipeline_mode = #tpu.pipeline_mode<synchronous>, transform_indices = @transform_1, window_bounds = array<i64: 32, 128>}, {pipeline_mode = #tpu.pipeline_mode<synchronous>, transform_indices = @transform_2, window_bounds = array<i64: 1, 128>}, {pipeline_mode = #tpu.pipeline_mode<synchronous>, transform_indices = @transform_3, window_bounds = array<i64: 1, 128>}, {pipeline_mode = #tpu.pipeline_mode<synchronous>, transform_indices = @transform_4, window_bounds = array<i64: 1, 128>}, {pipeline_mode = #tpu.pipeline_mode<synchronous>, transform_indices = @transform_5, window_bounds = array<i64: 128, 128>}, {pipeline_mode = #tpu.pipeline_mode<synchronous>, transform_indices = @transform_6, window_bounds = array<i64: 1, 128>}, {pipeline_mode = #tpu.pipeline_mode<synchronous>, transform_indices = @transform_7, window_bounds = array<i64: 1, 128>}, {pipeline_mode = #tpu.pipeline_mode<synchronous>, transform_indices = @transform_8, window_bounds = array<i64: 1, 128>}, {pipeline_mode = #tpu.pipeline_mode<synchronous>, transform_indices = @transform_9, window_bounds = array<i64: 128, 128>}, {pipeline_mode = #tpu.pipeline_mode<synchronous>, transform_indices = @transform_10, window_bounds = array<i64: 1, 128>}, {pipeline_mode = #tpu.pipeline_mode<synchronous>, transform_indices = @transform_11, window_bounds = array<i64: 1, 128>}, {pipeline_mode = #tpu.pipeline_mode<synchronous>, transform_indices = @transform_12, window_bounds = array<i64: 1, 128>}, {pipeline_mode = #tpu.pipeline_mode<synchronous>, transform_indices = @transform_13, window_bounds = array<i64: 128, 128>}, {pipeline_mode = #tpu.pipeline_mode<synchronous>, transform_indices = @transform_14, window_bounds = array<i64: 1, 128>}, {transform_indices = @transform_15, window_bounds = array<i64: 512, 128>}]} {
    %c0 = arith.constant 0 : index
    %c0_0 = arith.constant 0 : index
    %0 = vector.load %arg1[%c0, %c0_0] : memref<512x32xbf16, #tpu.memory_space<vmem>>, vector<512x32xbf16>
    %c0_1 = arith.constant 0 : index
    %c0_2 = arith.constant 0 : index
    %1 = vector.load %arg2[%c0_1, %c0_2] : memref<32x128xbf16, #tpu.memory_space<vmem>>, vector<32x128xbf16>
    %cst = arith.constant dense<0.000000e+00> : vector<512x128xf32>
    %2 = tpu.matmul %0, %1, %cst {dimension_numbers = #tpu.dot_dimension_numbers<[1], [0], [0], [1], [0, 0, 1, 1], [], []>} : vector<512x32xbf16>, vector<32x128xbf16>, vector<512x128xf32> -> vector<512x128xf32>
    %c0_3 = arith.constant 0 : index
    %c0_4 = arith.constant 0 : index
    %3 = vector.load %arg3[%c0_3, %c0_4] : memref<1x128xf32, #tpu.memory_space<vmem>>, vector<1x128xf32>
    %4 = vector.broadcast %3 : vector<1x128xf32> to vector<512x128xf32>
    %5 = arith.addf %2, %4 : vector<512x128xf32>
    %c0_5 = arith.constant 0 : index
    %c0_6 = arith.constant 0 : index
    %6 = vector.load %arg4[%c0_5, %c0_6] : memref<1x128xf32, #tpu.memory_space<vmem>>, vector<1x128xf32>
    %c0_7 = arith.constant 0 : index
    %c0_8 = arith.constant 0 : index
    %7 = vector.load %arg5[%c0_7, %c0_8] : memref<1x128xf32, #tpu.memory_space<vmem>>, vector<1x128xf32>
    %cst_9 = arith.constant dense<0.000000e+00> : vector<512xf32>
    %8 = vector.multi_reduction <add>, %5, %cst_9 [1] : vector<512x128xf32> to vector<512xf32>
    %9 = vector.shape_cast %8 : vector<512xf32> to vector<512x1xf32>
    %cst_10 = arith.constant 1.562500e-02 : f32
    %10 = vector.broadcast %cst_10 : f32 to vector<512x1xf32>
    %11 = arith.mulf %9, %10 : vector<512x1xf32>
    %12 = arith.mulf %5, %5 : vector<512x128xf32>
    %cst_11 = arith.constant dense<0.000000e+00> : vector<512xf32>
    %13 = vector.multi_reduction <add>, %12, %cst_11 [1] : vector<512x128xf32> to vector<512xf32>
    %14 = vector.shape_cast %13 : vector<512xf32> to vector<512x1xf32>
    %cst_12 = arith.constant 1.562500e-02 : f32
    %15 = vector.broadcast %cst_12 : f32 to vector<512x1xf32>
    %16 = arith.mulf %14, %15 : vector<512x1xf32>
    %17 = arith.mulf %11, %11 : vector<512x1xf32>
    %18 = arith.subf %16, %17 : vector<512x1xf32>
    %cst_13 = arith.constant 0.000000e+00 : f32
    %19 = vector.broadcast %cst_13 : f32 to vector<512x1xf32>
    %20 = arith.maximumf %18, %19 : vector<512x1xf32>
    %21 = vector.broadcast %11 : vector<512x1xf32> to vector<512x128xf32>
    %22 = arith.subf %5, %21 : vector<512x128xf32>
    %cst_14 = arith.constant 9.99999974E-6 : f32
    %23 = vector.broadcast %cst_14 : f32 to vector<512x1xf32>
    %24 = arith.addf %20, %23 : vector<512x1xf32>
    %25 = math.rsqrt %24 : vector<512x1xf32>
    %26 = vector.broadcast %25 : vector<512x1xf32> to vector<512x128xf32>
    %27 = arith.mulf %22, %26 : vector<512x128xf32>
    %28 = vector.broadcast %6 : vector<1x128xf32> to vector<512x128xf32>
    %29 = arith.mulf %27, %28 : vector<512x128xf32>
    %30 = vector.broadcast %7 : vector<1x128xf32> to vector<512x128xf32>
    %31 = arith.addf %29, %30 : vector<512x128xf32>
    %cst_15 = arith.constant 0.000000e+00 : f32
    %32 = vector.broadcast %cst_15 : f32 to vector<512x128xf32>
    %33 = arith.maximumf %31, %32 : vector<512x128xf32>
    %34 = arith.truncf %33 : vector<512x128xf32> to vector<512x128xbf16>
    %c0_16 = arith.constant 0 : index
    %c0_17 = arith.constant 0 : index
    %35 = vector.load %arg6[%c0_16, %c0_17] : memref<128x128xbf16, #tpu.memory_space<vmem>>, vector<128x128xbf16>
    %cst_18 = arith.constant dense<0.000000e+00> : vector<512x128xf32>
    %36 = tpu.matmul %34, %35, %cst_18 {dimension_numbers = #tpu.dot_dimension_numbers<[1], [0], [0], [1], [0, 0, 1, 1], [], []>} : vector<512x128xbf16>, vector<128x128xbf16>, vector<512x128xf32> -> vector<512x128xf32>
    %c0_19 = arith.constant 0 : index
    %c0_20 = arith.constant 0 : index
    %37 = vector.load %arg7[%c0_19, %c0_20] : memref<1x128xf32, #tpu.memory_space<vmem>>, vector<1x128xf32>
    %38 = vector.broadcast %37 : vector<1x128xf32> to vector<512x128xf32>
    %39 = arith.addf %36, %38 : vector<512x128xf32>
    %c0_21 = arith.constant 0 : index
    %c0_22 = arith.constant 0 : index
    %40 = vector.load %arg8[%c0_21, %c0_22] : memref<1x128xf32, #tpu.memory_space<vmem>>, vector<1x128xf32>
    %c0_23 = arith.constant 0 : index
    %c0_24 = arith.constant 0 : index
    %41 = vector.load %arg9[%c0_23, %c0_24] : memref<1x128xf32, #tpu.memory_space<vmem>>, vector<1x128xf32>
    %cst_25 = arith.constant dense<0.000000e+00> : vector<512xf32>
    %42 = vector.multi_reduction <add>, %39, %cst_25 [1] : vector<512x128xf32> to vector<512xf32>
    %43 = vector.shape_cast %42 : vector<512xf32> to vector<512x1xf32>
    %cst_26 = arith.constant 1.562500e-02 : f32
    %44 = vector.broadcast %cst_26 : f32 to vector<512x1xf32>
    %45 = arith.mulf %43, %44 : vector<512x1xf32>
    %46 = arith.mulf %39, %39 : vector<512x128xf32>
    %cst_27 = arith.constant dense<0.000000e+00> : vector<512xf32>
    %47 = vector.multi_reduction <add>, %46, %cst_27 [1] : vector<512x128xf32> to vector<512xf32>
    %48 = vector.shape_cast %47 : vector<512xf32> to vector<512x1xf32>
    %cst_28 = arith.constant 1.562500e-02 : f32
    %49 = vector.broadcast %cst_28 : f32 to vector<512x1xf32>
    %50 = arith.mulf %48, %49 : vector<512x1xf32>
    %51 = arith.mulf %45, %45 : vector<512x1xf32>
    %52 = arith.subf %50, %51 : vector<512x1xf32>
    %cst_29 = arith.constant 0.000000e+00 : f32
    %53 = vector.broadcast %cst_29 : f32 to vector<512x1xf32>
    %54 = arith.maximumf %52, %53 : vector<512x1xf32>
    %55 = vector.broadcast %45 : vector<512x1xf32> to vector<512x128xf32>
    %56 = arith.subf %39, %55 : vector<512x128xf32>
    %cst_30 = arith.constant 9.99999974E-6 : f32
    %57 = vector.broadcast %cst_30 : f32 to vector<512x1xf32>
    %58 = arith.addf %54, %57 : vector<512x1xf32>
    %59 = math.rsqrt %58 : vector<512x1xf32>
    %60 = vector.broadcast %59 : vector<512x1xf32> to vector<512x128xf32>
    %61 = arith.mulf %56, %60 : vector<512x128xf32>
    %62 = vector.broadcast %40 : vector<1x128xf32> to vector<512x128xf32>
    %63 = arith.mulf %61, %62 : vector<512x128xf32>
    %64 = vector.broadcast %41 : vector<1x128xf32> to vector<512x128xf32>
    %65 = arith.addf %63, %64 : vector<512x128xf32>
    %cst_31 = arith.constant 0.000000e+00 : f32
    %66 = vector.broadcast %cst_31 : f32 to vector<512x128xf32>
    %67 = arith.maximumf %65, %66 : vector<512x128xf32>
    %68 = arith.truncf %67 : vector<512x128xf32> to vector<512x128xbf16>
    %c0_32 = arith.constant 0 : index
    %c0_33 = arith.constant 0 : index
    %69 = vector.load %arg10[%c0_32, %c0_33] : memref<128x128xbf16, #tpu.memory_space<vmem>>, vector<128x128xbf16>
    %cst_34 = arith.constant dense<0.000000e+00> : vector<512x128xf32>
    %70 = tpu.matmul %68, %69, %cst_34 {dimension_numbers = #tpu.dot_dimension_numbers<[1], [0], [0], [1], [0, 0, 1, 1], [], []>} : vector<512x128xbf16>, vector<128x128xbf16>, vector<512x128xf32> -> vector<512x128xf32>
    %c0_35 = arith.constant 0 : index
    %c0_36 = arith.constant 0 : index
    %71 = vector.load %arg11[%c0_35, %c0_36] : memref<1x128xf32, #tpu.memory_space<vmem>>, vector<1x128xf32>
    %72 = vector.broadcast %71 : vector<1x128xf32> to vector<512x128xf32>
    %73 = arith.addf %70, %72 : vector<512x128xf32>
    %c0_37 = arith.constant 0 : index
    %c0_38 = arith.constant 0 : index
    %74 = vector.load %arg12[%c0_37, %c0_38] : memref<1x128xf32, #tpu.memory_space<vmem>>, vector<1x128xf32>
    %c0_39 = arith.constant 0 : index
    %c0_40 = arith.constant 0 : index
    %75 = vector.load %arg13[%c0_39, %c0_40] : memref<1x128xf32, #tpu.memory_space<vmem>>, vector<1x128xf32>
    %cst_41 = arith.constant dense<0.000000e+00> : vector<512xf32>
    %76 = vector.multi_reduction <add>, %73, %cst_41 [1] : vector<512x128xf32> to vector<512xf32>
    %77 = vector.shape_cast %76 : vector<512xf32> to vector<512x1xf32>
    %cst_42 = arith.constant 1.562500e-02 : f32
    %78 = vector.broadcast %cst_42 : f32 to vector<512x1xf32>
    %79 = arith.mulf %77, %78 : vector<512x1xf32>
    %80 = arith.mulf %73, %73 : vector<512x128xf32>
    %cst_43 = arith.constant dense<0.000000e+00> : vector<512xf32>
    %81 = vector.multi_reduction <add>, %80, %cst_43 [1] : vector<512x128xf32> to vector<512xf32>
    %82 = vector.shape_cast %81 : vector<512xf32> to vector<512x1xf32>
    %cst_44 = arith.constant 1.562500e-02 : f32
    %83 = vector.broadcast %cst_44 : f32 to vector<512x1xf32>
    %84 = arith.mulf %82, %83 : vector<512x1xf32>
    %85 = arith.mulf %79, %79 : vector<512x1xf32>
    %86 = arith.subf %84, %85 : vector<512x1xf32>
    %cst_45 = arith.constant 0.000000e+00 : f32
    %87 = vector.broadcast %cst_45 : f32 to vector<512x1xf32>
    %88 = arith.maximumf %86, %87 : vector<512x1xf32>
    %89 = vector.broadcast %79 : vector<512x1xf32> to vector<512x128xf32>
    %90 = arith.subf %73, %89 : vector<512x128xf32>
    %cst_46 = arith.constant 9.99999974E-6 : f32
    %91 = vector.broadcast %cst_46 : f32 to vector<512x1xf32>
    %92 = arith.addf %88, %91 : vector<512x1xf32>
    %93 = math.rsqrt %92 : vector<512x1xf32>
    %94 = vector.broadcast %93 : vector<512x1xf32> to vector<512x128xf32>
    %95 = arith.mulf %90, %94 : vector<512x128xf32>
    %96 = vector.broadcast %74 : vector<1x128xf32> to vector<512x128xf32>
    %97 = arith.mulf %95, %96 : vector<512x128xf32>
    %98 = vector.broadcast %75 : vector<1x128xf32> to vector<512x128xf32>
    %99 = arith.addf %97, %98 : vector<512x128xf32>
    %cst_47 = arith.constant 0.000000e+00 : f32
    %100 = vector.broadcast %cst_47 : f32 to vector<512x128xf32>
    %101 = arith.maximumf %99, %100 : vector<512x128xf32>
    %102 = arith.truncf %101 : vector<512x128xf32> to vector<512x128xbf16>
    %c0_48 = arith.constant 0 : index
    %c0_49 = arith.constant 0 : index
    %103 = vector.load %arg14[%c0_48, %c0_49] : memref<128x128xbf16, #tpu.memory_space<vmem>>, vector<128x128xbf16>
    %cst_50 = arith.constant dense<0.000000e+00> : vector<512x128xf32>
    %104 = tpu.matmul %102, %103, %cst_50 {dimension_numbers = #tpu.dot_dimension_numbers<[1], [0], [0], [1], [0, 0, 1, 1], [], []>} : vector<512x128xbf16>, vector<128x128xbf16>, vector<512x128xf32> -> vector<512x128xf32>
    %c0_51 = arith.constant 0 : index
    %c0_52 = arith.constant 0 : index
    %105 = vector.load %arg15[%c0_51, %c0_52] : memref<1x128xf32, #tpu.memory_space<vmem>>, vector<1x128xf32>
    %106 = vector.broadcast %105 : vector<1x128xf32> to vector<512x128xf32>
    %107 = arith.addf %104, %106 : vector<512x128xf32>
    %108 = arith.truncf %107 : vector<512x128xf32> to vector<512x128xbf16>
    %c0_53 = arith.constant 0 : index
    %c0_54 = arith.constant 0 : index
    %109 = vector.load %arg16[%c0_53, %c0_54] : memref<512x128xbf16, #tpu.memory_space<vmem>>, vector<512x128xbf16>
    tpu.vector_store %arg16[%c0_53, %c0_54], %108 {strides = array<i32>} : memref<512x128xbf16, #tpu.memory_space<vmem>>, vector<512x128xbf16>,
    return
  }
  func.func @transform_0(%arg0: i32) -> (i32, i32) {
    %c0_i32 = arith.constant 0 : i32
    %c0_i32_0 = arith.constant 0 : i32
    return %arg0, %c0_i32 : i32, i32
  }
  func.func @transform_1(%arg0: i32) -> (i32, i32) {
    %c0_i32 = arith.constant 0 : i32
    %c0_i32_0 = arith.constant 0 : i32
    %c0_i32_1 = arith.constant 0 : i32
    return %c0_i32, %c0_i32_0 : i32, i32
  }
  func.func @transform_2(%arg0: i32) -> (i32, i32) {
    %c0_i32 = arith.constant 0 : i32
    %c0_i32_0 = arith.constant 0 : i32
    %c0_i32_1 = arith.constant 0 : i32
    return %c0_i32, %c0_i32_0 : i32, i32
  }
  func.func @transform_3(%arg0: i32) -> (i32, i32) {
    %c0_i32 = arith.constant 0 : i32
    %c0_i32_0 = arith.constant 0 : i32
    %c0_i32_1 = arith.constant 0 : i32
    return %c0_i32, %c0_i32_0 : i32, i32
  }
  func.func @transform_4(%arg0: i32) -> (i32, i32) {
    %c0_i32 = arith.constant 0 : i32
    %c0_i32_0 = arith.constant 0 : i32
    %c0_i32_1 = arith.constant 0 : i32
    return %c0_i32, %c0_i32_0 : i32, i32
  }
  func.func @transform_5(%arg0: i32) -> (i32, i32) {
    %c0_i32 = arith.constant 0 : i32
    %c0_i32_0 = arith.constant 0 : i32
    %c0_i32_1 = arith.constant 0 : i32
    return %c0_i32, %c0_i32_0 : i32, i32
  }
  func.func @transform_6(%arg0: i32) -> (i32, i32) {
    %c0_i32 = arith.constant 0 : i32
    %c0_i32_0 = arith.constant 0 : i32
    %c0_i32_1 = arith.constant 0 : i32
    return %c0_i32, %c0_i32_0 : i32, i32
  }
  func.func @transform_7(%arg0: i32) -> (i32, i32) {
    %c0_i32 = arith.constant 0 : i32
    %c0_i32_0 = arith.constant 0 : i32
    %c0_i32_1 = arith.constant 0 : i32
    return %c0_i32, %c0_i32_0 : i32, i32
  }
  func.func @transform_8(%arg0: i32) -> (i32, i32) {
    %c0_i32 = arith.constant 0 : i32
    %c0_i32_0 = arith.constant 0 : i32
    %c0_i32_1 = arith.constant 0 : i32
    return %c0_i32, %c0_i32_0 : i32, i32
  }
  func.func @transform_9(%arg0: i32) -> (i32, i32) {
    %c0_i32 = arith.constant 0 : i32
    %c0_i32_0 = arith.constant 0 : i32
    %c0_i32_1 = arith.constant 0 : i32
    return %c0_i32, %c0_i32_0 : i32, i32
  }
  func.func @transform_10(%arg0: i32) -> (i32, i32) {
    %c0_i32 = arith.constant 0 : i32
    %c0_i32_0 = arith.constant 0 : i32
    %c0_i32_1 = arith.constant 0 : i32
    return %c0_i32, %c0_i32_0 : i32, i32
  }
  func.func @transform_11(%arg0: i32) -> (i32, i32) {
    %c0_i32 = arith.constant 0 : i32
    %c0_i32_0 = arith.constant 0 : i32
    %c0_i32_1 = arith.constant 0 : i32
    return %c0_i32, %c0_i32_0 : i32, i32
  }
  func.func @transform_12(%arg0: i32) -> (i32, i32) {
    %c0_i32 = arith.constant 0 : i32
    %c0_i32_0 = arith.constant 0 : i32
    %c0_i32_1 = arith.constant 0 : i32
    return %c0_i32, %c0_i32_0 : i32, i32
  }
  func.func @transform_13(%arg0: i32) -> (i32, i32) {
    %c0_i32 = arith.constant 0 : i32
    %c0_i32_0 = arith.constant 0 : i32
    %c0_i32_1 = arith.constant 0 : i32
    return %c0_i32, %c0_i32_0 : i32, i32
  }
  func.func @transform_14(%arg0: i32) -> (i32, i32) {
    %c0_i32 = arith.constant 0 : i32
    %c0_i32_0 = arith.constant 0 : i32
    %c0_i32_1 = arith.constant 0 : i32
    return %c0_i32, %c0_i32_0 : i32, i32
  }
  func.func @transform_15(%arg0: i32) -> (i32, i32) {
    %c0_i32 = arith.constant 0 : i32
    %c0_i32_0 = arith.constant 0 : i32
    return %arg0, %c0_i32 : i32, i32
  }
}

</mosaic_0001>

<llo_original>
// kernel: forward.1
$region0: #{forward.1}
  #allocation0 [shape = 'u32[]', space=smem, size = 0x4, offset = 0x4, fixed_abs, tag = 'smem constant byte address 0x4 - core index']
  #allocation1 [shape = 'u32[144,128]{1,0:T(1,128)}', space=vmem, size = 0x12000, scoped, tag = 'internal scratch']
  %s0 = inlined_call_operand.vmem [shape: bf16[512,32], index: 0, kind: input, shape index: {}]
  %s1 = inlined_call_operand.vmem [shape: bf16[32,128], index: 1, kind: input, shape index: {}]
  %s2 = inlined_call_operand.vmem [shape: f32[1,128], index: 2, kind: input, shape index: {}, may-alias: {2,6,10}]
  %s3 = inlined_call_operand.vmem [shape: f32[1,128], index: 3, kind: input, shape index: {}, may-alias: {3,7,11}]
  %s4 = inlined_call_operand.vmem [shape: f32[1,128], index: 4, kind: input, shape index: {}, may-alias: {4,8,12}]
  %s5 = inlined_call_operand.vmem [shape: bf16[128,128], index: 5, kind: input, shape index: {}]
  %s6 = inlined_call_operand.vmem [shape: f32[1,128], index: 6, kind: input, shape index: {}, may-alias: {2,6,10}]
  %s7 = inlined_call_operand.vmem [shape: f32[1,128], index: 7, kind: input, shape index: {}, may-alias: {3,7,11}]
  %s8 = inlined_call_operand.vmem [shape: f32[1,128], index: 8, kind: input, shape index: {}, may-alias: {4,8,12}]
  %s9 = inlined_call_operand.vmem [shape: bf16[128,128], index: 9, kind: input, shape index: {}]
  %s10 = inlined_call_operand.vmem [shape: f32[1,128], index: 10, kind: input, shape index: {}, may-alias: {2,6,10}]
  %s11 = inlined_call_operand.vmem [shape: f32[1,128], index: 11, kind: input, shape index: {}, may-alias: {3,7,11}]
  %s12 = inlined_call_operand.vmem [shape: f32[1,128], index: 12, kind: input, shape index: {}, may-alias: {4,8,12}]
  %s13 = inlined_call_operand.vmem [shape: bf16[128,128], index: 13, kind: input, shape index: {}]
  %s14 = inlined_call_operand.vmem [shape: f32[1,128], index: 14, kind: input, shape index: {}]
  %s15 = inlined_call_operand.vmem [shape: bf16[512,128], index: 15, kind: output, shape index: {}]
  %s16 = sld [smem:[#allocation0]]
  $region70: #{forward.1} parent=0
    _
  %s18 = ssub.s32 1, %s16
  %s19 = scalar_select 0, %s18, %s16
  // Predicated region
  $region2: #{forward.1} parent=0 // pred_check
    _
  $region3: #{forward.1} parent=0 // pred_check_branch
    %21 = sbr.rel (0) target = $region5
  $region4: #{forward.1} parent=0 // pred_region
    _
  $region5: #{forward.1} parent=0 // pred_fallthru
    _
  // Predicated region
  $region6: #{forward.1} parent=0 // pred_check
    _
  $region7: #{forward.1} parent=0 // pred_check_branch
    %23 = sbr.rel (0) target = $region9
  $region8: #{forward.1} parent=0 // pred_region
    _
  $region9: #{forward.1} parent=0 // pred_fallthru
    _
  // Predicated region
  $region10: #{forward.1} parent=0 // pred_check
    _
  $region11: #{forward.1} parent=0 // pred_check_branch
    %25 = sbr.rel (0) target = $region13
  $region12: #{forward.1} parent=0 // pred_region
    _
  $region13: #{forward.1} parent=0 // pred_fallthru
    _
  // Predicated region
  $region14: #{forward.1} parent=0 // pred_check
    _
  $region15: #{forward.1} parent=0 // pred_check_branch
    %27 = sbr.rel (0) target = $region17
  $region16: #{forward.1} parent=0 // pred_region
    _
  $region17: #{forward.1} parent=0 // pred_fallthru
    _
  // Predicated region
  $region18: #{forward.1} parent=0 // pred_check
    _
  $region19: #{forward.1} parent=0 // pred_check_branch
    %29 = sbr.rel (0) target = $region21
  $region20: #{forward.1} parent=0 // pred_region
    _
  $region21: #{forward.1} parent=0 // pred_fallthru
    _
  // Predicated region
  $region22: #{forward.1} parent=0 // pred_check
    _
  $region23: #{forward.1} parent=0 // pred_check_branch
    %31 = sbr.rel (0) target = $region25
  $region24: #{forward.1} parent=0 // pred_region
    _
  $region25: #{forward.1} parent=0 // pred_fallthru
    _
  // Predicated region
  $region26: #{forward.1} parent=0 // pred_check
    _
  $region27: #{forward.1} parent=0 // pred_check_branch
    %33 = sbr.rel (0) target = $region29
  $region28: #{forward.1} parent=0 // pred_region
    _
  $region29: #{forward.1} parent=0 // pred_fallthru
    _
  // Predicated region
  $region30: #{forward.1} parent=0 // pred_check
    _
  $region31: #{forward.1} parent=0 // pred_check_branch
    %35 = sbr.rel (0) target = $region33
  $region32: #{forward.1} parent=0 // pred_region
    _
  $region33: #{forward.1} parent=0 // pred_fallthru
    _
  // Predicated region
  $region34: #{forward.1} parent=0 // pred_check
    _
  $region35: #{forward.1} parent=0 // pred_check_branch
    %37 = sbr.rel (0) target = $region37
  $region36: #{forward.1} parent=0 // pred_region
    _
  $region37: #{forward.1} parent=0 // pred_fallthru
    _
  // Predicated region
  $region38: #{forward.1} parent=0 // pred_check
    _
  $region39: #{forward.1} parent=0 // pred_check_branch
    %39 = sbr.rel (0) target = $region41
  $region40: #{forward.1} parent=0 // pred_region
    _
  $region41: #{forward.1} parent=0 // pred_fallthru
    _
  // Predicated region
  $region42: #{forward.1} parent=0 // pred_check
    _
  $region43: #{forward.1} parent=0 // pred_check_branch
    %41 = sbr.rel (0) target = $region45
  $region44: #{forward.1} parent=0 // pred_region
    _
  $region45: #{forward.1} parent=0 // pred_fallthru
    _
  // Predicated region
  $region46: #{forward.1} parent=0 // pred_check
    _
  $region47: #{forward.1} parent=0 // pred_check_branch
    %43 = sbr.rel (0) target = $region49
  $region48: #{forward.1} parent=0 // pred_region
    _
  $region49: #{forward.1} parent=0 // pred_fallthru
    _
  // Predicated region
  $region50: #{forward.1} parent=0 // pred_check
    _
  $region51: #{forward.1} parent=0 // pred_check_branch
    %45 = sbr.rel (0) target = $region53
  $region52: #{forward.1} parent=0 // pred_region
    _
  $region53: #{forward.1} parent=0 // pred_fallthru
    _
  // Predicated region
  $region54: #{forward.1} parent=0 // pred_check
    _
  $region55: #{forward.1} parent=0 // pred_check_branch
    %47 = sbr.rel (0) target = $region57
  $region56: #{forward.1} parent=0 // pred_region
    _
  $region57: #{forward.1} parent=0 // pred_fallthru
    _
  // Predicated region
  $region58: #{forward.1} parent=0 // pred_check
    _
  $region59: #{forward.1} parent=0 // pred_check_branch
    %49 = sbr.rel (0) target = $region61
  $region60: #{forward.1} parent=0 // pred_region
    _
  $region61: #{forward.1} parent=0 // pred_fallthru
    _
  %v51 = vld [vmem:[%s0] sm:$0xf]
  %v52 = vld [vmem:[%s0 + $0x4] sm:$0xf]
  %v53 = vld [vmem:[%s0 + $0x8] sm:$0xf]
  %v54 = vld [vmem:[%s0 + $0xc] sm:$0xf]
  %v55 = vld [vmem:[%s0 + $0x10] sm:$0xf]
  %v56 = vld [vmem:[%s0 + $0x14] sm:$0xf]
  %v57 = vld [vmem:[%s0 + $0x18] sm:$0xf]
  %v58 = vld [vmem:[%s0 + $0x1c] sm:$0xf]
  %v59 = vld [vmem:[%s0 + $0x20] sm:$0xf]
  %v60 = vld [vmem:[%s0 + $0x24] sm:$0xf]
  %v61 = vld [vmem:[%s0 + $0x28] sm:$0xf]
  %v62 = vld [vmem:[%s0 + $0x2c] sm:$0xf]
  %v63 = vld [vmem:[%s0 + $0x30] sm:$0xf]
  %v64 = vld [vmem:[%s0 + $0x34] sm:$0xf]
  %v65 = vld [vmem:[%s0 + $0x38] sm:$0xf]
  %v66 = vld [vmem:[%s0 + $0x3c] sm:$0xf]
  %v67 = vld [vmem:[%s0 + $0x40] sm:$0xf]
  %v68 = vld [vmem:[%s0 + $0x44] sm:$0xf]
  %v69 = vld [vmem:[%s0 + $0x48] sm:$0xf]
  %v70 = vld [vmem:[%s0 + $0x4c] sm:$0xf]
  %v71 = vld [vmem:[%s0 + $0x50] sm:$0xf]
  %v72 = vld [vmem:[%s0 + $0x54] sm:$0xf]
  %v73 = vld [vmem:[%s0 + $0x58] sm:$0xf]
  %v74 = vld [vmem:[%s0 + $0x5c] sm:$0xf]
  %v75 = vld [vmem:[%s0 + $0x60] sm:$0xf]
  %v76 = vld [vmem:[%s0 + $0x64] sm:$0xf]
  %v77 = vld [vmem:[%s0 + $0x68] sm:$0xf]
  %v78 = vld [vmem:[%s0 + $0x6c] sm:$0xf]
  %v79 = vld [vmem:[%s0 + $0x70] sm:$0xf]
  %v80 = vld [vmem:[%s0 + $0x74] sm:$0xf]
  %v81 = vld [vmem:[%s0 + $0x78] sm:$0xf]
  %v82 = vld [vmem:[%s0 + $0x7c] sm:$0xf]
  %v83 = vld [vmem:[%s0 + $0x80] sm:$0xf]
  %v84 = vld [vmem:[%s0 + $0x84] sm:$0xf]
  %v85 = vld [vmem:[%s0 + $0x88] sm:$0xf]
  %v86 = vld [vmem:[%s0 + $0x8c] sm:$0xf]
  %v87 = vld [vmem:[%s0 + $0x90] sm:$0xf]
  %v88 = vld [vmem:[%s0 + $0x94] sm:$0xf]
  %v89 = vld [vmem:[%s0 + $0x98] sm:$0xf]
  %v90 = vld [vmem:[%s0 + $0x9c] sm:$0xf]
  %v91 = vld [vmem:[%s0 + $0xa0] sm:$0xf]
  %v92 = vld [vmem:[%s0 + $0xa4] sm:$0xf]
  %v93 = vld [vmem:[%s0 + $0xa8] sm:$0xf]
  %v94 = vld [vmem:[%s0 + $0xac] sm:$0xf]
  %v95 = vld [vmem:[%s0 + $0xb0] sm:$0xf]
  %v96 = vld [vmem:[%s0 + $0xb4] sm:$0xf]
  %v97 = vld [vmem:[%s0 + $0xb8] sm:$0xf]
  %v98 = vld [vmem:[%s0 + $0xbc] sm:$0xf]
  %v99 = vld [vmem:[%s0 + $0xc0] sm:$0xf]
  %v100 = vld [vmem:[%s0 + $0xc4] sm:$0xf]
  %v101 = vld [vmem:[%s0 + $0xc8] sm:$0xf]
  %v102 = vld [vmem:[%s0 + $0xcc] sm:$0xf]
  %v103 = vld [vmem:[%s0 + $0xd0] sm:$0xf]
  %v104 = vld [vmem:[%s0 + $0xd4] sm:$0xf]
  %v105 = vld [vmem:[%s0 + $0xd8] sm:$0xf]
  %v106 = vld [vmem:[%s0 + $0xdc] sm:$0xf]
  %v107 = vld [vmem:[%s0 + $0xe0] sm:$0xf]
  %v108 = vld [vmem:[%s0 + $0xe4] sm:$0xf]
  %v109 = vld [vmem:[%s0 + $0xe8] sm:$0xf]
  %v110 = vld [vmem:[%s0 + $0xec] sm:$0xf]
  %v111 = vld [vmem:[%s0 + $0xf0] sm:$0xf]
  %v112 = vld [vmem:[%s0 + $0xf4] sm:$0xf]
  %v113 = vld [vmem:[%s0 + $0xf8] sm:$0xf]
  %v114 = vld [vmem:[%s0 + $0xfc] sm:$0xf]
  %v115 = vld [vmem:[%s1] sm:$0xf]
  %v116 = vld [vmem:[%s1 + $0x4] sm:$0xf]
  %v117 = vld [vmem:[%s1 + $0x8] sm:$0xf]
  %v118 = vld [vmem:[%s1 + $0xc] sm:$0xf]
  %v119 = vld [vmem:[%s2] sm:$0x1]
  %v121 = vlaneseq
  %v122 = vshrl.u32 %v121, 7
  %v123 = vsub.s32 0, %v122
  %v124 = vrot.slane %v119, %v123
  %v190 = vunpack.c.l.b16 %v51
  %v191 = vunpack.c.l.b16 %v52
  %v192 = vunpack.c.l.b16 %v53
  %v193 = vunpack.c.l.b16 %v54
  %v194 = vunpack.c.l.b16 %v55
  %v195 = vunpack.c.l.b16 %v56
  %v196 = vunpack.c.l.b16 %v57
  %v197 = vunpack.c.l.b16 %v58
  %v198 = vunpack.c.l.b16 %v59
  %v199 = vunpack.c.l.b16 %v60
  %v200 = vunpack.c.l.b16 %v61
  %v201 = vunpack.c.l.b16 %v62
  %v202 = vunpack.c.l.b16 %v63
  %v203 = vunpack.c.l.b16 %v64
  %v204 = vunpack.c.l.b16 %v65
  %v205 = vunpack.c.l.b16 %v66
  %v206 = vunpack.c.l.b16 %v67
  %v207 = vunpack.c.l.b16 %v68
  %v208 = vunpack.c.l.b16 %v69
  %v209 = vunpack.c.l.b16 %v70
  %v210 = vunpack.c.l.b16 %v71
  %v211 = vunpack.c.l.b16 %v72
  %v212 = vunpack.c.l.b16 %v73
  %v213 = vunpack.c.l.b16 %v74
  %v214 = vunpack.c.l.b16 %v75
  %v215 = vunpack.c.l.b16 %v76
  %v216 = vunpack.c.l.b16 %v77
  %v217 = vunpack.c.l.b16 %v78
  %v218 = vunpack.c.l.b16 %v79
  %v219 = vunpack.c.l.b16 %v80
  %v220 = vunpack.c.l.b16 %v81
  %v221 = vunpack.c.l.b16 %v82
  %v222 = vunpack.c.l.b16 %v83
  %v223 = vunpack.c.l.b16 %v84
  %v224 = vunpack.c.l.b16 %v85
  %v225 = vunpack.c.l.b16 %v86
  %v226 = vunpack.c.l.b16 %v87
  %v227 = vunpack.c.l.b16 %v88
  %v228 = vunpack.c.l.b16 %v89
  %v229 = vunpack.c.l.b16 %v90
  %v230 = vunpack.c.l.b16 %v91
  %v231 = vunpack.c.l.b16 %v92
  %v232 = vunpack.c.l.b16 %v93
  %v233 = vunpack.c.l.b16 %v94
  %v234 = vunpack.c.l.b16 %v95
  %v235 = vunpack.c.l.b16 %v96
  %v236 = vunpack.c.l.b16 %v97
  %v237 = vunpack.c.l.b16 %v98
  %v238 = vunpack.c.l.b16 %v99
  %v239 = vunpack.c.l.b16 %v100
  %v240 = vunpack.c.l.b16 %v101
  %v241 = vunpack.c.l.b16 %v102
  %v242 = vunpack.c.l.b16 %v103
  %v243 = vunpack.c.l.b16 %v104
  %v244 = vunpack.c.l.b16 %v105
  %v245 = vunpack.c.l.b16 %v106
  %v246 = vunpack.c.l.b16 %v107
  %v247 = vunpack.c.l.b16 %v108
  %v248 = vunpack.c.l.b16 %v109
  %v249 = vunpack.c.l.b16 %v110
  %v250 = vunpack.c.l.b16 %v111
  %v251 = vunpack.c.l.b16 %v112
  %v252 = vunpack.c.l.b16 %v113
  %v253 = vunpack.c.l.b16 %v114
  %v254 = vpack.c.b16 %v191, %v190
  %v255 = vpack.c.b16 %v193, %v192
  %v256 = vpack.c.b16 %v195, %v194
  %v257 = vpack.c.b16 %v197, %v196
  %v258 = vpack.c.b16 %v199, %v198
  %v259 = vpack.c.b16 %v201, %v200
  %v260 = vpack.c.b16 %v203, %v202
  %v261 = vpack.c.b16 %v205, %v204
  %v262 = vpack.c.b16 %v207, %v206
  %v263 = vpack.c.b16 %v209, %v208
  %v264 = vpack.c.b16 %v211, %v210
  %v265 = vpack.c.b16 %v213, %v212
  %v266 = vpack.c.b16 %v215, %v214
  %v267 = vpack.c.b16 %v217, %v216
  %v268 = vpack.c.b16 %v219, %v218
  %v269 = vpack.c.b16 %v221, %v220
  %v270 = vpack.c.b16 %v223, %v222
  %v271 = vpack.c.b16 %v225, %v224
  %v272 = vpack.c.b16 %v227, %v226
  %v273 = vpack.c.b16 %v229, %v228
  %v274 = vpack.c.b16 %v231, %v230
  %v275 = vpack.c.b16 %v233, %v232
  %v276 = vpack.c.b16 %v235, %v234
  %v277 = vpack.c.b16 %v237, %v236
  %v278 = vpack.c.b16 %v239, %v238
  %v279 = vpack.c.b16 %v241, %v240
  %v280 = vpack.c.b16 %v243, %v242
  %v281 = vpack.c.b16 %v245, %v244
  %v282 = vpack.c.b16 %v247, %v246
  %v283 = vpack.c.b16 %v249, %v248
  %v284 = vpack.c.b16 %v251, %v250
  %v285 = vpack.c.b16 %v253, %v252
  %v290 = vunpack.c.l.b16 %v115
  %v291 = vunpack.c.l.b16 %v116
  %v292 = vunpack.c.l.b16 %v117
  %v293 = vunpack.c.l.b16 %v118
  %v294 = vpack.c.b16 %v291, %v290
  %v295 = vpack.c.b16 %v293, %v292
  %vm298 = vcmask 261120
  %v300 = vsel %vm298, %v254, 0
  %v303 = vsel %vm298, %v255, 0
  %v306 = vsel %vm298, %v256, 0
  %v309 = vsel %vm298, %v257, 0
  %v312 = vsel %vm298, %v258, 0
  %v315 = vsel %vm298, %v259, 0
  %v318 = vsel %vm298, %v260, 0
  %v321 = vsel %vm298, %v261, 0
  %v324 = vsel %vm298, %v262, 0
  %v327 = vsel %vm298, %v263, 0
  %v330 = vsel %vm298, %v264, 0
  %v333 = vsel %vm298, %v265, 0
  %v336 = vsel %vm298, %v266, 0
  %v339 = vsel %vm298, %v267, 0
  %v342 = vsel %vm298, %v268, 0
  %v345 = vsel %vm298, %v269, 0
  %v348 = vsel %vm298, %v270, 0
  %v351 = vsel %vm298, %v271, 0
  %v354 = vsel %vm298, %v272, 0
  %v357 = vsel %vm298, %v273, 0
  %v360 = vsel %vm298, %v274, 0
  %v363 = vsel %vm298, %v275, 0
  %v366 = vsel %vm298, %v276, 0
  %v369 = vsel %vm298, %v277, 0
  %v372 = vsel %vm298, %v278, 0
  %v375 = vsel %vm298, %v279, 0
  %v378 = vsel %vm298, %v280, 0
  %v381 = vsel %vm298, %v281, 0
  %v384 = vsel %vm298, %v282, 0
  %v387 = vsel %vm298, %v283, 0
  %v390 = vsel %vm298, %v284, 0
  %v393 = vsel %vm298, %v285, 0
  %395 = vmatprep.subr.bf16.mxu0 0
  %396 = vmatpush1.bf16.msra.mxu0 0
  %397 = vmatprep.subr.bf16.mxu0 0
  %398 = vmatpush1.bf16.msra.mxu0 0
  %399 = vmatprep.subr.bf16.mxu0 0
  %400 = vmatpush1.bf16.msra.mxu0 0
  %401 = vmatprep.subr.bf16.mxu0 0
  %402 = vmatpush1.bf16.msra.mxu0 0
  %403 = vmatprep.subr.bf16.mxu0 0
  %404 = vmatpush1.bf16.msra.mxu0 0
  %405 = vmatprep.subr.bf16.mxu0 0
  %406 = vmatpush1.bf16.msra.mxu0 0
  %407 = vmatprep.subr.bf16.mxu0 0
  %408 = vmatpush1.bf16.msra.mxu0 %v295
  %409 = vmatprep.subr.bf16.mxu0 0
  %410 = vmatpush1.bf16.msra.mxu0 %v294
  %411 = vmatprep.subr.bf16.mxu0 0
  %412 = vmatpush2.bf16.msra.mxu0 0
  %413 = vmatprep.subr.bf16.mxu0 0
  %414 = vmatpush2.bf16.msra.mxu0 0
  %415 = vmatprep.subr.bf16.mxu0 0
  %416 = vmatpush2.bf16.msra.mxu0 0
  %417 = vmatprep.subr.bf16.mxu0 0
  %418 = vmatpush2.bf16.msra.mxu0 0
  %419 = vmatprep.subr.bf16.mxu0 0
  %420 = vmatpush2.bf16.msra.mxu0 0
  %421 = vmatprep.subr.bf16.mxu0 0
  %422 = vmatpush2.bf16.msra.mxu0 0
  %423 = vmatprep.subr.bf16.mxu0 0
  %424 = vmatpush2.bf16.msra.mxu0 0
  %425 = vmatprep.subr.bf16.mxu0 0
  %426 = vmatpush2.bf16.msra.mxu0 0
  %427 = vmatprep.mubr.bf16.mxu0 0
  %428 = vmatmul.mubr.bf16.gmra.mxu0 %v300
  %v429 = vpop.f32.mrf.mxu0
  %v430 = vadd.f32 %v124, %v429
  %v431 = vpop.f32.mrf.mxu0
  %v432 = vpop.f32.mrf.mxu0
  %v433 = vadd.f32 %v124, %v432
  %v434 = vpop.f32.mrf.mxu0
  %435 = vmatprep.mubr.bf16.mxu0 0
  %436 = vmatmul.mubr.bf16.gmra.mxu0 %v303
  %v437 = vpop.f32.mrf.mxu0
  %v438 = vadd.f32 %v124, %v437
  %v439 = vpop.f32.mrf.mxu0
  %v440 = vpop.f32.mrf.mxu0
  %v441 = vadd.f32 %v124, %v440
  %v442 = vpop.f32.mrf.mxu0
  %443 = vmatprep.mubr.bf16.mxu0 0
  %444 = vmatmul.mubr.bf16.gmra.mxu0 %v306
  %v445 = vpop.f32.mrf.mxu0
  %v446 = vadd.f32 %v124, %v445
  %v447 = vpop.f32.mrf.mxu0
  %v448 = vpop.f32.mrf.mxu0
  %v449 = vadd.f32 %v124, %v448
  %v450 = vpop.f32.mrf.mxu0
  %451 = vmatprep.mubr.bf16.mxu0 0
  %452 = vmatmul.mubr.bf16.gmra.mxu0 %v309
  %v453 = vpop.f32.mrf.mxu0
  %v454 = vadd.f32 %v124, %v453
  %v455 = vpop.f32.mrf.mxu0
  %v456 = vpop.f32.mrf.mxu0
  %v457 = vadd.f32 %v124, %v456
  %v458 = vpop.f32.mrf.mxu0
  %459 = vmatprep.mubr.bf16.mxu0 0
  %460 = vmatmul.mubr.bf16.gmra.mxu0 %v312
  %v461 = vpop.f32.mrf.mxu0
  %v462 = vadd.f32 %v124, %v461
  %v463 = vpop.f32.mrf.mxu0
  %v464 = vpop.f32.mrf.mxu0
  %v465 = vadd.f32 %v124, %v464
  %v466 = vpop.f32.mrf.mxu0
  %467 = vmatprep.mubr.bf16.mxu0 0
  %468 = vmatmul.mubr.bf16.gmra.mxu0 %v315
  %v469 = vpop.f32.mrf.mxu0
  %v470 = vadd.f32 %v124, %v469
  %v471 = vpop.f32.mrf.mxu0
  %v472 = vpop.f32.mrf.mxu0
  %v473 = vadd.f32 %v124, %v472
  %v474 = vpop.f32.mrf.mxu0
  %475 = vmatprep.mubr.bf16.mxu0 0
  %476 = vmatmul.mubr.bf16.gmra.mxu0 %v318
  %v477 = vpop.f32.mrf.mxu0
  %v478 = vadd.f32 %v124, %v477
  %v479 = vpop.f32.mrf.mxu0
  %v480 = vpop.f32.mrf.mxu0
  %v481 = vadd.f32 %v124, %v480
  %v482 = vpop.f32.mrf.mxu0
  %483 = vmatprep.mubr.bf16.mxu0 0
  %484 = vmatmul.mubr.bf16.gmra.mxu0 %v321
  %v485 = vpop.f32.mrf.mxu0
  %v486 = vadd.f32 %v124, %v485
  %v487 = vpop.f32.mrf.mxu0
  %v488 = vpop.f32.mrf.mxu0
  %v489 = vadd.f32 %v124, %v488
  %v490 = vpop.f32.mrf.mxu0
  %491 = vmatprep.mubr.bf16.mxu0 0
  %492 = vmatmul.mubr.bf16.gmra.mxu0 %v324
  %v493 = vpop.f32.mrf.mxu0
  %v494 = vadd.f32 %v124, %v493
  %v495 = vpop.f32.mrf.mxu0
  %v496 = vpop.f32.mrf.mxu0
  %v497 = vadd.f32 %v124, %v496
  %v498 = vpop.f32.mrf.mxu0
  %499 = vmatprep.mubr.bf16.mxu0 0
  %500 = vmatmul.mubr.bf16.gmra.mxu0 %v327
  %v501 = vpop.f32.mrf.mxu0
  %v502 = vadd.f32 %v124, %v501
  %v503 = vpop.f32.mrf.mxu0
  %v504 = vpop.f32.mrf.mxu0
  %v505 = vadd.f32 %v124, %v504
  %v506 = vpop.f32.mrf.mxu0
  %507 = vmatprep.mubr.bf16.mxu0 0
  %508 = vmatmul.mubr.bf16.gmra.mxu0 %v330
  %v509 = vpop.f32.mrf.mxu0
  %v510 = vadd.f32 %v124, %v509
  %v511 = vpop.f32.mrf.mxu0
  %v512 = vpop.f32.mrf.mxu0
  %v513 = vadd.f32 %v124, %v512
  %v514 = vpop.f32.mrf.mxu0
  %515 = vmatprep.mubr.bf16.mxu0 0
  %516 = vmatmul.mubr.bf16.gmra.mxu0 %v333
  %v517 = vpop.f32.mrf.mxu0
  %v518 = vadd.f32 %v124, %v517
  %v519 = vpop.f32.mrf.mxu0
  %v520 = vpop.f32.mrf.mxu0
  %v521 = vadd.f32 %v124, %v520
  %v522 = vpop.f32.mrf.mxu0
  %523 = vmatprep.mubr.bf16.mxu0 0
  %524 = vmatmul.mubr.bf16.gmra.mxu0 %v336
  %v525 = vpop.f32.mrf.mxu0
  %v526 = vadd.f32 %v124, %v525
  %v527 = vpop.f32.mrf.mxu0
  %v528 = vpop.f32.mrf.mxu0
  %v529 = vadd.f32 %v124, %v528
  %v530 = vpop.f32.mrf.mxu0
  %531 = vmatprep.mubr.bf16.mxu0 0
  %532 = vmatmul.mubr.bf16.gmra.mxu0 %v339
  %v533 = vpop.f32.mrf.mxu0
  %v534 = vadd.f32 %v124, %v533
  %v535 = vpop.f32.mrf.mxu0
  %v536 = vpop.f32.mrf.mxu0
  %v537 = vadd.f32 %v124, %v536
  %v538 = vpop.f32.mrf.mxu0
  %539 = vmatprep.mubr.bf16.mxu0 0
  %540 = vmatmul.mubr.bf16.gmra.mxu0 %v342
  %v541 = vpop.f32.mrf.mxu0
  %v542 = vadd.f32 %v124, %v541
  %v543 = vpop.f32.mrf.mxu0
  %v544 = vpop.f32.mrf.mxu0
  %v545 = vadd.f32 %v124, %v544
  %v546 = vpop.f32.mrf.mxu0
  %547 = vmatprep.mubr.bf16.mxu0 0
  %548 = vmatmul.mubr.bf16.gmra.mxu0 %v345
  %v549 = vpop.f32.mrf.mxu0
  %v550 = vadd.f32 %v124, %v549
  %v551 = vpop.f32.mrf.mxu0
  %v552 = vpop.f32.mrf.mxu0
  %v553 = vadd.f32 %v124, %v552
  %v554 = vpop.f32.mrf.mxu0
  %555 = vmatprep.mubr.bf16.mxu0 0
  %556 = vmatmul.mubr.bf16.gmra.mxu0 %v348
  %v557 = vpop.f32.mrf.mxu0
  %v558 = vadd.f32 %v124, %v557
  %v559 = vpop.f32.mrf.mxu0
  %v560 = vpop.f32.mrf.mxu0
  %v561 = vadd.f32 %v124, %v560
  %v562 = vpop.f32.mrf.mxu0
  %563 = vmatprep.mubr.bf16.mxu0 0
  %564 = vmatmul.mubr.bf16.gmra.mxu0 %v351
  %v565 = vpop.f32.mrf.mxu0
  %v566 = vadd.f32 %v124, %v565
  %v567 = vpop.f32.mrf.mxu0
  %v568 = vpop.f32.mrf.mxu0
  %v569 = vadd.f32 %v124, %v568
  %v570 = vpop.f32.mrf.mxu0
  %571 = vmatprep.mubr.bf16.mxu0 0
  %572 = vmatmul.mubr.bf16.gmra.mxu0 %v354
  %v573 = vpop.f32.mrf.mxu0
  %v574 = vadd.f32 %v124, %v573
  %v575 = vpop.f32.mrf.mxu0
  %v576 = vpop.f32.mrf.mxu0
  %v577 = vadd.f32 %v124, %v576
  %v578 = vpop.f32.mrf.mxu0
  %579 = vmatprep.mubr.bf16.mxu0 0
  %580 = vmatmul.mubr.bf16.gmra.mxu0 %v357
  %v581 = vpop.f32.mrf.mxu0
  %v582 = vadd.f32 %v124, %v581
  %v583 = vpop.f32.mrf.mxu0
  %v584 = vpop.f32.mrf.mxu0
  %v585 = vadd.f32 %v124, %v584
  %v586 = vpop.f32.mrf.mxu0
  %587 = vmatprep.mubr.bf16.mxu0 0
  %588 = vmatmul.mubr.bf16.gmra.mxu0 %v360
  %v589 = vpop.f32.mrf.mxu0
  %v590 = vadd.f32 %v124, %v589
  %v591 = vpop.f32.mrf.mxu0
  %v592 = vpop.f32.mrf.mxu0
  %v593 = vadd.f32 %v124, %v592
  %v594 = vpop.f32.mrf.mxu0
  %595 = vmatprep.mubr.bf16.mxu0 0
  %596 = vmatmul.mubr.bf16.gmra.mxu0 %v363
  %v597 = vpop.f32.mrf.mxu0
  %v598 = vadd.f32 %v124, %v597
  %v599 = vpop.f32.mrf.mxu0
  %v600 = vpop.f32.mrf.mxu0
  %v601 = vadd.f32 %v124, %v600
  %v602 = vpop.f32.mrf.mxu0
  %603 = vmatprep.mubr.bf16.mxu0 0
  %604 = vmatmul.mubr.bf16.gmra.mxu0 %v366
  %v605 = vpop.f32.mrf.mxu0
  %v606 = vadd.f32 %v124, %v605
  %v607 = vpop.f32.mrf.mxu0
  %v608 = vpop.f32.mrf.mxu0
  %v609 = vadd.f32 %v124, %v608
  %v610 = vpop.f32.mrf.mxu0
  %611 = vmatprep.mubr.bf16.mxu0 0
  %612 = vmatmul.mubr.bf16.gmra.mxu0 %v369
  %v613 = vpop.f32.mrf.mxu0
  %v614 = vadd.f32 %v124, %v613
  %v615 = vpop.f32.mrf.mxu0
  %v616 = vpop.f32.mrf.mxu0
  %v617 = vadd.f32 %v124, %v616
  %v618 = vpop.f32.mrf.mxu0
  %619 = vmatprep.mubr.bf16.mxu0 0
  %620 = vmatmul.mubr.bf16.gmra.mxu0 %v372
  %v621 = vpop.f32.mrf.mxu0
  %v622 = vadd.f32 %v124, %v621
  %v623 = vpop.f32.mrf.mxu0
  %v624 = vpop.f32.mrf.mxu0
  %v625 = vadd.f32 %v124, %v624
  %v626 = vpop.f32.mrf.mxu0
  %627 = vmatprep.mubr.bf16.mxu0 0
  %628 = vmatmul.mubr.bf16.gmra.mxu0 %v375
  %v629 = vpop.f32.mrf.mxu0
  %v630 = vadd.f32 %v124, %v629
  %v631 = vpop.f32.mrf.mxu0
  %v632 = vpop.f32.mrf.mxu0
  %v633 = vadd.f32 %v124, %v632
  %v634 = vpop.f32.mrf.mxu0
  %635 = vmatprep.mubr.bf16.mxu0 0
  %636 = vmatmul.mubr.bf16.gmra.mxu0 %v378
  %v637 = vpop.f32.mrf.mxu0
  %v638 = vadd.f32 %v124, %v637
  %v639 = vpop.f32.mrf.mxu0
  %v640 = vpop.f32.mrf.mxu0
  %v641 = vadd.f32 %v124, %v640
  %v642 = vpop.f32.mrf.mxu0
  %643 = vmatprep.mubr.bf16.mxu0 0
  %644 = vmatmul.mubr.bf16.gmra.mxu0 %v381
  %v645 = vpop.f32.mrf.mxu0
  %v646 = vadd.f32 %v124, %v645
  %v647 = vpop.f32.mrf.mxu0
  %v648 = vpop.f32.mrf.mxu0
  %v649 = vadd.f32 %v124, %v648
  %v650 = vpop.f32.mrf.mxu0
  %651 = vmatprep.mubr.bf16.mxu0 0
  %652 = vmatmul.mubr.bf16.gmra.mxu0 %v384
  %v653 = vpop.f32.mrf.mxu0
  %v654 = vadd.f32 %v124, %v653
  %v655 = vpop.f32.mrf.mxu0
  %v656 = vpop.f32.mrf.mxu0
  %v657 = vadd.f32 %v124, %v656
  %v658 = vpop.f32.mrf.mxu0
  %659 = vmatprep.mubr.bf16.mxu0 0
  %660 = vmatmul.mubr.bf16.gmra.mxu0 %v387
  %v661 = vpop.f32.mrf.mxu0
  %v662 = vadd.f32 %v124, %v661
  %v663 = vpop.f32.mrf.mxu0
  %v664 = vpop.f32.mrf.mxu0
  %v665 = vadd.f32 %v124, %v664
  %v666 = vpop.f32.mrf.mxu0
  %667 = vmatprep.mubr.bf16.mxu0 0
  %668 = vmatmul.mubr.bf16.gmra.mxu0 %v390
  %v669 = vpop.f32.mrf.mxu0
  %v670 = vadd.f32 %v124, %v669
  %v671 = vpop.f32.mrf.mxu0
  %v672 = vpop.f32.mrf.mxu0
  %v673 = vadd.f32 %v124, %v672
  %v674 = vpop.f32.mrf.mxu0
  %675 = vmatprep.mubr.bf16.mxu0 0
  %676 = vmatmul.mubr.bf16.gmra.mxu0 %v393
  %v677 = vpop.f32.mrf.mxu0
  %v678 = vadd.f32 %v124, %v677
  %v679 = vpop.f32.mrf.mxu0
  %v680 = vpop.f32.mrf.mxu0
  %v681 = vadd.f32 %v124, %v680
  %v682 = vpop.f32.mrf.mxu0
  %683 = vdwg.mxu0
  %v684 = vld [vmem:[%s3] sm:$0x1]
  %v685 = vld [vmem:[%s4] sm:$0x1]
  %686 = vadd.xlane.f32.xlu0 %v430
  %v687 = vpop.xlane.xlu0 %686
  %688 = vadd.xlane.f32.xlu0 %v433
  %v689 = vpop.xlane.xlu0 %688
  %690 = vadd.xlane.f32.xlu0 %v438
  %v691 = vpop.xlane.xlu0 %690
  %692 = vadd.xlane.f32.xlu0 %v441
  %v693 = vpop.xlane.xlu0 %692
  %694 = vadd.xlane.f32.xlu0 %v446
  %v695 = vpop.xlane.xlu0 %694
  %696 = vadd.xlane.f32.xlu0 %v449
  %v697 = vpop.xlane.xlu0 %696
  %698 = vadd.xlane.f32.xlu0 %v454
  %v699 = vpop.xlane.xlu0 %698
  %700 = vadd.xlane.f32.xlu0 %v457
  %v701 = vpop.xlane.xlu0 %700
  %702 = vadd.xlane.f32.xlu0 %v462
  %v703 = vpop.xlane.xlu0 %702
  %704 = vadd.xlane.f32.xlu0 %v465
  %v705 = vpop.xlane.xlu0 %704
  %706 = vadd.xlane.f32.xlu0 %v470
  %v707 = vpop.xlane.xlu0 %706
  %708 = vadd.xlane.f32.xlu0 %v473
  %v709 = vpop.xlane.xlu0 %708
  %710 = vadd.xlane.f32.xlu0 %v478
  %v711 = vpop.xlane.xlu0 %710
  %712 = vadd.xlane.f32.xlu0 %v481
  %v713 = vpop.xlane.xlu0 %712
  %714 = vadd.xlane.f32.xlu0 %v486
  %v715 = vpop.xlane.xlu0 %714
  %716 = vadd.xlane.f32.xlu0 %v489
  %v717 = vpop.xlane.xlu0 %716
  %718 = vadd.xlane.f32.xlu0 %v494
  %v719 = vpop.xlane.xlu0 %718
  %720 = vadd.xlane.f32.xlu0 %v497
  %v721 = vpop.xlane.xlu0 %720
  %722 = vadd.xlane.f32.xlu0 %v502
  %v723 = vpop.xlane.xlu0 %722
  %724 = vadd.xlane.f32.xlu0 %v505
  %v725 = vpop.xlane.xlu0 %724
  %726 = vadd.xlane.f32.xlu0 %v510
  %v727 = vpop.xlane.xlu0 %726
  %728 = vadd.xlane.f32.xlu0 %v513
  %v729 = vpop.xlane.xlu0 %728
  %730 = vadd.xlane.f32.xlu0 %v518
  %v731 = vpop.xlane.xlu0 %730
  %732 = vadd.xlane.f32.xlu0 %v521
  %v733 = vpop.xlane.xlu0 %732
  %734 = vadd.xlane.f32.xlu0 %v526
  %v735 = vpop.xlane.xlu0 %734
  %736 = vadd.xlane.f32.xlu0 %v529
  %v737 = vpop.xlane.xlu0 %736
  %738 = vadd.xlane.f32.xlu0 %v534
  %v739 = vpop.xlane.xlu0 %738
  %740 = vadd.xlane.f32.xlu0 %v537
  %v741 = vpop.xlane.xlu0 %740
  %742 = vadd.xlane.f32.xlu0 %v542
  %v743 = vpop.xlane.xlu0 %742
  %744 = vadd.xlane.f32.xlu0 %v545
  %v745 = vpop.xlane.xlu0 %744
  %746 = vadd.xlane.f32.xlu0 %v550
  %v747 = vpop.xlane.xlu0 %746
  %748 = vadd.xlane.f32.xlu0 %v553
  %v749 = vpop.xlane.xlu0 %748
  %750 = vadd.xlane.f32.xlu0 %v558
  %v751 = vpop.xlane.xlu0 %750
  %752 = vadd.xlane.f32.xlu0 %v561
  %v753 = vpop.xlane.xlu0 %752
  %754 = vadd.xlane.f32.xlu0 %v566
  %v755 = vpop.xlane.xlu0 %754
  %756 = vadd.xlane.f32.xlu0 %v569
  %v757 = vpop.xlane.xlu0 %756
  %758 = vadd.xlane.f32.xlu0 %v574
  %v759 = vpop.xlane.xlu0 %758
  %760 = vadd.xlane.f32.xlu0 %v577
  %v761 = vpop.xlane.xlu0 %760
  %762 = vadd.xlane.f32.xlu0 %v582
  %v763 = vpop.xlane.xlu0 %762
  %764 = vadd.xlane.f32.xlu0 %v585
  %v765 = vpop.xlane.xlu0 %764
  %766 = vadd.xlane.f32.xlu0 %v590
  %v767 = vpop.xlane.xlu0 %766
  %768 = vadd.xlane.f32.xlu0 %v593
  %v769 = vpop.xlane.xlu0 %768
  %770 = vadd.xlane.f32.xlu0 %v598
  %v771 = vpop.xlane.xlu0 %770
  %772 = vadd.xlane.f32.xlu0 %v601
  %v773 = vpop.xlane.xlu0 %772
  %774 = vadd.xlane.f32.xlu0 %v606
  %v775 = vpop.xlane.xlu0 %774
  %776 = vadd.xlane.f32.xlu0 %v609
  %v777 = vpop.xlane.xlu0 %776
  %778 = vadd.xlane.f32.xlu0 %v614
  %v779 = vpop.xlane.xlu0 %778
  %780 = vadd.xlane.f32.xlu0 %v617
  %v781 = vpop.xlane.xlu0 %780
  %782 = vadd.xlane.f32.xlu0 %v622
  %v783 = vpop.xlane.xlu0 %782
  %784 = vadd.xlane.f32.xlu0 %v625
  %v785 = vpop.xlane.xlu0 %784
  %786 = vadd.xlane.f32.xlu0 %v630
  %v787 = vpop.xlane.xlu0 %786
  %788 = vadd.xlane.f32.xlu0 %v633
  %v789 = vpop.xlane.xlu0 %788
  %790 = vadd.xlane.f32.xlu0 %v638
  %v791 = vpop.xlane.xlu0 %790
  %792 = vadd.xlane.f32.xlu0 %v641
  %v793 = vpop.xlane.xlu0 %792
  %794 = vadd.xlane.f32.xlu0 %v646
  %v795 = vpop.xlane.xlu0 %794
  %796 = vadd.xlane.f32.xlu0 %v649
  %v797 = vpop.xlane.xlu0 %796
  %798 = vadd.xlane.f32.xlu0 %v654
  %v799 = vpop.xlane.xlu0 %798
  %800 = vadd.xlane.f32.xlu0 %v657
  %v801 = vpop.xlane.xlu0 %800
  %802 = vadd.xlane.f32.xlu0 %v662
  %v803 = vpop.xlane.xlu0 %802
  %804 = vadd.xlane.f32.xlu0 %v665
  %v805 = vpop.xlane.xlu0 %804
  %806 = vadd.xlane.f32.xlu0 %v670
  %v807 = vpop.xlane.xlu0 %806
  %808 = vadd.xlane.f32.xlu0 %v673
  %v809 = vpop.xlane.xlu0 %808
  %810 = vadd.xlane.f32.xlu0 %v678
  %v811 = vpop.xlane.xlu0 %810
  %812 = vadd.xlane.f32.xlu0 %v681
  %v813 = vpop.xlane.xlu0 %812
  %v814 = vmul.f32 %v687, 0.015625
  %v815 = vmul.f32 %v689, 0.015625
  %v816 = vmul.f32 %v691, 0.015625
  %v817 = vmul.f32 %v693, 0.015625
  %v818 = vmul.f32 %v695, 0.015625
  %v819 = vmul.f32 %v697, 0.015625
  %v820 = vmul.f32 %v699, 0.015625
  %v821 = vmul.f32 %v701, 0.015625
  %v822 = vmul.f32 %v703, 0.015625
  %v823 = vmul.f32 %v705, 0.015625
  %v824 = vmul.f32 %v707, 0.015625
  %v825 = vmul.f32 %v709, 0.015625
  %v826 = vmul.f32 %v711, 0.015625
  %v827 = vmul.f32 %v713, 0.015625
  %v828 = vmul.f32 %v715, 0.015625
  %v829 = vmul.f32 %v717, 0.015625
  %v830 = vmul.f32 %v719, 0.015625
  %v831 = vmul.f32 %v721, 0.015625
  %v832 = vmul.f32 %v723, 0.015625
  %v833 = vmul.f32 %v725, 0.015625
  %v834 = vmul.f32 %v727, 0.015625
  %v835 = vmul.f32 %v729, 0.015625
  %v836 = vmul.f32 %v731, 0.015625
  %v837 = vmul.f32 %v733, 0.015625
  %v838 = vmul.f32 %v735, 0.015625
  %v839 = vmul.f32 %v737, 0.015625
  %v840 = vmul.f32 %v739, 0.015625
  %v841 = vmul.f32 %v741, 0.015625
  %v842 = vmul.f32 %v743, 0.015625
  %v843 = vmul.f32 %v745, 0.015625
  %v844 = vmul.f32 %v747, 0.015625
  %v845 = vmul.f32 %v749, 0.015625
  %v846 = vmul.f32 %v751, 0.015625
  %v847 = vmul.f32 %v753, 0.015625
  %v848 = vmul.f32 %v755, 0.015625
  %v849 = vmul.f32 %v757, 0.015625
  %v850 = vmul.f32 %v759, 0.015625
  %v851 = vmul.f32 %v761, 0.015625
  %v852 = vmul.f32 %v763, 0.015625
  %v853 = vmul.f32 %v765, 0.015625
  %v854 = vmul.f32 %v767, 0.015625
  %v855 = vmul.f32 %v769, 0.015625
  %v856 = vmul.f32 %v771, 0.015625
  %v857 = vmul.f32 %v773, 0.015625
  %v858 = vmul.f32 %v775, 0.015625
  %v859 = vmul.f32 %v777, 0.015625
  %v860 = vmul.f32 %v779, 0.015625
  %v861 = vmul.f32 %v781, 0.015625
  %v862 = vmul.f32 %v783, 0.015625
  %v863 = vmul.f32 %v785, 0.015625
  %v864 = vmul.f32 %v787, 0.015625
  %v865 = vmul.f32 %v789, 0.015625
  %v866 = vmul.f32 %v791, 0.015625
  %v867 = vmul.f32 %v793, 0.015625
  %v868 = vmul.f32 %v795, 0.015625
  %v869 = vmul.f32 %v797, 0.015625
  %v870 = vmul.f32 %v799, 0.015625
  %v871 = vmul.f32 %v801, 0.015625
  %v872 = vmul.f32 %v803, 0.015625
  %v873 = vmul.f32 %v805, 0.015625
  %v874 = vmul.f32 %v807, 0.015625
  %v875 = vmul.f32 %v809, 0.015625
  %v876 = vmul.f32 %v811, 0.015625
  %v877 = vmul.f32 %v813, 0.015625
  %v878 = vmul.f32 %v430, %v430
  %v879 = vmul.f32 %v433, %v433
  %v880 = vmul.f32 %v438, %v438
  %v881 = vmul.f32 %v441, %v441
  %v882 = vmul.f32 %v446, %v446
  %v883 = vmul.f32 %v449, %v449
  %v884 = vmul.f32 %v454, %v454
  %v885 = vmul.f32 %v457, %v457
  %v886 = vmul.f32 %v462, %v462
  %v887 = vmul.f32 %v465, %v465
  %v888 = vmul.f32 %v470, %v470
  %v889 = vmul.f32 %v473, %v473
  %v890 = vmul.f32 %v478, %v478
  %v891 = vmul.f32 %v481, %v481
  %v892 = vmul.f32 %v486, %v486
  %v893 = vmul.f32 %v489, %v489
  %v894 = vmul.f32 %v494, %v494
  %v895 = vmul.f32 %v497, %v497
  %v896 = vmul.f32 %v502, %v502
  %v897 = vmul.f32 %v505, %v505
  %v898 = vmul.f32 %v510, %v510
  %v899 = vmul.f32 %v513, %v513
  %v900 = vmul.f32 %v518, %v518
  %v901 = vmul.f32 %v521, %v521
  %v902 = vmul.f32 %v526, %v526
  %v903 = vmul.f32 %v529, %v529
  %v904 = vmul.f32 %v534, %v534
  %v905 = vmul.f32 %v537, %v537
  %v906 = vmul.f32 %v542, %v542
  %v907 = vmul.f32 %v545, %v545
  %v908 = vmul.f32 %v550, %v550
  %v909 = vmul.f32 %v553, %v553
  %v910 = vmul.f32 %v558, %v558
  %v911 = vmul.f32 %v561, %v561
  %v912 = vmul.f32 %v566, %v566
  %v913 = vmul.f32 %v569, %v569
  %v914 = vmul.f32 %v574, %v574
  %v915 = vmul.f32 %v577, %v577
  %v916 = vmul.f32 %v582, %v582
  %v917 = vmul.f32 %v585, %v585
  %v918 = vmul.f32 %v590, %v590
  %v919 = vmul.f32 %v593, %v593
  %v920 = vmul.f32 %v598, %v598
  %v921 = vmul.f32 %v601, %v601
  %v922 = vmul.f32 %v606, %v606
  %v923 = vmul.f32 %v609, %v609
  %v924 = vmul.f32 %v614, %v614
  %v925 = vmul.f32 %v617, %v617
  %v926 = vmul.f32 %v622, %v622
  %v927 = vmul.f32 %v625, %v625
  %v928 = vmul.f32 %v630, %v630
  %v929 = vmul.f32 %v633, %v633
  %v930 = vmul.f32 %v638, %v638
  %v931 = vmul.f32 %v641, %v641
  %v932 = vmul.f32 %v646, %v646
  %v933 = vmul.f32 %v649, %v649
  %v934 = vmul.f32 %v654, %v654
  %v935 = vmul.f32 %v657, %v657
  %v936 = vmul.f32 %v662, %v662
  %v937 = vmul.f32 %v665, %v665
  %v938 = vmul.f32 %v670, %v670
  %v939 = vmul.f32 %v673, %v673
  %v940 = vmul.f32 %v678, %v678
  %v941 = vmul.f32 %v681, %v681
  %942 = vadd.xlane.f32.xlu0 %v878
  %v943 = vpop.xlane.xlu0 %942
  %944 = vadd.xlane.f32.xlu0 %v879
  %v945 = vpop.xlane.xlu0 %944
  %946 = vadd.xlane.f32.xlu0 %v880
  %v947 = vpop.xlane.xlu0 %946
  %948 = vadd.xlane.f32.xlu0 %v881
  %v949 = vpop.xlane.xlu0 %948
  %950 = vadd.xlane.f32.xlu0 %v882
  %v951 = vpop.xlane.xlu0 %950
  %952 = vadd.xlane.f32.xlu0 %v883
  %v953 = vpop.xlane.xlu0 %952
  %954 = vadd.xlane.f32.xlu0 %v884
  %v955 = vpop.xlane.xlu0 %954
  %956 = vadd.xlane.f32.xlu0 %v885
  %v957 = vpop.xlane.xlu0 %956
  %958 = vadd.xlane.f32.xlu0 %v886
  %v959 = vpop.xlane.xlu0 %958
  %960 = vadd.xlane.f32.xlu0 %v887
  %v961 = vpop.xlane.xlu0 %960
  %962 = vadd.xlane.f32.xlu0 %v888
  %v963 = vpop.xlane.xlu0 %962
  %964 = vadd.xlane.f32.xlu0 %v889
  %v965 = vpop.xlane.xlu0 %964
  %966 = vadd.xlane.f32.xlu0 %v890
  %v967 = vpop.xlane.xlu0 %966
  %968 = vadd.xlane.f32.xlu0 %v891
  %v969 = vpop.xlane.xlu0 %968
  %970 = vadd.xlane.f32.xlu0 %v892
  %v971 = vpop.xlane.xlu0 %970
  %972 = vadd.xlane.f32.xlu0 %v893
  %v973 = vpop.xlane.xlu0 %972
  %974 = vadd.xlane.f32.xlu0 %v894
  %v975 = vpop.xlane.xlu0 %974
  %976 = vadd.xlane.f32.xlu0 %v895
  %v977 = vpop.xlane.xlu0 %976
  %978 = vadd.xlane.f32.xlu0 %v896
  %v979 = vpop.xlane.xlu0 %978
  %980 = vadd.xlane.f32.xlu0 %v897
  %v981 = vpop.xlane.xlu0 %980
  %982 = vadd.xlane.f32.xlu0 %v898
  %v983 = vpop.xlane.xlu0 %982
  %984 = vadd.xlane.f32.xlu0 %v899
  %v985 = vpop.xlane.xlu0 %984
  %986 = vadd.xlane.f32.xlu0 %v900
  %v987 = vpop.xlane.xlu0 %986
  %988 = vadd.xlane.f32.xlu0 %v901
  %v989 = vpop.xlane.xlu0 %988
  %990 = vadd.xlane.f32.xlu0 %v902
  %v991 = vpop.xlane.xlu0 %990
  %992 = vadd.xlane.f32.xlu0 %v903
  %v993 = vpop.xlane.xlu0 %992
  %994 = vadd.xlane.f32.xlu0 %v904
  %v995 = vpop.xlane.xlu0 %994
  %996 = vadd.xlane.f32.xlu0 %v905
  %v997 = vpop.xlane.xlu0 %996
  %998 = vadd.xlane.f32.xlu0 %v906
  %v999 = vpop.xlane.xlu0 %998
  %1000 = vadd.xlane.f32.xlu0 %v907
  %v1001 = vpop.xlane.xlu0 %1000
  %1002 = vadd.xlane.f32.xlu0 %v908
  %v1003 = vpop.xlane.xlu0 %1002
  %1004 = vadd.xlane.f32.xlu0 %v909
  %v1005 = vpop.xlane.xlu0 %1004
  %1006 = vadd.xlane.f32.xlu0 %v910
  %v1007 = vpop.xlane.xlu0 %1006
  %1008 = vadd.xlane.f32.xlu0 %v911
  %v1009 = vpop.xlane.xlu0 %1008
  %1010 = vadd.xlane.f32.xlu0 %v912
  %v1011 = vpop.xlane.xlu0 %1010
  %1012 = vadd.xlane.f32.xlu0 %v913
  %v1013 = vpop.xlane.xlu0 %1012
  %1014 = vadd.xlane.f32.xlu0 %v914
  %v1015 = vpop.xlane.xlu0 %1014
  %1016 = vadd.xlane.f32.xlu0 %v915
  %v1017 = vpop.xlane.xlu0 %1016
  %1018 = vadd.xlane.f32.xlu0 %v916
  %v1019 = vpop.xlane.xlu0 %1018
  %1020 = vadd.xlane.f32.xlu0 %v917
  %v1021 = vpop.xlane.xlu0 %1020
  %1022 = vadd.xlane.f32.xlu0 %v918
  %v1023 = vpop.xlane.xlu0 %1022
  %1024 = vadd.xlane.f32.xlu0 %v919
  %v1025 = vpop.xlane.xlu0 %1024
  %1026 = vadd.xlane.f32.xlu0 %v920
  %v1027 = vpop.xlane.xlu0 %1026
  %1028 = vadd.xlane.f32.xlu0 %v921
  %v1029 = vpop.xlane.xlu0 %1028
  %1030 = vadd.xlane.f32.xlu0 %v922
  %v1031 = vpop.xlane.xlu0 %1030
  %1032 = vadd.xlane.f32.xlu0 %v923
  %v1033 = vpop.xlane.xlu0 %1032
  %1034 = vadd.xlane.f32.xlu0 %v924
  %v1035 = vpop.xlane.xlu0 %1034
  %1036 = vadd.xlane.f32.xlu0 %v925
  %v1037 = vpop.xlane.xlu0 %1036
  %1038 = vadd.xlane.f32.xlu0 %v926
  %v1039 = vpop.xlane.xlu0 %1038
  %1040 = vadd.xlane.f32.xlu0 %v927
  %v1041 = vpop.xlane.xlu0 %1040
  %1042 = vadd.xlane.f32.xlu0 %v928
  %v1043 = vpop.xlane.xlu0 %1042
  %1044 = vadd.xlane.f32.xlu0 %v929
  %v1045 = vpop.xlane.xlu0 %1044
  %1046 = vadd.xlane.f32.xlu0 %v930
  %v1047 = vpop.xlane.xlu0 %1046
  %1048 = vadd.xlane.f32.xlu0 %v931
  %v1049 = vpop.xlane.xlu0 %1048
  %1050 = vadd.xlane.f32.xlu0 %v932
  %v1051 = vpop.xlane.xlu0 %1050
  %1052 = vadd.xlane.f32.xlu0 %v933
  %v1053 = vpop.xlane.xlu0 %1052
  %1054 = vadd.xlane.f32.xlu0 %v934
  %v1055 = vpop.xlane.xlu0 %1054
  %1056 = vadd.xlane.f32.xlu0 %v935
  %v1057 = vpop.xlane.xlu0 %1056
  %1058 = vadd.xlane.f32.xlu0 %v936
  %v1059 = vpop.xlane.xlu0 %1058
  %1060 = vadd.xlane.f32.xlu0 %v937
  %v1061 = vpop.xlane.xlu0 %1060
  %1062 = vadd.xlane.f32.xlu0 %v938
  %v1063 = vpop.xlane.xlu0 %1062
  %1064 = vadd.xlane.f32.xlu0 %v939
  %v1065 = vpop.xlane.xlu0 %1064
  %1066 = vadd.xlane.f32.xlu0 %v940
  %v1067 = vpop.xlane.xlu0 %1066
  %1068 = vadd.xlane.f32.xlu0 %v941
  %v1069 = vpop.xlane.xlu0 %1068
  %v1070 = vmul.f32 %v943, 0.015625
  %v1071 = vmul.f32 %v945, 0.015625
  %v1072 = vmul.f32 %v947, 0.015625
  %v1073 = vmul.f32 %v949, 0.015625
  %v1074 = vmul.f32 %v951, 0.015625
  %v1075 = vmul.f32 %v953, 0.015625
  %v1076 = vmul.f32 %v955, 0.015625
  %v1077 = vmul.f32 %v957, 0.015625
  %v1078 = vmul.f32 %v959, 0.015625
  %v1079 = vmul.f32 %v961, 0.015625
  %v1080 = vmul.f32 %v963, 0.015625
  %v1081 = vmul.f32 %v965, 0.015625
  %v1082 = vmul.f32 %v967, 0.015625
  %v1083 = vmul.f32 %v969, 0.015625
  %v1084 = vmul.f32 %v971, 0.015625
  %v1085 = vmul.f32 %v973, 0.015625
  %v1086 = vmul.f32 %v975, 0.015625
  %v1087 = vmul.f32 %v977, 0.015625
  %v1088 = vmul.f32 %v979, 0.015625
  %v1089 = vmul.f32 %v981, 0.015625
  %v1090 = vmul.f32 %v983, 0.015625
  %v1091 = vmul.f32 %v985, 0.015625
  %v1092 = vmul.f32 %v987, 0.015625
  %v1093 = vmul.f32 %v989, 0.015625
  %v1094 = vmul.f32 %v991, 0.015625
  %v1095 = vmul.f32 %v993, 0.015625
  %v1096 = vmul.f32 %v995, 0.015625
  %v1097 = vmul.f32 %v997, 0.015625
  %v1098 = vmul.f32 %v999, 0.015625
  %v1099 = vmul.f32 %v1001, 0.015625
  %v1100 = vmul.f32 %v1003, 0.015625
  %v1101 = vmul.f32 %v1005, 0.015625
  %v1102 = vmul.f32 %v1007, 0.015625
  %v1103 = vmul.f32 %v1009, 0.015625
  %v1104 = vmul.f32 %v1011, 0.015625
  %v1105 = vmul.f32 %v1013, 0.015625
  %v1106 = vmul.f32 %v1015, 0.015625
  %v1107 = vmul.f32 %v1017, 0.015625
  %v1108 = vmul.f32 %v1019, 0.015625
  %v1109 = vmul.f32 %v1021, 0.015625
  %v1110 = vmul.f32 %v1023, 0.015625
  %v1111 = vmul.f32 %v1025, 0.015625
  %v1112 = vmul.f32 %v1027, 0.015625
  %v1113 = vmul.f32 %v1029, 0.015625
  %v1114 = vmul.f32 %v1031, 0.015625
  %v1115 = vmul.f32 %v1033, 0.015625
  %v1116 = vmul.f32 %v1035, 0.015625
  %v1117 = vmul.f32 %v1037, 0.015625
  %v1118 = vmul.f32 %v1039, 0.015625
  %v1119 = vmul.f32 %v1041, 0.015625
  %v1120 = vmul.f32 %v1043, 0.015625
  %v1121 = vmul.f32 %v1045, 0.015625
  %v1122 = vmul.f32 %v1047, 0.015625
  %v1123 = vmul.f32 %v1049, 0.015625
  %v1124 = vmul.f32 %v1051, 0.015625
  %v1125 = vmul.f32 %v1053, 0.015625
  %v1126 = vmul.f32 %v1055, 0.015625
  %v1127 = vmul.f32 %v1057, 0.015625
  %v1128 = vmul.f32 %v1059, 0.015625
  %v1129 = vmul.f32 %v1061, 0.015625
  %v1130 = vmul.f32 %v1063, 0.015625
  %v1131 = vmul.f32 %v1065, 0.015625
  %v1132 = vmul.f32 %v1067, 0.015625
  %v1133 = vmul.f32 %v1069, 0.015625
  %v1134 = vmul.f32 %v814, %v814
  %v1135 = vmul.f32 %v815, %v815
  %v1136 = vmul.f32 %v816, %v816
  %v1137 = vmul.f32 %v817, %v817
  %v1138 = vmul.f32 %v818, %v818
  %v1139 = vmul.f32 %v819, %v819
  %v1140 = vmul.f32 %v820, %v820
  %v1141 = vmul.f32 %v821, %v821
  %v1142 = vmul.f32 %v822, %v822
  %v1143 = vmul.f32 %v823, %v823
  %v1144 = vmul.f32 %v824, %v824
  %v1145 = vmul.f32 %v825, %v825
  %v1146 = vmul.f32 %v826, %v826
  %v1147 = vmul.f32 %v827, %v827
  %v1148 = vmul.f32 %v828, %v828
  %v1149 = vmul.f32 %v829, %v829
  %v1150 = vmul.f32 %v830, %v830
  %v1151 = vmul.f32 %v831, %v831
  %v1152 = vmul.f32 %v832, %v832
  %v1153 = vmul.f32 %v833, %v833
  %v1154 = vmul.f32 %v834, %v834
  %v1155 = vmul.f32 %v835, %v835
  %v1156 = vmul.f32 %v836, %v836
  %v1157 = vmul.f32 %v837, %v837
  %v1158 = vmul.f32 %v838, %v838
  %v1159 = vmul.f32 %v839, %v839
  %v1160 = vmul.f32 %v840, %v840
  %v1161 = vmul.f32 %v841, %v841
  %v1162 = vmul.f32 %v842, %v842
  %v1163 = vmul.f32 %v843, %v843
  %v1164 = vmul.f32 %v844, %v844
  %v1165 = vmul.f32 %v845, %v845
  %v1166 = vmul.f32 %v846, %v846
  %v1167 = vmul.f32 %v847, %v847
  %v1168 = vmul.f32 %v848, %v848
  %v1169 = vmul.f32 %v849, %v849
  %v1170 = vmul.f32 %v850, %v850
  %v1171 = vmul.f32 %v851, %v851
  %v1172 = vmul.f32 %v852, %v852
  %v1173 = vmul.f32 %v853, %v853
  %v1174 = vmul.f32 %v854, %v854
  %v1175 = vmul.f32 %v855, %v855
  %v1176 = vmul.f32 %v856, %v856
  %v1177 = vmul.f32 %v857, %v857
  %v1178 = vmul.f32 %v858, %v858
  %v1179 = vmul.f32 %v859, %v859
  %v1180 = vmul.f32 %v860, %v860
  %v1181 = vmul.f32 %v861, %v861
  %v1182 = vmul.f32 %v862, %v862
  %v1183 = vmul.f32 %v863, %v863
  %v1184 = vmul.f32 %v864, %v864
  %v1185 = vmul.f32 %v865, %v865
  %v1186 = vmul.f32 %v866, %v866
  %v1187 = vmul.f32 %v867, %v867
  %v1188 = vmul.f32 %v868, %v868
  %v1189 = vmul.f32 %v869, %v869
  %v1190 = vmul.f32 %v870, %v870
  %v1191 = vmul.f32 %v871, %v871
  %v1192 = vmul.f32 %v872, %v872
  %v1193 = vmul.f32 %v873, %v873
  %v1194 = vmul.f32 %v874, %v874
  %v1195 = vmul.f32 %v875, %v875
  %v1196 = vmul.f32 %v876, %v876
  %v1197 = vmul.f32 %v877, %v877
  %v1198 = vsub.f32 %v1070, %v1134
  %v1199 = vsub.f32 %v1071, %v1135
  %v1200 = vsub.f32 %v1072, %v1136
  %v1201 = vsub.f32 %v1073, %v1137
  %v1202 = vsub.f32 %v1074, %v1138
  %v1203 = vsub.f32 %v1075, %v1139
  %v1204 = vsub.f32 %v1076, %v1140
  %v1205 = vsub.f32 %v1077, %v1141
  %v1206 = vsub.f32 %v1078, %v1142
  %v1207 = vsub.f32 %v1079, %v1143
  %v1208 = vsub.f32 %v1080, %v1144
  %v1209 = vsub.f32 %v1081, %v1145
  %v1210 = vsub.f32 %v1082, %v1146
  %v1211 = vsub.f32 %v1083, %v1147
  %v1212 = vsub.f32 %v1084, %v1148
  %v1213 = vsub.f32 %v1085, %v1149
  %v1214 = vsub.f32 %v1086, %v1150
  %v1215 = vsub.f32 %v1087, %v1151
  %v1216 = vsub.f32 %v1088, %v1152
  %v1217 = vsub.f32 %v1089, %v1153
  %v1218 = vsub.f32 %v1090, %v1154
  %v1219 = vsub.f32 %v1091, %v1155
  %v1220 = vsub.f32 %v1092, %v1156
  %v1221 = vsub.f32 %v1093, %v1157
  %v1222 = vsub.f32 %v1094, %v1158
  %v1223 = vsub.f32 %v1095, %v1159
  %v1224 = vsub.f32 %v1096, %v1160
  %v1225 = vsub.f32 %v1097, %v1161
  %v1226 = vsub.f32 %v1098, %v1162
  %v1227 = vsub.f32 %v1099, %v1163
  %v1228 = vsub.f32 %v1100, %v1164
  %v1229 = vsub.f32 %v1101, %v1165
  %v1230 = vsub.f32 %v1102, %v1166
  %v1231 = vsub.f32 %v1103, %v1167
  %v1232 = vsub.f32 %v1104, %v1168
  %v1233 = vsub.f32 %v1105, %v1169
  %v1234 = vsub.f32 %v1106, %v1170
  %v1235 = vsub.f32 %v1107, %v1171
  %v1236 = vsub.f32 %v1108, %v1172
  %v1237 = vsub.f32 %v1109, %v1173
  %v1238 = vsub.f32 %v1110, %v1174
  %v1239 = vsub.f32 %v1111, %v1175
  %v1240 = vsub.f32 %v1112, %v1176
  %v1241 = vsub.f32 %v1113, %v1177
  %v1242 = vsub.f32 %v1114, %v1178
  %v1243 = vsub.f32 %v1115, %v1179
  %v1244 = vsub.f32 %v1116, %v1180
  %v1245 = vsub.f32 %v1117, %v1181
  %v1246 = vsub.f32 %v1118, %v1182
  %v1247 = vsub.f32 %v1119, %v1183
  %v1248 = vsub.f32 %v1120, %v1184
  %v1249 = vsub.f32 %v1121, %v1185
  %v1250 = vsub.f32 %v1122, %v1186
  %v1251 = vsub.f32 %v1123, %v1187
  %v1252 = vsub.f32 %v1124, %v1188
  %v1253 = vsub.f32 %v1125, %v1189
  %v1254 = vsub.f32 %v1126, %v1190
  %v1255 = vsub.f32 %v1127, %v1191
  %v1256 = vsub.f32 %v1128, %v1192
  %v1257 = vsub.f32 %v1129, %v1193
  %v1258 = vsub.f32 %v1130, %v1194
  %v1259 = vsub.f32 %v1131, %v1195
  %v1260 = vsub.f32 %v1132, %v1196
  %v1261 = vsub.f32 %v1133, %v1197
  %v1262 = vmax.f32 %v1198, 0.0
  %v1263 = vmax.f32 %v1199, 0.0
  %v1264 = vmax.f32 %v1200, 0.0
  %v1265 = vmax.f32 %v1201, 0.0
  %v1266 = vmax.f32 %v1202, 0.0
  %v1267 = vmax.f32 %v1203, 0.0
  %v1268 = vmax.f32 %v1204, 0.0
  %v1269 = vmax.f32 %v1205, 0.0
  %v1270 = vmax.f32 %v1206, 0.0
  %v1271 = vmax.f32 %v1207, 0.0
  %v1272 = vmax.f32 %v1208, 0.0
  %v1273 = vmax.f32 %v1209, 0.0
  %v1274 = vmax.f32 %v1210, 0.0
  %v1275 = vmax.f32 %v1211, 0.0
  %v1276 = vmax.f32 %v1212, 0.0
  %v1277 = vmax.f32 %v1213, 0.0
  %v1278 = vmax.f32 %v1214, 0.0
  %v1279 = vmax.f32 %v1215, 0.0
  %v1280 = vmax.f32 %v1216, 0.0
  %v1281 = vmax.f32 %v1217, 0.0
  %v1282 = vmax.f32 %v1218, 0.0
  %v1283 = vmax.f32 %v1219, 0.0
  %v1284 = vmax.f32 %v1220, 0.0
  %v1285 = vmax.f32 %v1221, 0.0
  %v1286 = vmax.f32 %v1222, 0.0
  %v1287 = vmax.f32 %v1223, 0.0
  %v1288 = vmax.f32 %v1224, 0.0
  %v1289 = vmax.f32 %v1225, 0.0
  %v1290 = vmax.f32 %v1226, 0.0
  %v1291 = vmax.f32 %v1227, 0.0
  %v1292 = vmax.f32 %v1228, 0.0
  %v1293 = vmax.f32 %v1229, 0.0
  %v1294 = vmax.f32 %v1230, 0.0
  %v1295 = vmax.f32 %v1231, 0.0
  %v1296 = vmax.f32 %v1232, 0.0
  %v1297 = vmax.f32 %v1233, 0.0
  %v1298 = vmax.f32 %v1234, 0.0
  %v1299 = vmax.f32 %v1235, 0.0
  %v1300 = vmax.f32 %v1236, 0.0
  %v1301 = vmax.f32 %v1237, 0.0
  %v1302 = vmax.f32 %v1238, 0.0
  %v1303 = vmax.f32 %v1239, 0.0
  %v1304 = vmax.f32 %v1240, 0.0
  %v1305 = vmax.f32 %v1241, 0.0
  %v1306 = vmax.f32 %v1242, 0.0
  %v1307 = vmax.f32 %v1243, 0.0
  %v1308 = vmax.f32 %v1244, 0.0
  %v1309 = vmax.f32 %v1245, 0.0
  %v1310 = vmax.f32 %v1246, 0.0
  %v1311 = vmax.f32 %v1247, 0.0
  %v1312 = vmax.f32 %v1248, 0.0
  %v1313 = vmax.f32 %v1249, 0.0
  %v1314 = vmax.f32 %v1250, 0.0
  %v1315 = vmax.f32 %v1251, 0.0
  %v1316 = vmax.f32 %v1252, 0.0
  %v1317 = vmax.f32 %v1253, 0.0
  %v1318 = vmax.f32 %v1254, 0.0
  %v1319 = vmax.f32 %v1255, 0.0
  %v1320 = vmax.f32 %v1256, 0.0
  %v1321 = vmax.f32 %v1257, 0.0
  %v1322 = vmax.f32 %v1258, 0.0
  %v1323 = vmax.f32 %v1259, 0.0
  %v1324 = vmax.f32 %v1260, 0.0
  %v1325 = vmax.f32 %v1261, 0.0
  %v1326 = vsub.f32 %v430, %v814
  %v1327 = vsub.f32 %v433, %v815
  %v1328 = vsub.f32 %v438, %v816
  %v1329 = vsub.f32 %v441, %v817
  %v1330 = vsub.f32 %v446, %v818
  %v1331 = vsub.f32 %v449, %v819
  %v1332 = vsub.f32 %v454, %v820
  %v1333 = vsub.f32 %v457, %v821
  %v1334 = vsub.f32 %v462, %v822
  %v1335 = vsub.f32 %v465, %v823
  %v1336 = vsub.f32 %v470, %v824
  %v1337 = vsub.f32 %v473, %v825
  %v1338 = vsub.f32 %v478, %v826
  %v1339 = vsub.f32 %v481, %v827
  %v1340 = vsub.f32 %v486, %v828
  %v1341 = vsub.f32 %v489, %v829
  %v1342 = vsub.f32 %v494, %v830
  %v1343 = vsub.f32 %v497, %v831
  %v1344 = vsub.f32 %v502, %v832
  %v1345 = vsub.f32 %v505, %v833
  %v1346 = vsub.f32 %v510, %v834
  %v1347 = vsub.f32 %v513, %v835
  %v1348 = vsub.f32 %v518, %v836
  %v1349 = vsub.f32 %v521, %v837
  %v1350 = vsub.f32 %v526, %v838
  %v1351 = vsub.f32 %v529, %v839
  %v1352 = vsub.f32 %v534, %v840
  %v1353 = vsub.f32 %v537, %v841
  %v1354 = vsub.f32 %v542, %v842
  %v1355 = vsub.f32 %v545, %v843
  %v1356 = vsub.f32 %v550, %v844
  %v1357 = vsub.f32 %v553, %v845
  %v1358 = vsub.f32 %v558, %v846
  %v1359 = vsub.f32 %v561, %v847
  %v1360 = vsub.f32 %v566, %v848
  %v1361 = vsub.f32 %v569, %v849
  %v1362 = vsub.f32 %v574, %v850
  %v1363 = vsub.f32 %v577, %v851
  %v1364 = vsub.f32 %v582, %v852
  %v1365 = vsub.f32 %v585, %v853
  %v1366 = vsub.f32 %v590, %v854
  %v1367 = vsub.f32 %v593, %v855
  %v1368 = vsub.f32 %v598, %v856
  %v1369 = vsub.f32 %v601, %v857
  %v1370 = vsub.f32 %v606, %v858
  %v1371 = vsub.f32 %v609, %v859
  %v1372 = vsub.f32 %v614, %v860
  %v1373 = vsub.f32 %v617, %v861
  %v1374 = vsub.f32 %v622, %v862
  %v1375 = vsub.f32 %v625, %v863
  %v1376 = vsub.f32 %v630, %v864
  %v1377 = vsub.f32 %v633, %v865
  %v1378 = vsub.f32 %v638, %v866
  %v1379 = vsub.f32 %v641, %v867
  %v1380 = vsub.f32 %v646, %v868
  %v1381 = vsub.f32 %v649, %v869
  %v1382 = vsub.f32 %v654, %v870
  %v1383 = vsub.f32 %v657, %v871
  %v1384 = vsub.f32 %v662, %v872
  %v1385 = vsub.f32 %v665, %v873
  %v1386 = vsub.f32 %v670, %v874
  %v1387 = vsub.f32 %v673, %v875
  %v1388 = vsub.f32 %v678, %v876
  %v1389 = vsub.f32 %v681, %v877
  %v1390 = vadd.f32 %v1262, 1e-05
  %v1391 = vadd.f32 %v1263, 1e-05
  %v1392 = vadd.f32 %v1264, 1e-05
  %v1393 = vadd.f32 %v1265, 1e-05
  %v1394 = vadd.f32 %v1266, 1e-05
  %v1395 = vadd.f32 %v1267, 1e-05
  %v1396 = vadd.f32 %v1268, 1e-05
  %v1397 = vadd.f32 %v1269, 1e-05
  %v1398 = vadd.f32 %v1270, 1e-05
  %v1399 = vadd.f32 %v1271, 1e-05
  %v1400 = vadd.f32 %v1272, 1e-05
  %v1401 = vadd.f32 %v1273, 1e-05
  %v1402 = vadd.f32 %v1274, 1e-05
  %v1403 = vadd.f32 %v1275, 1e-05
  %v1404 = vadd.f32 %v1276, 1e-05
  %v1405 = vadd.f32 %v1277, 1e-05
  %v1406 = vadd.f32 %v1278, 1e-05
  %v1407 = vadd.f32 %v1279, 1e-05
  %v1408 = vadd.f32 %v1280, 1e-05
  %v1409 = vadd.f32 %v1281, 1e-05
  %v1410 = vadd.f32 %v1282, 1e-05
  %v1411 = vadd.f32 %v1283, 1e-05
  %v1412 = vadd.f32 %v1284, 1e-05
  %v1413 = vadd.f32 %v1285, 1e-05
  %v1414 = vadd.f32 %v1286, 1e-05
  %v1415 = vadd.f32 %v1287, 1e-05
  %v1416 = vadd.f32 %v1288, 1e-05
  %v1417 = vadd.f32 %v1289, 1e-05
  %v1418 = vadd.f32 %v1290, 1e-05
  %v1419 = vadd.f32 %v1291, 1e-05
  %v1420 = vadd.f32 %v1292, 1e-05
  %v1421 = vadd.f32 %v1293, 1e-05
  %v1422 = vadd.f32 %v1294, 1e-05
  %v1423 = vadd.f32 %v1295, 1e-05
  %v1424 = vadd.f32 %v1296, 1e-05
  %v1425 = vadd.f32 %v1297, 1e-05
  %v1426 = vadd.f32 %v1298, 1e-05
  %v1427 = vadd.f32 %v1299, 1e-05
  %v1428 = vadd.f32 %v1300, 1e-05
  %v1429 = vadd.f32 %v1301, 1e-05
  %v1430 = vadd.f32 %v1302, 1e-05
  %v1431 = vadd.f32 %v1303, 1e-05
  %v1432 = vadd.f32 %v1304, 1e-05
  %v1433 = vadd.f32 %v1305, 1e-05
  %v1434 = vadd.f32 %v1306, 1e-05
  %v1435 = vadd.f32 %v1307, 1e-05
  %v1436 = vadd.f32 %v1308, 1e-05
  %v1437 = vadd.f32 %v1309, 1e-05
  %v1438 = vadd.f32 %v1310, 1e-05
  %v1439 = vadd.f32 %v1311, 1e-05
  %v1440 = vadd.f32 %v1312, 1e-05
  %v1441 = vadd.f32 %v1313, 1e-05
  %v1442 = vadd.f32 %v1314, 1e-05
  %v1443 = vadd.f32 %v1315, 1e-05
  %v1444 = vadd.f32 %v1316, 1e-05
  %v1445 = vadd.f32 %v1317, 1e-05
  %v1446 = vadd.f32 %v1318, 1e-05
  %v1447 = vadd.f32 %v1319, 1e-05
  %v1448 = vadd.f32 %v1320, 1e-05
  %v1449 = vadd.f32 %v1321, 1e-05
  %v1450 = vadd.f32 %v1322, 1e-05
  %v1451 = vadd.f32 %v1323, 1e-05
  %v1452 = vadd.f32 %v1324, 1e-05
  %v1453 = vadd.f32 %v1325, 1e-05
  %v1454 = vrsqrt.pop %v1390
  %v1455 = vrsqrt.pop %v1391
  %v1456 = vrsqrt.pop %v1392
  %v1457 = vrsqrt.pop %v1393
  %v1458 = vrsqrt.pop %v1394
  %v1459 = vrsqrt.pop %v1395
  %v1460 = vrsqrt.pop %v1396
  %v1461 = vrsqrt.pop %v1397
  %v1462 = vrsqrt.pop %v1398
  %v1463 = vrsqrt.pop %v1399
  %v1464 = vrsqrt.pop %v1400
  %v1465 = vrsqrt.pop %v1401
  %v1466 = vrsqrt.pop %v1402
  %v1467 = vrsqrt.pop %v1403
  %v1468 = vrsqrt.pop %v1404
  %v1469 = vrsqrt.pop %v1405
  %v1470 = vrsqrt.pop %v1406
  %v1471 = vrsqrt.pop %v1407
  %v1472 = vrsqrt.pop %v1408
  %v1473 = vrsqrt.pop %v1409
  %v1474 = vrsqrt.pop %v1410
  %v1475 = vrsqrt.pop %v1411
  %v1476 = vrsqrt.pop %v1412
  %v1477 = vrsqrt.pop %v1413
  %v1478 = vrsqrt.pop %v1414
  %v1479 = vrsqrt.pop %v1415
  %v1480 = vrsqrt.pop %v1416
  %v1481 = vrsqrt.pop %v1417
  %v1482 = vrsqrt.pop %v1418
  %v1483 = vrsqrt.pop %v1419
  %v1484 = vrsqrt.pop %v1420
  %v1485 = vrsqrt.pop %v1421
  %v1486 = vrsqrt.pop %v1422
  %v1487 = vrsqrt.pop %v1423
  %v1488 = vrsqrt.pop %v1424
  %v1489 = vrsqrt.pop %v1425
  %v1490 = vrsqrt.pop %v1426
  %v1491 = vrsqrt.pop %v1427
  %v1492 = vrsqrt.pop %v1428
  %v1493 = vrsqrt.pop %v1429
  %v1494 = vrsqrt.pop %v1430
  %v1495 = vrsqrt.pop %v1431
  %v1496 = vrsqrt.pop %v1432
  %v1497 = vrsqrt.pop %v1433
  %v1498 = vrsqrt.pop %v1434
  %v1499 = vrsqrt.pop %v1435
  %v1500 = vrsqrt.pop %v1436
  %v1501 = vrsqrt.pop %v1437
  %v1502 = vrsqrt.pop %v1438
  %v1503 = vrsqrt.pop %v1439
  %v1504 = vrsqrt.pop %v1440
  %v1505 = vrsqrt.pop %v1441
  %v1506 = vrsqrt.pop %v1442
  %v1507 = vrsqrt.pop %v1443
  %v1508 = vrsqrt.pop %v1444
  %v1509 = vrsqrt.pop %v1445
  %v1510 = vrsqrt.pop %v1446
  %v1511 = vrsqrt.pop %v1447
  %v1512 = vrsqrt.pop %v1448
  %v1513 = vrsqrt.pop %v1449
  %v1514 = vrsqrt.pop %v1450
  %v1515 = vrsqrt.pop %v1451
  %v1516 = vrsqrt.pop %v1452
  %v1517 = vrsqrt.pop %v1453
  %v1518 = vmul.f32 %v1326, %v1454
  %v1519 = vmul.f32 %v1327, %v1455
  %v1520 = vmul.f32 %v1328, %v1456
  %v1521 = vmul.f32 %v1329, %v1457
  %v1522 = vmul.f32 %v1330, %v1458
  %v1523 = vmul.f32 %v1331, %v1459
  %v1524 = vmul.f32 %v1332, %v1460
  %v1525 = vmul.f32 %v1333, %v1461
  %v1526 = vmul.f32 %v1334, %v1462
  %v1527 = vmul.f32 %v1335, %v1463
  %v1528 = vmul.f32 %v1336, %v1464
  %v1529 = vmul.f32 %v1337, %v1465
  %v1530 = vmul.f32 %v1338, %v1466
  %v1531 = vmul.f32 %v1339, %v1467
  %v1532 = vmul.f32 %v1340, %v1468
  %v1533 = vmul.f32 %v1341, %v1469
  %v1534 = vmul.f32 %v1342, %v1470
  %v1535 = vmul.f32 %v1343, %v1471
  %v1536 = vmul.f32 %v1344, %v1472
  %v1537 = vmul.f32 %v1345, %v1473
  %v1538 = vmul.f32 %v1346, %v1474
  %v1539 = vmul.f32 %v1347, %v1475
  %v1540 = vmul.f32 %v1348, %v1476
  %v1541 = vmul.f32 %v1349, %v1477
  %v1542 = vmul.f32 %v1350, %v1478
  %v1543 = vmul.f32 %v1351, %v1479
  %v1544 = vmul.f32 %v1352, %v1480
  %v1545 = vmul.f32 %v1353, %v1481
  %v1546 = vmul.f32 %v1354, %v1482
  %v1547 = vmul.f32 %v1355, %v1483
  %v1548 = vmul.f32 %v1356, %v1484
  %v1549 = vmul.f32 %v1357, %v1485
  %v1550 = vmul.f32 %v1358, %v1486
  %v1551 = vmul.f32 %v1359, %v1487
  %v1552 = vmul.f32 %v1360, %v1488
  %v1553 = vmul.f32 %v1361, %v1489
  %v1554 = vmul.f32 %v1362, %v1490
  %v1555 = vmul.f32 %v1363, %v1491
  %v1556 = vmul.f32 %v1364, %v1492
  %v1557 = vmul.f32 %v1365, %v1493
  %v1558 = vmul.f32 %v1366, %v1494
  %v1559 = vmul.f32 %v1367, %v1495
  %v1560 = vmul.f32 %v1368, %v1496
  %v1561 = vmul.f32 %v1369, %v1497
  %v1562 = vmul.f32 %v1370, %v1498
  %v1563 = vmul.f32 %v1371, %v1499
  %v1564 = vmul.f32 %v1372, %v1500
  %v1565 = vmul.f32 %v1373, %v1501
  %v1566 = vmul.f32 %v1374, %v1502
  %v1567 = vmul.f32 %v1375, %v1503
  %v1568 = vmul.f32 %v1376, %v1504
  %v1569 = vmul.f32 %v1377, %v1505
  %v1570 = vmul.f32 %v1378, %v1506
  %v1571 = vmul.f32 %v1379, %v1507
  %v1572 = vmul.f32 %v1380, %v1508
  %v1573 = vmul.f32 %v1381, %v1509
  %v1574 = vmul.f32 %v1382, %v1510
  %v1575 = vmul.f32 %v1383, %v1511
  %v1576 = vmul.f32 %v1384, %v1512
  %v1577 = vmul.f32 %v1385, %v1513
  %v1578 = vmul.f32 %v1386, %v1514
  %v1579 = vmul.f32 %v1387, %v1515
  %v1580 = vmul.f32 %v1388, %v1516
  %v1581 = vmul.f32 %v1389, %v1517
  %v1583 = vlaneseq
  %v1584 = vshrl.u32 %v1583, 7
  %v1585 = vsub.s32 0, %v1584
  %v1586 = vrot.slane %v684, %v1585
  %v1588 = vmul.f32 %v1518, %v1586
  %v1589 = vmul.f32 %v1519, %v1586
  %v1590 = vmul.f32 %v1520, %v1586
  %v1591 = vmul.f32 %v1521, %v1586
  %v1592 = vmul.f32 %v1522, %v1586
  %v1593 = vmul.f32 %v1523, %v1586
  %v1594 = vmul.f32 %v1524, %v1586
  %v1595 = vmul.f32 %v1525, %v1586
  %v1596 = vmul.f32 %v1526, %v1586
  %v1597 = vmul.f32 %v1527, %v1586
  %v1598 = vmul.f32 %v1528, %v1586
  %v1599 = vmul.f32 %v1529, %v1586
  %v1600 = vmul.f32 %v1530, %v1586
  %v1601 = vmul.f32 %v1531, %v1586
  %v1602 = vmul.f32 %v1532, %v1586
  %v1603 = vmul.f32 %v1533, %v1586
  %v1604 = vmul.f32 %v1534, %v1586
  %v1605 = vmul.f32 %v1535, %v1586
  %v1606 = vmul.f32 %v1536, %v1586
  %v1607 = vmul.f32 %v1537, %v1586
  %v1608 = vmul.f32 %v1538, %v1586
  %v1609 = vmul.f32 %v1539, %v1586
  %v1610 = vmul.f32 %v1540, %v1586
  %v1611 = vmul.f32 %v1541, %v1586
  %v1612 = vmul.f32 %v1542, %v1586
  %v1613 = vmul.f32 %v1543, %v1586
  %v1614 = vmul.f32 %v1544, %v1586
  %v1615 = vmul.f32 %v1545, %v1586
  %v1616 = vmul.f32 %v1546, %v1586
  %v1617 = vmul.f32 %v1547, %v1586
  %v1618 = vmul.f32 %v1548, %v1586
  %v1619 = vmul.f32 %v1549, %v1586
  %v1620 = vmul.f32 %v1550, %v1586
  %v1621 = vmul.f32 %v1551, %v1586
  %v1622 = vmul.f32 %v1552, %v1586
  %v1623 = vmul.f32 %v1553, %v1586
  %v1624 = vmul.f32 %v1554, %v1586
  %v1625 = vmul.f32 %v1555, %v1586
  %v1626 = vmul.f32 %v1556, %v1586
  %v1627 = vmul.f32 %v1557, %v1586
  %v1628 = vmul.f32 %v1558, %v1586
  %v1629 = vmul.f32 %v1559, %v1586
  %v1630 = vmul.f32 %v1560, %v1586
  %v1631 = vmul.f32 %v1561, %v1586
  %v1632 = vmul.f32 %v1562, %v1586
  %v1633 = vmul.f32 %v1563, %v1586
  %v1634 = vmul.f32 %v1564, %v1586
  %v1635 = vmul.f32 %v1565, %v1586
  %v1636 = vmul.f32 %v1566, %v1586
  %v1637 = vmul.f32 %v1567, %v1586
  %v1638 = vmul.f32 %v1568, %v1586
  %v1639 = vmul.f32 %v1569, %v1586
  %v1640 = vmul.f32 %v1570, %v1586
  %v1641 = vmul.f32 %v1571, %v1586
  %v1642 = vmul.f32 %v1572, %v1586
  %v1643 = vmul.f32 %v1573, %v1586
  %v1644 = vmul.f32 %v1574, %v1586
  %v1645 = vmul.f32 %v1575, %v1586
  %v1646 = vmul.f32 %v1576, %v1586
  %v1647 = vmul.f32 %v1577, %v1586
  %v1648 = vmul.f32 %v1578, %v1586
  %v1649 = vmul.f32 %v1579, %v1586
  %v1650 = vmul.f32 %v1580, %v1586
  %v1651 = vmul.f32 %v1581, %v1586
  %v1653 = vlaneseq
  %v1654 = vshrl.u32 %v1653, 7
  %v1655 = vsub.s32 0, %v1654
  %v1656 = vrot.slane %v685, %v1655
  %v1658 = vadd.f32 %v1588, %v1656
  %v1659 = vadd.f32 %v1589, %v1656
  %v1660 = vadd.f32 %v1590, %v1656
  %v1661 = vadd.f32 %v1591, %v1656
  %v1662 = vadd.f32 %v1592, %v1656
  %v1663 = vadd.f32 %v1593, %v1656
  %v1664 = vadd.f32 %v1594, %v1656
  %v1665 = vadd.f32 %v1595, %v1656
  %v1666 = vadd.f32 %v1596, %v1656
  %v1667 = vadd.f32 %v1597, %v1656
  %v1668 = vadd.f32 %v1598, %v1656
  %v1669 = vadd.f32 %v1599, %v1656
  %v1670 = vadd.f32 %v1600, %v1656
  %v1671 = vadd.f32 %v1601, %v1656
  %v1672 = vadd.f32 %v1602, %v1656
  %v1673 = vadd.f32 %v1603, %v1656
  %v1674 = vadd.f32 %v1604, %v1656
  %v1675 = vadd.f32 %v1605, %v1656
  %v1676 = vadd.f32 %v1606, %v1656
  %v1677 = vadd.f32 %v1607, %v1656
  %v1678 = vadd.f32 %v1608, %v1656
  %v1679 = vadd.f32 %v1609, %v1656
  %v1680 = vadd.f32 %v1610, %v1656
  %v1681 = vadd.f32 %v1611, %v1656
  %v1682 = vadd.f32 %v1612, %v1656
  %v1683 = vadd.f32 %v1613, %v1656
  %v1684 = vadd.f32 %v1614, %v1656
  %v1685 = vadd.f32 %v1615, %v1656
  %v1686 = vadd.f32 %v1616, %v1656
  %v1687 = vadd.f32 %v1617, %v1656
  %v1688 = vadd.f32 %v1618, %v1656
  %v1689 = vadd.f32 %v1619, %v1656
  %v1690 = vadd.f32 %v1620, %v1656
  %v1691 = vadd.f32 %v1621, %v1656
  %v1692 = vadd.f32 %v1622, %v1656
  %v1693 = vadd.f32 %v1623, %v1656
  %v1694 = vadd.f32 %v1624, %v1656
  %v1695 = vadd.f32 %v1625, %v1656
  %v1696 = vadd.f32 %v1626, %v1656
  %v1697 = vadd.f32 %v1627, %v1656
  %v1698 = vadd.f32 %v1628, %v1656
  %v1699 = vadd.f32 %v1629, %v1656
  %v1700 = vadd.f32 %v1630, %v1656
  %v1701 = vadd.f32 %v1631, %v1656
  %v1702 = vadd.f32 %v1632, %v1656
  %v1703 = vadd.f32 %v1633, %v1656
  %v1704 = vadd.f32 %v1634, %v1656
  %v1705 = vadd.f32 %v1635, %v1656
  %v1706 = vadd.f32 %v1636, %v1656
  %v1707 = vadd.f32 %v1637, %v1656
  %v1708 = vadd.f32 %v1638, %v1656
  %v1709 = vadd.f32 %v1639, %v1656
  %v1710 = vadd.f32 %v1640, %v1656
  %v1711 = vadd.f32 %v1641, %v1656
  %v1712 = vadd.f32 %v1642, %v1656
  %v1713 = vadd.f32 %v1643, %v1656
  %v1714 = vadd.f32 %v1644, %v1656
  %v1715 = vadd.f32 %v1645, %v1656
  %v1716 = vadd.f32 %v1646, %v1656
  %v1717 = vadd.f32 %v1647, %v1656
  %v1718 = vadd.f32 %v1648, %v1656
  %v1719 = vadd.f32 %v1649, %v1656
  %v1720 = vadd.f32 %v1650, %v1656
  %v1721 = vadd.f32 %v1651, %v1656
  %v1722 = vmax.f32 %v1658, 0.0
  %v1723 = vmax.f32 %v1659, 0.0
  %v1724 = vmax.f32 %v1660, 0.0
  %v1725 = vmax.f32 %v1661, 0.0
  %v1726 = vmax.f32 %v1662, 0.0
  %v1727 = vmax.f32 %v1663, 0.0
  %v1728 = vmax.f32 %v1664, 0.0
  %v1729 = vmax.f32 %v1665, 0.0
  %v1730 = vmax.f32 %v1666, 0.0
  %v1731 = vmax.f32 %v1667, 0.0
  %v1732 = vmax.f32 %v1668, 0.0
  %v1733 = vmax.f32 %v1669, 0.0
  %v1734 = vmax.f32 %v1670, 0.0
  %v1735 = vmax.f32 %v1671, 0.0
  %v1736 = vmax.f32 %v1672, 0.0
  %v1737 = vmax.f32 %v1673, 0.0
  %v1738 = vmax.f32 %v1674, 0.0
  %v1739 = vmax.f32 %v1675, 0.0
  %v1740 = vmax.f32 %v1676, 0.0
  %v1741 = vmax.f32 %v1677, 0.0
  %v1742 = vmax.f32 %v1678, 0.0
  %v1743 = vmax.f32 %v1679, 0.0
  %v1744 = vmax.f32 %v1680, 0.0
  %v1745 = vmax.f32 %v1681, 0.0
  %v1746 = vmax.f32 %v1682, 0.0
  %v1747 = vmax.f32 %v1683, 0.0
  %v1748 = vmax.f32 %v1684, 0.0
  %v1749 = vmax.f32 %v1685, 0.0
  %v1750 = vmax.f32 %v1686, 0.0
  %v1751 = vmax.f32 %v1687, 0.0
  %v1752 = vmax.f32 %v1688, 0.0
  %v1753 = vmax.f32 %v1689, 0.0
  %v1754 = vmax.f32 %v1690, 0.0
  %v1755 = vmax.f32 %v1691, 0.0
  %v1756 = vmax.f32 %v1692, 0.0
  %v1757 = vmax.f32 %v1693, 0.0
  %v1758 = vmax.f32 %v1694, 0.0
  %v1759 = vmax.f32 %v1695, 0.0
  %v1760 = vmax.f32 %v1696, 0.0
  %v1761 = vmax.f32 %v1697, 0.0
  %v1762 = vmax.f32 %v1698, 0.0
  %v1763 = vmax.f32 %v1699, 0.0
  %v1764 = vmax.f32 %v1700, 0.0
  %v1765 = vmax.f32 %v1701, 0.0
  %v1766 = vmax.f32 %v1702, 0.0
  %v1767 = vmax.f32 %v1703, 0.0
  %v1768 = vmax.f32 %v1704, 0.0
  %v1769 = vmax.f32 %v1705, 0.0
  %v1770 = vmax.f32 %v1706, 0.0
  %v1771 = vmax.f32 %v1707, 0.0
  %v1772 = vmax.f32 %v1708, 0.0
  %v1773 = vmax.f32 %v1709, 0.0
  %v1774 = vmax.f32 %v1710, 0.0
  %v1775 = vmax.f32 %v1711, 0.0
  %v1776 = vmax.f32 %v1712, 0.0
  %v1777 = vmax.f32 %v1713, 0.0
  %v1778 = vmax.f32 %v1714, 0.0
  %v1779 = vmax.f32 %v1715, 0.0
  %v1780 = vmax.f32 %v1716, 0.0
  %v1781 = vmax.f32 %v1717, 0.0
  %v1782 = vmax.f32 %v1718, 0.0
  %v1783 = vmax.f32 %v1719, 0.0
  %v1784 = vmax.f32 %v1720, 0.0
  %v1785 = vmax.f32 %v1721, 0.0
  %v1786 = vpack.c.bf16 %v1723, %v1722
  %v1787 = vpack.c.bf16 %v1725, %v1724
  %v1788 = vpack.c.bf16 %v1727, %v1726
  %v1789 = vpack.c.bf16 %v1729, %v1728
  %v1790 = vpack.c.bf16 %v1731, %v1730
  %v1791 = vpack.c.bf16 %v1733, %v1732
  %v1792 = vpack.c.bf16 %v1735, %v1734
  %v1793 = vpack.c.bf16 %v1737, %v1736
  %v1794 = vpack.c.bf16 %v1739, %v1738
  %v1795 = vpack.c.bf16 %v1741, %v1740
  %v1796 = vpack.c.bf16 %v1743, %v1742
  %v1797 = vpack.c.bf16 %v1745, %v1744
  %v1798 = vpack.c.bf16 %v1747, %v1746
  %v1799 = vpack.c.bf16 %v1749, %v1748
  %v1800 = vpack.c.bf16 %v1751, %v1750
  %v1801 = vpack.c.bf16 %v1753, %v1752
  %v1802 = vpack.c.bf16 %v1755, %v1754
  %v1803 = vpack.c.bf16 %v1757, %v1756
  %v1804 = vpack.c.bf16 %v1759, %v1758
  %v1805 = vpack.c.bf16 %v1761, %v1760
  %v1806 = vpack.c.bf16 %v1763, %v1762
  %v1807 = vpack.c.bf16 %v1765, %v1764
  %v1808 = vpack.c.bf16 %v1767, %v1766
  %v1809 = vpack.c.bf16 %v1769, %v1768
  %v1810 = vpack.c.bf16 %v1771, %v1770
  %v1811 = vpack.c.bf16 %v1773, %v1772
  %v1812 = vpack.c.bf16 %v1775, %v1774
  %v1813 = vpack.c.bf16 %v1777, %v1776
  %v1814 = vpack.c.bf16 %v1779, %v1778
  %v1815 = vpack.c.bf16 %v1781, %v1780
  %v1816 = vpack.c.bf16 %v1783, %v1782
  %v1817 = vpack.c.bf16 %v1785, %v1784
  %v1818 = vld [vmem:[%s5] sm:$0xf]
  %v1819 = vld [vmem:[%s5 + $0x4] sm:$0xf]
  %v1820 = vld [vmem:[%s5 + $0x8] sm:$0xf]
  %v1821 = vld [vmem:[%s5 + $0xc] sm:$0xf]
  %v1822 = vld [vmem:[%s5 + $0x10] sm:$0xf]
  %v1823 = vld [vmem:[%s5 + $0x14] sm:$0xf]
  %v1824 = vld [vmem:[%s5 + $0x18] sm:$0xf]
  %v1825 = vld [vmem:[%s5 + $0x1c] sm:$0xf]
  %v1826 = vld [vmem:[%s5 + $0x20] sm:$0xf]
  %v1827 = vld [vmem:[%s5 + $0x24] sm:$0xf]
  %v1828 = vld [vmem:[%s5 + $0x28] sm:$0xf]
  %v1829 = vld [vmem:[%s5 + $0x2c] sm:$0xf]
  %v1830 = vld [vmem:[%s5 + $0x30] sm:$0xf]
  %v1831 = vld [vmem:[%s5 + $0x34] sm:$0xf]
  %v1832 = vld [vmem:[%s5 + $0x38] sm:$0xf]
  %v1833 = vld [vmem:[%s5 + $0x3c] sm:$0xf]
  %v1834 = vld [vmem:[%s6] sm:$0x1]
  %v1836 = vlaneseq
  %v1837 = vshrl.u32 %v1836, 7
  %v1838 = vsub.s32 0, %v1837
  %v1839 = vrot.slane %v1834, %v1838
  %v1857 = vunpack.c.l.b16 %v1818
  %v1858 = vunpack.c.l.b16 %v1819
  %v1859 = vunpack.c.l.b16 %v1820
  %v1860 = vunpack.c.l.b16 %v1821
  %v1861 = vunpack.c.l.b16 %v1822
  %v1862 = vunpack.c.l.b16 %v1823
  %v1863 = vunpack.c.l.b16 %v1824
  %v1864 = vunpack.c.l.b16 %v1825
  %v1865 = vunpack.c.l.b16 %v1826
  %v1866 = vunpack.c.l.b16 %v1827
  %v1867 = vunpack.c.l.b16 %v1828
  %v1868 = vunpack.c.l.b16 %v1829
  %v1869 = vunpack.c.l.b16 %v1830
  %v1870 = vunpack.c.l.b16 %v1831
  %v1871 = vunpack.c.l.b16 %v1832
  %v1872 = vunpack.c.l.b16 %v1833
  %v1873 = vpack.c.b16 %v1858, %v1857
  %v1874 = vpack.c.b16 %v1860, %v1859
  %v1875 = vpack.c.b16 %v1862, %v1861
  %v1876 = vpack.c.b16 %v1864, %v1863
  %v1877 = vpack.c.b16 %v1866, %v1865
  %v1878 = vpack.c.b16 %v1868, %v1867
  %v1879 = vpack.c.b16 %v1870, %v1869
  %v1880 = vpack.c.b16 %v1872, %v1871
  %1889 = vmatprep.subr.bf16.mxu0 0
  %1890 = vmatpush1.bf16.msra.mxu0 %v1880
  %1891 = vmatprep.subr.bf16.mxu0 0
  %1892 = vmatpush1.bf16.msra.mxu0 %v1879
  %1893 = vmatprep.subr.bf16.mxu0 0
  %1894 = vmatpush1.bf16.msra.mxu0 %v1878
  %1895 = vmatprep.subr.bf16.mxu0 0
  %1896 = vmatpush1.bf16.msra.mxu0 %v1877
  %1897 = vmatprep.subr.bf16.mxu0 0
  %1898 = vmatpush1.bf16.msra.mxu0 %v1876
  %1899 = vmatprep.subr.bf16.mxu0 0
  %1900 = vmatpush1.bf16.msra.mxu0 %v1875
  %1901 = vmatprep.subr.bf16.mxu0 0
  %1902 = vmatpush1.bf16.msra.mxu0 %v1874
  %1903 = vmatprep.subr.bf16.mxu0 0
  %1904 = vmatpush1.bf16.msra.mxu0 %v1873
  %1905 = vmatprep.subr.bf16.mxu0 0
  %1906 = vmatpush2.bf16.msra.mxu0 0
  %1907 = vmatprep.subr.bf16.mxu0 0
  %1908 = vmatpush2.bf16.msra.mxu0 0
  %1909 = vmatprep.subr.bf16.mxu0 0
  %1910 = vmatpush2.bf16.msra.mxu0 0
  %1911 = vmatprep.subr.bf16.mxu0 0
  %1912 = vmatpush2.bf16.msra.mxu0 0
  %1913 = vmatprep.subr.bf16.mxu0 0
  %1914 = vmatpush2.bf16.msra.mxu0 0
  %1915 = vmatprep.subr.bf16.mxu0 0
  %1916 = vmatpush2.bf16.msra.mxu0 0
  %1917 = vmatprep.subr.bf16.mxu0 0
  %1918 = vmatpush2.bf16.msra.mxu0 0
  %1919 = vmatprep.subr.bf16.mxu0 0
  %1920 = vmatpush2.bf16.msra.mxu0 0
  %1921 = vmatprep.mubr.bf16.mxu0 0
  %1922 = vmatmul.mubr.bf16.gmra.mxu0 %v1786
  %v1923 = vpop.f32.mrf.mxu0
  %v1924 = vadd.f32 %v1839, %v1923
  %v1925 = vpop.f32.mrf.mxu0
  %v1926 = vpop.f32.mrf.mxu0
  %v1927 = vadd.f32 %v1839, %v1926
  %v1928 = vpop.f32.mrf.mxu0
  %1929 = vmatprep.mubr.bf16.mxu0 0
  %1930 = vmatmul.mubr.bf16.gmra.mxu0 %v1787
  %v1931 = vpop.f32.mrf.mxu0
  %v1932 = vadd.f32 %v1839, %v1931
  %v1933 = vpop.f32.mrf.mxu0
  %v1934 = vpop.f32.mrf.mxu0
  %v1935 = vadd.f32 %v1839, %v1934
  %v1936 = vpop.f32.mrf.mxu0
  %1937 = vmatprep.mubr.bf16.mxu0 0
  %1938 = vmatmul.mubr.bf16.gmra.mxu0 %v1788
  %v1939 = vpop.f32.mrf.mxu0
  %v1940 = vadd.f32 %v1839, %v1939
  %v1941 = vpop.f32.mrf.mxu0
  %v1942 = vpop.f32.mrf.mxu0
  %v1943 = vadd.f32 %v1839, %v1942
  %v1944 = vpop.f32.mrf.mxu0
  %1945 = vmatprep.mubr.bf16.mxu0 0
  %1946 = vmatmul.mubr.bf16.gmra.mxu0 %v1789
  %v1947 = vpop.f32.mrf.mxu0
  %v1948 = vadd.f32 %v1839, %v1947
  %v1949 = vpop.f32.mrf.mxu0
  %v1950 = vpop.f32.mrf.mxu0
  %v1951 = vadd.f32 %v1839, %v1950
  %v1952 = vpop.f32.mrf.mxu0
  %1953 = vmatprep.mubr.bf16.mxu0 0
  %1954 = vmatmul.mubr.bf16.gmra.mxu0 %v1790
  %v1955 = vpop.f32.mrf.mxu0
  %v1956 = vadd.f32 %v1839, %v1955
  %v1957 = vpop.f32.mrf.mxu0
  %v1958 = vpop.f32.mrf.mxu0
  %v1959 = vadd.f32 %v1839, %v1958
  %v1960 = vpop.f32.mrf.mxu0
  %1961 = vmatprep.mubr.bf16.mxu0 0
  %1962 = vmatmul.mubr.bf16.gmra.mxu0 %v1791
  %v1963 = vpop.f32.mrf.mxu0
  %v1964 = vadd.f32 %v1839, %v1963
  %v1965 = vpop.f32.mrf.mxu0
  %v1966 = vpop.f32.mrf.mxu0
  %v1967 = vadd.f32 %v1839, %v1966
  %v1968 = vpop.f32.mrf.mxu0
  %1969 = vmatprep.mubr.bf16.mxu0 0
  %1970 = vmatmul.mubr.bf16.gmra.mxu0 %v1792
  %v1971 = vpop.f32.mrf.mxu0
  %v1972 = vadd.f32 %v1839, %v1971
  %v1973 = vpop.f32.mrf.mxu0
  %v1974 = vpop.f32.mrf.mxu0
  %v1975 = vadd.f32 %v1839, %v1974
  %v1976 = vpop.f32.mrf.mxu0
  %1977 = vmatprep.mubr.bf16.mxu0 0
  %1978 = vmatmul.mubr.bf16.gmra.mxu0 %v1793
  %v1979 = vpop.f32.mrf.mxu0
  %v1980 = vadd.f32 %v1839, %v1979
  %v1981 = vpop.f32.mrf.mxu0
  %v1982 = vpop.f32.mrf.mxu0
  %v1983 = vadd.f32 %v1839, %v1982
  %v1984 = vpop.f32.mrf.mxu0
  %1985 = vmatprep.mubr.bf16.mxu0 0
  %1986 = vmatmul.mubr.bf16.gmra.mxu0 %v1794
  %v1987 = vpop.f32.mrf.mxu0
  %v1988 = vadd.f32 %v1839, %v1987
  %v1989 = vpop.f32.mrf.mxu0
  %v1990 = vpop.f32.mrf.mxu0
  %v1991 = vadd.f32 %v1839, %v1990
  %v1992 = vpop.f32.mrf.mxu0
  %1993 = vmatprep.mubr.bf16.mxu0 0
  %1994 = vmatmul.mubr.bf16.gmra.mxu0 %v1795
  %v1995 = vpop.f32.mrf.mxu0
  %v1996 = vadd.f32 %v1839, %v1995
  %v1997 = vpop.f32.mrf.mxu0
  %v1998 = vpop.f32.mrf.mxu0
  %v1999 = vadd.f32 %v1839, %v1998
  %v2000 = vpop.f32.mrf.mxu0
  %2001 = vmatprep.mubr.bf16.mxu0 0
  %2002 = vmatmul.mubr.bf16.gmra.mxu0 %v1796
  %v2003 = vpop.f32.mrf.mxu0
  %v2004 = vadd.f32 %v1839, %v2003
  %v2005 = vpop.f32.mrf.mxu0
  %v2006 = vpop.f32.mrf.mxu0
  %v2007 = vadd.f32 %v1839, %v2006
  %v2008 = vpop.f32.mrf.mxu0
  %2009 = vmatprep.mubr.bf16.mxu0 0
  %2010 = vmatmul.mubr.bf16.gmra.mxu0 %v1797
  %v2011 = vpop.f32.mrf.mxu0
  %v2012 = vadd.f32 %v1839, %v2011
  %v2013 = vpop.f32.mrf.mxu0
  %v2014 = vpop.f32.mrf.mxu0
  %v2015 = vadd.f32 %v1839, %v2014
  %v2016 = vpop.f32.mrf.mxu0
  %2017 = vmatprep.mubr.bf16.mxu0 0
  %2018 = vmatmul.mubr.bf16.gmra.mxu0 %v1798
  %v2019 = vpop.f32.mrf.mxu0
  %v2020 = vadd.f32 %v1839, %v2019
  %v2021 = vpop.f32.mrf.mxu0
  %v2022 = vpop.f32.mrf.mxu0
  %v2023 = vadd.f32 %v1839, %v2022
  %v2024 = vpop.f32.mrf.mxu0
  %2025 = vmatprep.mubr.bf16.mxu0 0
  %2026 = vmatmul.mubr.bf16.gmra.mxu0 %v1799
  %v2027 = vpop.f32.mrf.mxu0
  %v2028 = vadd.f32 %v1839, %v2027
  %v2029 = vpop.f32.mrf.mxu0
  %v2030 = vpop.f32.mrf.mxu0
  %v2031 = vadd.f32 %v1839, %v2030
  %v2032 = vpop.f32.mrf.mxu0
  %2033 = vmatprep.mubr.bf16.mxu0 0
  %2034 = vmatmul.mubr.bf16.gmra.mxu0 %v1800
  %v2035 = vpop.f32.mrf.mxu0
  %v2036 = vadd.f32 %v1839, %v2035
  %v2037 = vpop.f32.mrf.mxu0
  %v2038 = vpop.f32.mrf.mxu0
  %v2039 = vadd.f32 %v1839, %v2038
  %v2040 = vpop.f32.mrf.mxu0
  %2041 = vmatprep.mubr.bf16.mxu0 0
  %2042 = vmatmul.mubr.bf16.gmra.mxu0 %v1801
  %v2043 = vpop.f32.mrf.mxu0
  %v2044 = vadd.f32 %v1839, %v2043
  %v2045 = vpop.f32.mrf.mxu0
  %v2046 = vpop.f32.mrf.mxu0
  %v2047 = vadd.f32 %v1839, %v2046
  %v2048 = vpop.f32.mrf.mxu0
  %2049 = vmatprep.mubr.bf16.mxu0 0
  %2050 = vmatmul.mubr.bf16.gmra.mxu0 %v1802
  %v2051 = vpop.f32.mrf.mxu0
  %v2052 = vadd.f32 %v1839, %v2051
  %v2053 = vpop.f32.mrf.mxu0
  %v2054 = vpop.f32.mrf.mxu0
  %v2055 = vadd.f32 %v1839, %v2054
  %v2056 = vpop.f32.mrf.mxu0
  %2057 = vmatprep.mubr.bf16.mxu0 0
  %2058 = vmatmul.mubr.bf16.gmra.mxu0 %v1803
  %v2059 = vpop.f32.mrf.mxu0
  %v2060 = vadd.f32 %v1839, %v2059
  %v2061 = vpop.f32.mrf.mxu0
  %v2062 = vpop.f32.mrf.mxu0
  %v2063 = vadd.f32 %v1839, %v2062
  %v2064 = vpop.f32.mrf.mxu0
  %2065 = vmatprep.mubr.bf16.mxu0 0
  %2066 = vmatmul.mubr.bf16.gmra.mxu0 %v1804
  %v2067 = vpop.f32.mrf.mxu0
  %v2068 = vadd.f32 %v1839, %v2067
  %v2069 = vpop.f32.mrf.mxu0
  %v2070 = vpop.f32.mrf.mxu0
  %v2071 = vadd.f32 %v1839, %v2070
  %v2072 = vpop.f32.mrf.mxu0
  %2073 = vmatprep.mubr.bf16.mxu0 0
  %2074 = vmatmul.mubr.bf16.gmra.mxu0 %v1805
  %v2075 = vpop.f32.mrf.mxu0
  %v2076 = vadd.f32 %v1839, %v2075
  %v2077 = vpop.f32.mrf.mxu0
  %v2078 = vpop.f32.mrf.mxu0
  %v2079 = vadd.f32 %v1839, %v2078
  %v2080 = vpop.f32.mrf.mxu0
  %2081 = vmatprep.mubr.bf16.mxu0 0
  %2082 = vmatmul.mubr.bf16.gmra.mxu0 %v1806
  %v2083 = vpop.f32.mrf.mxu0
  %v2084 = vadd.f32 %v1839, %v2083
  %v2085 = vpop.f32.mrf.mxu0
  %v2086 = vpop.f32.mrf.mxu0
  %v2087 = vadd.f32 %v1839, %v2086
  %v2088 = vpop.f32.mrf.mxu0
  %2089 = vmatprep.mubr.bf16.mxu0 0
  %2090 = vmatmul.mubr.bf16.gmra.mxu0 %v1807
  %v2091 = vpop.f32.mrf.mxu0
  %v2092 = vadd.f32 %v1839, %v2091
  %v2093 = vpop.f32.mrf.mxu0
  %v2094 = vpop.f32.mrf.mxu0
  %v2095 = vadd.f32 %v1839, %v2094
  %v2096 = vpop.f32.mrf.mxu0
  %2097 = vmatprep.mubr.bf16.mxu0 0
  %2098 = vmatmul.mubr.bf16.gmra.mxu0 %v1808
  %v2099 = vpop.f32.mrf.mxu0
  %v2100 = vadd.f32 %v1839, %v2099
  %v2101 = vpop.f32.mrf.mxu0
  %v2102 = vpop.f32.mrf.mxu0
  %v2103 = vadd.f32 %v1839, %v2102
  %v2104 = vpop.f32.mrf.mxu0
  %2105 = vmatprep.mubr.bf16.mxu0 0
  %2106 = vmatmul.mubr.bf16.gmra.mxu0 %v1809
  %v2107 = vpop.f32.mrf.mxu0
  %v2108 = vadd.f32 %v1839, %v2107
  %v2109 = vpop.f32.mrf.mxu0
  %v2110 = vpop.f32.mrf.mxu0
  %v2111 = vadd.f32 %v1839, %v2110
  %v2112 = vpop.f32.mrf.mxu0
  %2113 = vmatprep.mubr.bf16.mxu0 0
  %2114 = vmatmul.mubr.bf16.gmra.mxu0 %v1810
  %v2115 = vpop.f32.mrf.mxu0
  %v2116 = vadd.f32 %v1839, %v2115
  %v2117 = vpop.f32.mrf.mxu0
  %v2118 = vpop.f32.mrf.mxu0
  %v2119 = vadd.f32 %v1839, %v2118
  %v2120 = vpop.f32.mrf.mxu0
  %2121 = vmatprep.mubr.bf16.mxu0 0
  %2122 = vmatmul.mubr.bf16.gmra.mxu0 %v1811
  %v2123 = vpop.f32.mrf.mxu0
  %v2124 = vadd.f32 %v1839, %v2123
  %v2125 = vpop.f32.mrf.mxu0
  %v2126 = vpop.f32.mrf.mxu0
  %v2127 = vadd.f32 %v1839, %v2126
  %v2128 = vpop.f32.mrf.mxu0
  %2129 = vmatprep.mubr.bf16.mxu0 0
  %2130 = vmatmul.mubr.bf16.gmra.mxu0 %v1812
  %v2131 = vpop.f32.mrf.mxu0
  %v2132 = vadd.f32 %v1839, %v2131
  %v2133 = vpop.f32.mrf.mxu0
  %v2134 = vpop.f32.mrf.mxu0
  %v2135 = vadd.f32 %v1839, %v2134
  %v2136 = vpop.f32.mrf.mxu0
  %2137 = vmatprep.mubr.bf16.mxu0 0
  %2138 = vmatmul.mubr.bf16.gmra.mxu0 %v1813
  %v2139 = vpop.f32.mrf.mxu0
  %v2140 = vadd.f32 %v1839, %v2139
  %v2141 = vpop.f32.mrf.mxu0
  %v2142 = vpop.f32.mrf.mxu0
  %v2143 = vadd.f32 %v1839, %v2142
  %v2144 = vpop.f32.mrf.mxu0
  %2145 = vmatprep.mubr.bf16.mxu0 0
  %2146 = vmatmul.mubr.bf16.gmra.mxu0 %v1814
  %v2147 = vpop.f32.mrf.mxu0
  %v2148 = vadd.f32 %v1839, %v2147
  %v2149 = vpop.f32.mrf.mxu0
  %v2150 = vpop.f32.mrf.mxu0
  %v2151 = vadd.f32 %v1839, %v2150
  %v2152 = vpop.f32.mrf.mxu0
  %2153 = vmatprep.mubr.bf16.mxu0 0
  %2154 = vmatmul.mubr.bf16.gmra.mxu0 %v1815
  %v2155 = vpop.f32.mrf.mxu0
  %v2156 = vadd.f32 %v1839, %v2155
  %v2157 = vpop.f32.mrf.mxu0
  %v2158 = vpop.f32.mrf.mxu0
  %v2159 = vadd.f32 %v1839, %v2158
  %v2160 = vpop.f32.mrf.mxu0
  %2161 = vmatprep.mubr.bf16.mxu0 0
  %2162 = vmatmul.mubr.bf16.gmra.mxu0 %v1816
  %v2163 = vpop.f32.mrf.mxu0
  %v2164 = vadd.f32 %v1839, %v2163
  %v2165 = vpop.f32.mrf.mxu0
  %v2166 = vpop.f32.mrf.mxu0
  %v2167 = vadd.f32 %v1839, %v2166
  %v2168 = vpop.f32.mrf.mxu0
  %2169 = vmatprep.mubr.bf16.mxu0 0
  %2170 = vmatmul.mubr.bf16.gmra.mxu0 %v1817
  %v2171 = vpop.f32.mrf.mxu0
  %v2172 = vadd.f32 %v1839, %v2171
  %v2173 = vpop.f32.mrf.mxu0
  %v2174 = vpop.f32.mrf.mxu0
  %v2175 = vadd.f32 %v1839, %v2174
  %v2176 = vpop.f32.mrf.mxu0
  %2177 = vdwg.mxu0
  %v2178 = vld [vmem:[%s7] sm:$0x1]
  %v2179 = vld [vmem:[%s8] sm:$0x1]
  %2180 = vadd.xlane.f32.xlu0 %v1924
  %v2181 = vpop.xlane.xlu0 %2180
  %2182 = vadd.xlane.f32.xlu0 %v1927
  %v2183 = vpop.xlane.xlu0 %2182
  %2184 = vadd.xlane.f32.xlu0 %v1932
  %v2185 = vpop.xlane.xlu0 %2184
  %2186 = vadd.xlane.f32.xlu0 %v1935
  %v2187 = vpop.xlane.xlu0 %2186
  %2188 = vadd.xlane.f32.xlu0 %v1940
  %v2189 = vpop.xlane.xlu0 %2188
  %2190 = vadd.xlane.f32.xlu0 %v1943
  %v2191 = vpop.xlane.xlu0 %2190
  %2192 = vadd.xlane.f32.xlu0 %v1948
  %v2193 = vpop.xlane.xlu0 %2192
  %2194 = vadd.xlane.f32.xlu0 %v1951
  %v2195 = vpop.xlane.xlu0 %2194
  %2196 = vadd.xlane.f32.xlu0 %v1956
  %v2197 = vpop.xlane.xlu0 %2196
  %2198 = vadd.xlane.f32.xlu0 %v1959
  %v2199 = vpop.xlane.xlu0 %2198
  %2200 = vadd.xlane.f32.xlu0 %v1964
  %v2201 = vpop.xlane.xlu0 %2200
  %2202 = vadd.xlane.f32.xlu0 %v1967
  %v2203 = vpop.xlane.xlu0 %2202
  %2204 = vadd.xlane.f32.xlu0 %v1972
  %v2205 = vpop.xlane.xlu0 %2204
  %2206 = vadd.xlane.f32.xlu0 %v1975
  %v2207 = vpop.xlane.xlu0 %2206
  %2208 = vadd.xlane.f32.xlu0 %v1980
  %v2209 = vpop.xlane.xlu0 %2208
  %2210 = vadd.xlane.f32.xlu0 %v1983
  %v2211 = vpop.xlane.xlu0 %2210
  %2212 = vadd.xlane.f32.xlu0 %v1988
  %v2213 = vpop.xlane.xlu0 %2212
  %2214 = vadd.xlane.f32.xlu0 %v1991
  %v2215 = vpop.xlane.xlu0 %2214
  %2216 = vadd.xlane.f32.xlu0 %v1996
  %v2217 = vpop.xlane.xlu0 %2216
  %2218 = vadd.xlane.f32.xlu0 %v1999
  %v2219 = vpop.xlane.xlu0 %2218
  %2220 = vadd.xlane.f32.xlu0 %v2004
  %v2221 = vpop.xlane.xlu0 %2220
  %2222 = vadd.xlane.f32.xlu0 %v2007
  %v2223 = vpop.xlane.xlu0 %2222
  %2224 = vadd.xlane.f32.xlu0 %v2012
  %v2225 = vpop.xlane.xlu0 %2224
  %2226 = vadd.xlane.f32.xlu0 %v2015
  %v2227 = vpop.xlane.xlu0 %2226
  %2228 = vadd.xlane.f32.xlu0 %v2020
  %v2229 = vpop.xlane.xlu0 %2228
  %2230 = vadd.xlane.f32.xlu0 %v2023
  %v2231 = vpop.xlane.xlu0 %2230
  %2232 = vadd.xlane.f32.xlu0 %v2028
  %v2233 = vpop.xlane.xlu0 %2232
  %2234 = vadd.xlane.f32.xlu0 %v2031
  %v2235 = vpop.xlane.xlu0 %2234
  %2236 = vadd.xlane.f32.xlu0 %v2036
  %v2237 = vpop.xlane.xlu0 %2236
  %2238 = vadd.xlane.f32.xlu0 %v2039
  %v2239 = vpop.xlane.xlu0 %2238
  %2240 = vadd.xlane.f32.xlu0 %v2044
  %v2241 = vpop.xlane.xlu0 %2240
  %2242 = vadd.xlane.f32.xlu0 %v2047
  %v2243 = vpop.xlane.xlu0 %2242
  %2244 = vadd.xlane.f32.xlu0 %v2052
  %v2245 = vpop.xlane.xlu0 %2244
  %2246 = vadd.xlane.f32.xlu0 %v2055
  %v2247 = vpop.xlane.xlu0 %2246
  %2248 = vadd.xlane.f32.xlu0 %v2060
  %v2249 = vpop.xlane.xlu0 %2248
  %2250 = vadd.xlane.f32.xlu0 %v2063
  %v2251 = vpop.xlane.xlu0 %2250
  %2252 = vadd.xlane.f32.xlu0 %v2068
  %v2253 = vpop.xlane.xlu0 %2252
  %2254 = vadd.xlane.f32.xlu0 %v2071
  %v2255 = vpop.xlane.xlu0 %2254
  %2256 = vadd.xlane.f32.xlu0 %v2076
  %v2257 = vpop.xlane.xlu0 %2256
  %2258 = vadd.xlane.f32.xlu0 %v2079
  %v2259 = vpop.xlane.xlu0 %2258
  %2260 = vadd.xlane.f32.xlu0 %v2084
  %v2261 = vpop.xlane.xlu0 %2260
  %2262 = vadd.xlane.f32.xlu0 %v2087
  %v2263 = vpop.xlane.xlu0 %2262
  %2264 = vadd.xlane.f32.xlu0 %v2092
  %v2265 = vpop.xlane.xlu0 %2264
  %2266 = vadd.xlane.f32.xlu0 %v2095
  %v2267 = vpop.xlane.xlu0 %2266
  %2268 = vadd.xlane.f32.xlu0 %v2100
  %v2269 = vpop.xlane.xlu0 %2268
  %2270 = vadd.xlane.f32.xlu0 %v2103
  %v2271 = vpop.xlane.xlu0 %2270
  %2272 = vadd.xlane.f32.xlu0 %v2108
  %v2273 = vpop.xlane.xlu0 %2272
  %2274 = vadd.xlane.f32.xlu0 %v2111
  %v2275 = vpop.xlane.xlu0 %2274
  %2276 = vadd.xlane.f32.xlu0 %v2116
  %v2277 = vpop.xlane.xlu0 %2276
  %2278 = vadd.xlane.f32.xlu0 %v2119
  %v2279 = vpop.xlane.xlu0 %2278
  %2280 = vadd.xlane.f32.xlu0 %v2124
  %v2281 = vpop.xlane.xlu0 %2280
  %2282 = vadd.xlane.f32.xlu0 %v2127
  %v2283 = vpop.xlane.xlu0 %2282
  %2284 = vadd.xlane.f32.xlu0 %v2132
  %v2285 = vpop.xlane.xlu0 %2284
  %2286 = vadd.xlane.f32.xlu0 %v2135
  %v2287 = vpop.xlane.xlu0 %2286
  %2288 = vadd.xlane.f32.xlu0 %v2140
  %v2289 = vpop.xlane.xlu0 %2288
  %2290 = vadd.xlane.f32.xlu0 %v2143
  %v2291 = vpop.xlane.xlu0 %2290
  %2292 = vadd.xlane.f32.xlu0 %v2148
  %v2293 = vpop.xlane.xlu0 %2292
  %2294 = vadd.xlane.f32.xlu0 %v2151
  %v2295 = vpop.xlane.xlu0 %2294
  %2296 = vadd.xlane.f32.xlu0 %v2156
  %v2297 = vpop.xlane.xlu0 %2296
  %2298 = vadd.xlane.f32.xlu0 %v2159
  %v2299 = vpop.xlane.xlu0 %2298
  %2300 = vadd.xlane.f32.xlu0 %v2164
  %v2301 = vpop.xlane.xlu0 %2300
  %2302 = vadd.xlane.f32.xlu0 %v2167
  %v2303 = vpop.xlane.xlu0 %2302
  %2304 = vadd.xlane.f32.xlu0 %v2172
  %v2305 = vpop.xlane.xlu0 %2304
  %2306 = vadd.xlane.f32.xlu0 %v2175
  %v2307 = vpop.xlane.xlu0 %2306
  %v2308 = vmul.f32 %v2181, 0.015625
  %v2309 = vmul.f32 %v2183, 0.015625
  %v2310 = vmul.f32 %v2185, 0.015625
  %v2311 = vmul.f32 %v2187, 0.015625
  %v2312 = vmul.f32 %v2189, 0.015625
  %v2313 = vmul.f32 %v2191, 0.015625
  %v2314 = vmul.f32 %v2193, 0.015625
  %v2315 = vmul.f32 %v2195, 0.015625
  %v2316 = vmul.f32 %v2197, 0.015625
  %v2317 = vmul.f32 %v2199, 0.015625
  %v2318 = vmul.f32 %v2201, 0.015625
  %v2319 = vmul.f32 %v2203, 0.015625
  %v2320 = vmul.f32 %v2205, 0.015625
  %v2321 = vmul.f32 %v2207, 0.015625
  %v2322 = vmul.f32 %v2209, 0.015625
  %v2323 = vmul.f32 %v2211, 0.015625
  %v2324 = vmul.f32 %v2213, 0.015625
  %v2325 = vmul.f32 %v2215, 0.015625
  %v2326 = vmul.f32 %v2217, 0.015625
  %v2327 = vmul.f32 %v2219, 0.015625
  %v2328 = vmul.f32 %v2221, 0.015625
  %v2329 = vmul.f32 %v2223, 0.015625
  %v2330 = vmul.f32 %v2225, 0.015625
  %v2331 = vmul.f32 %v2227, 0.015625
  %v2332 = vmul.f32 %v2229, 0.015625
  %v2333 = vmul.f32 %v2231, 0.015625
  %v2334 = vmul.f32 %v2233, 0.015625
  %v2335 = vmul.f32 %v2235, 0.015625
  %v2336 = vmul.f32 %v2237, 0.015625
  %v2337 = vmul.f32 %v2239, 0.015625
  %v2338 = vmul.f32 %v2241, 0.015625
  %v2339 = vmul.f32 %v2243, 0.015625
  %v2340 = vmul.f32 %v2245, 0.015625
  %v2341 = vmul.f32 %v2247, 0.015625
  %v2342 = vmul.f32 %v2249, 0.015625
  %v2343 = vmul.f32 %v2251, 0.015625
  %v2344 = vmul.f32 %v2253, 0.015625
  %v2345 = vmul.f32 %v2255, 0.015625
  %v2346 = vmul.f32 %v2257, 0.015625
  %v2347 = vmul.f32 %v2259, 0.015625
  %v2348 = vmul.f32 %v2261, 0.015625
  %v2349 = vmul.f32 %v2263, 0.015625
  %v2350 = vmul.f32 %v2265, 0.015625
  %v2351 = vmul.f32 %v2267, 0.015625
  %v2352 = vmul.f32 %v2269, 0.015625
  %v2353 = vmul.f32 %v2271, 0.015625
  %v2354 = vmul.f32 %v2273, 0.015625
  %v2355 = vmul.f32 %v2275, 0.015625
  %v2356 = vmul.f32 %v2277, 0.015625
  %v2357 = vmul.f32 %v2279, 0.015625
  %v2358 = vmul.f32 %v2281, 0.015625
  %v2359 = vmul.f32 %v2283, 0.015625
  %v2360 = vmul.f32 %v2285, 0.015625
  %v2361 = vmul.f32 %v2287, 0.015625
  %v2362 = vmul.f32 %v2289, 0.015625
  %v2363 = vmul.f32 %v2291, 0.015625
  %v2364 = vmul.f32 %v2293, 0.015625
  %v2365 = vmul.f32 %v2295, 0.015625
  %v2366 = vmul.f32 %v2297, 0.015625
  %v2367 = vmul.f32 %v2299, 0.015625
  %v2368 = vmul.f32 %v2301, 0.015625
  %v2369 = vmul.f32 %v2303, 0.015625
  %v2370 = vmul.f32 %v2305, 0.015625
  %v2371 = vmul.f32 %v2307, 0.015625
  %v2372 = vmul.f32 %v1924, %v1924
  %v2373 = vmul.f32 %v1927, %v1927
  %v2374 = vmul.f32 %v1932, %v1932
  %v2375 = vmul.f32 %v1935, %v1935
  %v2376 = vmul.f32 %v1940, %v1940
  %v2377 = vmul.f32 %v1943, %v1943
  %v2378 = vmul.f32 %v1948, %v1948
  %v2379 = vmul.f32 %v1951, %v1951
  %v2380 = vmul.f32 %v1956, %v1956
  %v2381 = vmul.f32 %v1959, %v1959
  %v2382 = vmul.f32 %v1964, %v1964
  %v2383 = vmul.f32 %v1967, %v1967
  %v2384 = vmul.f32 %v1972, %v1972
  %v2385 = vmul.f32 %v1975, %v1975
  %v2386 = vmul.f32 %v1980, %v1980
  %v2387 = vmul.f32 %v1983, %v1983
  %v2388 = vmul.f32 %v1988, %v1988
  %v2389 = vmul.f32 %v1991, %v1991
  %v2390 = vmul.f32 %v1996, %v1996
  %v2391 = vmul.f32 %v1999, %v1999
  %v2392 = vmul.f32 %v2004, %v2004
  %v2393 = vmul.f32 %v2007, %v2007
  %v2394 = vmul.f32 %v2012, %v2012
  %v2395 = vmul.f32 %v2015, %v2015
  %v2396 = vmul.f32 %v2020, %v2020
  %v2397 = vmul.f32 %v2023, %v2023
  %v2398 = vmul.f32 %v2028, %v2028
  %v2399 = vmul.f32 %v2031, %v2031
  %v2400 = vmul.f32 %v2036, %v2036
  %v2401 = vmul.f32 %v2039, %v2039
  %v2402 = vmul.f32 %v2044, %v2044
  %v2403 = vmul.f32 %v2047, %v2047
  %v2404 = vmul.f32 %v2052, %v2052
  %v2405 = vmul.f32 %v2055, %v2055
  %v2406 = vmul.f32 %v2060, %v2060
  %v2407 = vmul.f32 %v2063, %v2063
  %v2408 = vmul.f32 %v2068, %v2068
  %v2409 = vmul.f32 %v2071, %v2071
  %v2410 = vmul.f32 %v2076, %v2076
  %v2411 = vmul.f32 %v2079, %v2079
  %v2412 = vmul.f32 %v2084, %v2084
  %v2413 = vmul.f32 %v2087, %v2087
  %v2414 = vmul.f32 %v2092, %v2092
  %v2415 = vmul.f32 %v2095, %v2095
  %v2416 = vmul.f32 %v2100, %v2100
  %v2417 = vmul.f32 %v2103, %v2103
  %v2418 = vmul.f32 %v2108, %v2108
  %v2419 = vmul.f32 %v2111, %v2111
  %v2420 = vmul.f32 %v2116, %v2116
  %v2421 = vmul.f32 %v2119, %v2119
  %v2422 = vmul.f32 %v2124, %v2124
  %v2423 = vmul.f32 %v2127, %v2127
  %v2424 = vmul.f32 %v2132, %v2132
  %v2425 = vmul.f32 %v2135, %v2135
  %v2426 = vmul.f32 %v2140, %v2140
  %v2427 = vmul.f32 %v2143, %v2143
  %v2428 = vmul.f32 %v2148, %v2148
  %v2429 = vmul.f32 %v2151, %v2151
  %v2430 = vmul.f32 %v2156, %v2156
  %v2431 = vmul.f32 %v2159, %v2159
  %v2432 = vmul.f32 %v2164, %v2164
  %v2433 = vmul.f32 %v2167, %v2167
  %v2434 = vmul.f32 %v2172, %v2172
  %v2435 = vmul.f32 %v2175, %v2175
  %2436 = vadd.xlane.f32.xlu0 %v2372
  %v2437 = vpop.xlane.xlu0 %2436
  %2438 = vadd.xlane.f32.xlu0 %v2373
  %v2439 = vpop.xlane.xlu0 %2438
  %2440 = vadd.xlane.f32.xlu0 %v2374
  %v2441 = vpop.xlane.xlu0 %2440
  %2442 = vadd.xlane.f32.xlu0 %v2375
  %v2443 = vpop.xlane.xlu0 %2442
  %2444 = vadd.xlane.f32.xlu0 %v2376
  %v2445 = vpop.xlane.xlu0 %2444
  %2446 = vadd.xlane.f32.xlu0 %v2377
  %v2447 = vpop.xlane.xlu0 %2446
  %2448 = vadd.xlane.f32.xlu0 %v2378
  %v2449 = vpop.xlane.xlu0 %2448
  %2450 = vadd.xlane.f32.xlu0 %v2379
  %v2451 = vpop.xlane.xlu0 %2450
  %2452 = vadd.xlane.f32.xlu0 %v2380
  %v2453 = vpop.xlane.xlu0 %2452
  %2454 = vadd.xlane.f32.xlu0 %v2381
  %v2455 = vpop.xlane.xlu0 %2454
  %2456 = vadd.xlane.f32.xlu0 %v2382
  %v2457 = vpop.xlane.xlu0 %2456
  %2458 = vadd.xlane.f32.xlu0 %v2383
  %v2459 = vpop.xlane.xlu0 %2458
  %2460 = vadd.xlane.f32.xlu0 %v2384
  %v2461 = vpop.xlane.xlu0 %2460
  %2462 = vadd.xlane.f32.xlu0 %v2385
  %v2463 = vpop.xlane.xlu0 %2462
  %2464 = vadd.xlane.f32.xlu0 %v2386
  %v2465 = vpop.xlane.xlu0 %2464
  %2466 = vadd.xlane.f32.xlu0 %v2387
  %v2467 = vpop.xlane.xlu0 %2466
  %2468 = vadd.xlane.f32.xlu0 %v2388
  %v2469 = vpop.xlane.xlu0 %2468
  %2470 = vadd.xlane.f32.xlu0 %v2389
  %v2471 = vpop.xlane.xlu0 %2470
  %2472 = vadd.xlane.f32.xlu0 %v2390
  %v2473 = vpop.xlane.xlu0 %2472
  %2474 = vadd.xlane.f32.xlu0 %v2391
  %v2475 = vpop.xlane.xlu0 %2474
  %2476 = vadd.xlane.f32.xlu0 %v2392
  %v2477 = vpop.xlane.xlu0 %2476
  %2478 = vadd.xlane.f32.xlu0 %v2393
  %v2479 = vpop.xlane.xlu0 %2478
  %2480 = vadd.xlane.f32.xlu0 %v2394
  %v2481 = vpop.xlane.xlu0 %2480
  %2482 = vadd.xlane.f32.xlu0 %v2395
  %v2483 = vpop.xlane.xlu0 %2482
  %2484 = vadd.xlane.f32.xlu0 %v2396
  %v2485 = vpop.xlane.xlu0 %2484
  %2486 = vadd.xlane.f32.xlu0 %v2397
  %v2487 = vpop.xlane.xlu0 %2486
  %2488 = vadd.xlane.f32.xlu0 %v2398
  %v2489 = vpop.xlane.xlu0 %2488
  %2490 = vadd.xlane.f32.xlu0 %v2399
  %v2491 = vpop.xlane.xlu0 %2490
  %2492 = vadd.xlane.f32.xlu0 %v2400
  %v2493 = vpop.xlane.xlu0 %2492
  %2494 = vadd.xlane.f32.xlu0 %v2401
  %v2495 = vpop.xlane.xlu0 %2494
  %2496 = vadd.xlane.f32.xlu0 %v2402
  %v2497 = vpop.xlane.xlu0 %2496
  %2498 = vadd.xlane.f32.xlu0 %v2403
  %v2499 = vpop.xlane.xlu0 %2498
  %2500 = vadd.xlane.f32.xlu0 %v2404
  %v2501 = vpop.xlane.xlu0 %2500
  %2502 = vadd.xlane.f32.xlu0 %v2405
  %v2503 = vpop.xlane.xlu0 %2502
  %2504 = vadd.xlane.f32.xlu0 %v2406
  %v2505 = vpop.xlane.xlu0 %2504
  %2506 = vadd.xlane.f32.xlu0 %v2407
  %v2507 = vpop.xlane.xlu0 %2506
  %2508 = vadd.xlane.f32.xlu0 %v2408
  %v2509 = vpop.xlane.xlu0 %2508
  %2510 = vadd.xlane.f32.xlu0 %v2409
  %v2511 = vpop.xlane.xlu0 %2510
  %2512 = vadd.xlane.f32.xlu0 %v2410
  %v2513 = vpop.xlane.xlu0 %2512
  %2514 = vadd.xlane.f32.xlu0 %v2411
  %v2515 = vpop.xlane.xlu0 %2514
  %2516 = vadd.xlane.f32.xlu0 %v2412
  %v2517 = vpop.xlane.xlu0 %2516
  %2518 = vadd.xlane.f32.xlu0 %v2413
  %v2519 = vpop.xlane.xlu0 %2518
  %2520 = vadd.xlane.f32.xlu0 %v2414
  %v2521 = vpop.xlane.xlu0 %2520
  %2522 = vadd.xlane.f32.xlu0 %v2415
  %v2523 = vpop.xlane.xlu0 %2522
  %2524 = vadd.xlane.f32.xlu0 %v2416
  %v2525 = vpop.xlane.xlu0 %2524
  %2526 = vadd.xlane.f32.xlu0 %v2417
  %v2527 = vpop.xlane.xlu0 %2526
  %2528 = vadd.xlane.f32.xlu0 %v2418
  %v2529 = vpop.xlane.xlu0 %2528
  %2530 = vadd.xlane.f32.xlu0 %v2419
  %v2531 = vpop.xlane.xlu0 %2530
  %2532 = vadd.xlane.f32.xlu0 %v2420
  %v2533 = vpop.xlane.xlu0 %2532
  %2534 = vadd.xlane.f32.xlu0 %v2421
  %v2535 = vpop.xlane.xlu0 %2534
  %2536 = vadd.xlane.f32.xlu0 %v2422
  %v2537 = vpop.xlane.xlu0 %2536
  %2538 = vadd.xlane.f32.xlu0 %v2423
  %v2539 = vpop.xlane.xlu0 %2538
  %2540 = vadd.xlane.f32.xlu0 %v2424
  %v2541 = vpop.xlane.xlu0 %2540
  %2542 = vadd.xlane.f32.xlu0 %v2425
  %v2543 = vpop.xlane.xlu0 %2542
  %2544 = vadd.xlane.f32.xlu0 %v2426
  %v2545 = vpop.xlane.xlu0 %2544
  %2546 = vadd.xlane.f32.xlu0 %v2427
  %v2547 = vpop.xlane.xlu0 %2546
  %2548 = vadd.xlane.f32.xlu0 %v2428
  %v2549 = vpop.xlane.xlu0 %2548
  %2550 = vadd.xlane.f32.xlu0 %v2429
  %v2551 = vpop.xlane.xlu0 %2550
  %2552 = vadd.xlane.f32.xlu0 %v2430
  %v2553 = vpop.xlane.xlu0 %2552
  %2554 = vadd.xlane.f32.xlu0 %v2431
  %v2555 = vpop.xlane.xlu0 %2554
  %2556 = vadd.xlane.f32.xlu0 %v2432
  %v2557 = vpop.xlane.xlu0 %2556
  %2558 = vadd.xlane.f32.xlu0 %v2433
  %v2559 = vpop.xlane.xlu0 %2558
  %2560 = vadd.xlane.f32.xlu0 %v2434
  %v2561 = vpop.xlane.xlu0 %2560
  %2562 = vadd.xlane.f32.xlu0 %v2435
  %v2563 = vpop.xlane.xlu0 %2562
  %v2564 = vmul.f32 %v2437, 0.015625
  %v2565 = vmul.f32 %v2439, 0.015625
  %v2566 = vmul.f32 %v2441, 0.015625
  %v2567 = vmul.f32 %v2443, 0.015625
  %v2568 = vmul.f32 %v2445, 0.015625
  %v2569 = vmul.f32 %v2447, 0.015625
  %v2570 = vmul.f32 %v2449, 0.015625
  %v2571 = vmul.f32 %v2451, 0.015625
  %v2572 = vmul.f32 %v2453, 0.015625
  %v2573 = vmul.f32 %v2455, 0.015625
  %v2574 = vmul.f32 %v2457, 0.015625
  %v2575 = vmul.f32 %v2459, 0.015625
  %v2576 = vmul.f32 %v2461, 0.015625
  %v2577 = vmul.f32 %v2463, 0.015625
  %v2578 = vmul.f32 %v2465, 0.015625
  %v2579 = vmul.f32 %v2467, 0.015625
  %v2580 = vmul.f32 %v2469, 0.015625
  %v2581 = vmul.f32 %v2471, 0.015625
  %v2582 = vmul.f32 %v2473, 0.015625
  %v2583 = vmul.f32 %v2475, 0.015625
  %v2584 = vmul.f32 %v2477, 0.015625
  %v2585 = vmul.f32 %v2479, 0.015625
  %v2586 = vmul.f32 %v2481, 0.015625
  %v2587 = vmul.f32 %v2483, 0.015625
  %v2588 = vmul.f32 %v2485, 0.015625
  %v2589 = vmul.f32 %v2487, 0.015625
  %v2590 = vmul.f32 %v2489, 0.015625
  %v2591 = vmul.f32 %v2491, 0.015625
  %v2592 = vmul.f32 %v2493, 0.015625
  %v2593 = vmul.f32 %v2495, 0.015625
  %v2594 = vmul.f32 %v2497, 0.015625
  %v2595 = vmul.f32 %v2499, 0.015625
  %v2596 = vmul.f32 %v2501, 0.015625
  %v2597 = vmul.f32 %v2503, 0.015625
  %v2598 = vmul.f32 %v2505, 0.015625
  %v2599 = vmul.f32 %v2507, 0.015625
  %v2600 = vmul.f32 %v2509, 0.015625
  %v2601 = vmul.f32 %v2511, 0.015625
  %v2602 = vmul.f32 %v2513, 0.015625
  %v2603 = vmul.f32 %v2515, 0.015625
  %v2604 = vmul.f32 %v2517, 0.015625
  %v2605 = vmul.f32 %v2519, 0.015625
  %v2606 = vmul.f32 %v2521, 0.015625
  %v2607 = vmul.f32 %v2523, 0.015625
  %v2608 = vmul.f32 %v2525, 0.015625
  %v2609 = vmul.f32 %v2527, 0.015625
  %v2610 = vmul.f32 %v2529, 0.015625
  %v2611 = vmul.f32 %v2531, 0.015625
  %v2612 = vmul.f32 %v2533, 0.015625
  %v2613 = vmul.f32 %v2535, 0.015625
  %v2614 = vmul.f32 %v2537, 0.015625
  %v2615 = vmul.f32 %v2539, 0.015625
  %v2616 = vmul.f32 %v2541, 0.015625
  %v2617 = vmul.f32 %v2543, 0.015625
  %v2618 = vmul.f32 %v2545, 0.015625
  %v2619 = vmul.f32 %v2547, 0.015625
  %v2620 = vmul.f32 %v2549, 0.015625
  %v2621 = vmul.f32 %v2551, 0.015625
  %v2622 = vmul.f32 %v2553, 0.015625
  %v2623 = vmul.f32 %v2555, 0.015625
  %v2624 = vmul.f32 %v2557, 0.015625
  %v2625 = vmul.f32 %v2559, 0.015625
  %v2626 = vmul.f32 %v2561, 0.015625
  %v2627 = vmul.f32 %v2563, 0.015625
  %v2628 = vmul.f32 %v2308, %v2308
  %v2629 = vmul.f32 %v2309, %v2309
  %v2630 = vmul.f32 %v2310, %v2310
  %v2631 = vmul.f32 %v2311, %v2311
  %v2632 = vmul.f32 %v2312, %v2312
  %v2633 = vmul.f32 %v2313, %v2313
  %v2634 = vmul.f32 %v2314, %v2314
  %v2635 = vmul.f32 %v2315, %v2315
  %v2636 = vmul.f32 %v2316, %v2316
  %v2637 = vmul.f32 %v2317, %v2317
  %v2638 = vmul.f32 %v2318, %v2318
  %v2639 = vmul.f32 %v2319, %v2319
  %v2640 = vmul.f32 %v2320, %v2320
  %v2641 = vmul.f32 %v2321, %v2321
  %v2642 = vmul.f32 %v2322, %v2322
  %v2643 = vmul.f32 %v2323, %v2323
  %v2644 = vmul.f32 %v2324, %v2324
  %v2645 = vmul.f32 %v2325, %v2325
  %v2646 = vmul.f32 %v2326, %v2326
  %v2647 = vmul.f32 %v2327, %v2327
  %v2648 = vmul.f32 %v2328, %v2328
  %v2649 = vmul.f32 %v2329, %v2329
  %v2650 = vmul.f32 %v2330, %v2330
  %v2651 = vmul.f32 %v2331, %v2331
  %v2652 = vmul.f32 %v2332, %v2332
  %v2653 = vmul.f32 %v2333, %v2333
  %v2654 = vmul.f32 %v2334, %v2334
  %v2655 = vmul.f32 %v2335, %v2335
  %v2656 = vmul.f32 %v2336, %v2336
  %v2657 = vmul.f32 %v2337, %v2337
  %v2658 = vmul.f32 %v2338, %v2338
  %v2659 = vmul.f32 %v2339, %v2339
  %v2660 = vmul.f32 %v2340, %v2340
  %v2661 = vmul.f32 %v2341, %v2341
  %v2662 = vmul.f32 %v2342, %v2342
  %v2663 = vmul.f32 %v2343, %v2343
  %v2664 = vmul.f32 %v2344, %v2344
  %v2665 = vmul.f32 %v2345, %v2345
  %v2666 = vmul.f32 %v2346, %v2346
  %v2667 = vmul.f32 %v2347, %v2347
  %v2668 = vmul.f32 %v2348, %v2348
  %v2669 = vmul.f32 %v2349, %v2349
  %v2670 = vmul.f32 %v2350, %v2350
  %v2671 = vmul.f32 %v2351, %v2351
  %v2672 = vmul.f32 %v2352, %v2352
  %v2673 = vmul.f32 %v2353, %v2353
  %v2674 = vmul.f32 %v2354, %v2354
  %v2675 = vmul.f32 %v2355, %v2355
  %v2676 = vmul.f32 %v2356, %v2356
  %v2677 = vmul.f32 %v2357, %v2357
  %v2678 = vmul.f32 %v2358, %v2358
  %v2679 = vmul.f32 %v2359, %v2359
  %v2680 = vmul.f32 %v2360, %v2360
  %v2681 = vmul.f32 %v2361, %v2361
  %v2682 = vmul.f32 %v2362, %v2362
  %v2683 = vmul.f32 %v2363, %v2363
  %v2684 = vmul.f32 %v2364, %v2364
  %v2685 = vmul.f32 %v2365, %v2365
  %v2686 = vmul.f32 %v2366, %v2366
  %v2687 = vmul.f32 %v2367, %v2367
  %v2688 = vmul.f32 %v2368, %v2368
  %v2689 = vmul.f32 %v2369, %v2369
  %v2690 = vmul.f32 %v2370, %v2370
  %v2691 = vmul.f32 %v2371, %v2371
  %v2692 = vsub.f32 %v2564, %v2628
  %v2693 = vsub.f32 %v2565, %v2629
  %v2694 = vsub.f32 %v2566, %v2630
  %v2695 = vsub.f32 %v2567, %v2631
  %v2696 = vsub.f32 %v2568, %v2632
  %v2697 = vsub.f32 %v2569, %v2633
  %v2698 = vsub.f32 %v2570, %v2634
  %v2699 = vsub.f32 %v2571, %v2635
  %v2700 = vsub.f32 %v2572, %v2636
  %v2701 = vsub.f32 %v2573, %v2637
  %v2702 = vsub.f32 %v2574, %v2638
  %v2703 = vsub.f32 %v2575, %v2639
  %v2704 = vsub.f32 %v2576, %v2640
  %v2705 = vsub.f32 %v2577, %v2641
  %v2706 = vsub.f32 %v2578, %v2642
  %v2707 = vsub.f32 %v2579, %v2643
  %v2708 = vsub.f32 %v2580, %v2644
  %v2709 = vsub.f32 %v2581, %v2645
  %v2710 = vsub.f32 %v2582, %v2646
  %v2711 = vsub.f32 %v2583, %v2647
  %v2712 = vsub.f32 %v2584, %v2648
  %v2713 = vsub.f32 %v2585, %v2649
  %v2714 = vsub.f32 %v2586, %v2650
  %v2715 = vsub.f32 %v2587, %v2651
  %v2716 = vsub.f32 %v2588, %v2652
  %v2717 = vsub.f32 %v2589, %v2653
  %v2718 = vsub.f32 %v2590, %v2654
  %v2719 = vsub.f32 %v2591, %v2655
  %v2720 = vsub.f32 %v2592, %v2656
  %v2721 = vsub.f32 %v2593, %v2657
  %v2722 = vsub.f32 %v2594, %v2658
  %v2723 = vsub.f32 %v2595, %v2659
  %v2724 = vsub.f32 %v2596, %v2660
  %v2725 = vsub.f32 %v2597, %v2661
  %v2726 = vsub.f32 %v2598, %v2662
  %v2727 = vsub.f32 %v2599, %v2663
  %v2728 = vsub.f32 %v2600, %v2664
  %v2729 = vsub.f32 %v2601, %v2665
  %v2730 = vsub.f32 %v2602, %v2666
  %v2731 = vsub.f32 %v2603, %v2667
  %v2732 = vsub.f32 %v2604, %v2668
  %v2733 = vsub.f32 %v2605, %v2669
  %v2734 = vsub.f32 %v2606, %v2670
  %v2735 = vsub.f32 %v2607, %v2671
  %v2736 = vsub.f32 %v2608, %v2672
  %v2737 = vsub.f32 %v2609, %v2673
  %v2738 = vsub.f32 %v2610, %v2674
  %v2739 = vsub.f32 %v2611, %v2675
  %v2740 = vsub.f32 %v2612, %v2676
  %v2741 = vsub.f32 %v2613, %v2677
  %v2742 = vsub.f32 %v2614, %v2678
  %v2743 = vsub.f32 %v2615, %v2679
  %v2744 = vsub.f32 %v2616, %v2680
  %v2745 = vsub.f32 %v2617, %v2681
  %v2746 = vsub.f32 %v2618, %v2682
  %v2747 = vsub.f32 %v2619, %v2683
  %v2748 = vsub.f32 %v2620, %v2684
  %v2749 = vsub.f32 %v2621, %v2685
  %v2750 = vsub.f32 %v2622, %v2686
  %v2751 = vsub.f32 %v2623, %v2687
  %v2752 = vsub.f32 %v2624, %v2688
  %v2753 = vsub.f32 %v2625, %v2689
  %v2754 = vsub.f32 %v2626, %v2690
  %v2755 = vsub.f32 %v2627, %v2691
  %v2756 = vmax.f32 %v2692, 0.0
  %v2757 = vmax.f32 %v2693, 0.0
  %v2758 = vmax.f32 %v2694, 0.0
  %v2759 = vmax.f32 %v2695, 0.0
  %v2760 = vmax.f32 %v2696, 0.0
  %v2761 = vmax.f32 %v2697, 0.0
  %v2762 = vmax.f32 %v2698, 0.0
  %v2763 = vmax.f32 %v2699, 0.0
  %v2764 = vmax.f32 %v2700, 0.0
  %v2765 = vmax.f32 %v2701, 0.0
  %v2766 = vmax.f32 %v2702, 0.0
  %v2767 = vmax.f32 %v2703, 0.0
  %v2768 = vmax.f32 %v2704, 0.0
  %v2769 = vmax.f32 %v2705, 0.0
  %v2770 = vmax.f32 %v2706, 0.0
  %v2771 = vmax.f32 %v2707, 0.0
  %v2772 = vmax.f32 %v2708, 0.0
  %v2773 = vmax.f32 %v2709, 0.0
  %v2774 = vmax.f32 %v2710, 0.0
  %v2775 = vmax.f32 %v2711, 0.0
  %v2776 = vmax.f32 %v2712, 0.0
  %v2777 = vmax.f32 %v2713, 0.0
  %v2778 = vmax.f32 %v2714, 0.0
  %v2779 = vmax.f32 %v2715, 0.0
  %v2780 = vmax.f32 %v2716, 0.0
  %v2781 = vmax.f32 %v2717, 0.0
  %v2782 = vmax.f32 %v2718, 0.0
  %v2783 = vmax.f32 %v2719, 0.0
  %v2784 = vmax.f32 %v2720, 0.0
  %v2785 = vmax.f32 %v2721, 0.0
  %v2786 = vmax.f32 %v2722, 0.0
  %v2787 = vmax.f32 %v2723, 0.0
  %v2788 = vmax.f32 %v2724, 0.0
  %v2789 = vmax.f32 %v2725, 0.0
  %v2790 = vmax.f32 %v2726, 0.0
  %v2791 = vmax.f32 %v2727, 0.0
  %v2792 = vmax.f32 %v2728, 0.0
  %v2793 = vmax.f32 %v2729, 0.0
  %v2794 = vmax.f32 %v2730, 0.0
  %v2795 = vmax.f32 %v2731, 0.0
  %v2796 = vmax.f32 %v2732, 0.0
  %v2797 = vmax.f32 %v2733, 0.0
  %v2798 = vmax.f32 %v2734, 0.0
  %v2799 = vmax.f32 %v2735, 0.0
  %v2800 = vmax.f32 %v2736, 0.0
  %v2801 = vmax.f32 %v2737, 0.0
  %v2802 = vmax.f32 %v2738, 0.0
  %v2803 = vmax.f32 %v2739, 0.0
  %v2804 = vmax.f32 %v2740, 0.0
  %v2805 = vmax.f32 %v2741, 0.0
  %v2806 = vmax.f32 %v2742, 0.0
  %v2807 = vmax.f32 %v2743, 0.0
  %v2808 = vmax.f32 %v2744, 0.0
  %v2809 = vmax.f32 %v2745, 0.0
  %v2810 = vmax.f32 %v2746, 0.0
  %v2811 = vmax.f32 %v2747, 0.0
  %v2812 = vmax.f32 %v2748, 0.0
  %v2813 = vmax.f32 %v2749, 0.0
  %v2814 = vmax.f32 %v2750, 0.0
  %v2815 = vmax.f32 %v2751, 0.0
  %v2816 = vmax.f32 %v2752, 0.0
  %v2817 = vmax.f32 %v2753, 0.0
  %v2818 = vmax.f32 %v2754, 0.0
  %v2819 = vmax.f32 %v2755, 0.0
  %v2820 = vsub.f32 %v1924, %v2308
  %v2821 = vsub.f32 %v1927, %v2309
  %v2822 = vsub.f32 %v1932, %v2310
  %v2823 = vsub.f32 %v1935, %v2311
  %v2824 = vsub.f32 %v1940, %v2312
  %v2825 = vsub.f32 %v1943, %v2313
  %v2826 = vsub.f32 %v1948, %v2314
  %v2827 = vsub.f32 %v1951, %v2315
  %v2828 = vsub.f32 %v1956, %v2316
  %v2829 = vsub.f32 %v1959, %v2317
  %v2830 = vsub.f32 %v1964, %v2318
  %v2831 = vsub.f32 %v1967, %v2319
  %v2832 = vsub.f32 %v1972, %v2320
  %v2833 = vsub.f32 %v1975, %v2321
  %v2834 = vsub.f32 %v1980, %v2322
  %v2835 = vsub.f32 %v1983, %v2323
  %v2836 = vsub.f32 %v1988, %v2324
  %v2837 = vsub.f32 %v1991, %v2325
  %v2838 = vsub.f32 %v1996, %v2326
  %v2839 = vsub.f32 %v1999, %v2327
  %v2840 = vsub.f32 %v2004, %v2328
  %v2841 = vsub.f32 %v2007, %v2329
  %v2842 = vsub.f32 %v2012, %v2330
  %v2843 = vsub.f32 %v2015, %v2331
  %v2844 = vsub.f32 %v2020, %v2332
  %v2845 = vsub.f32 %v2023, %v2333
  %v2846 = vsub.f32 %v2028, %v2334
  %v2847 = vsub.f32 %v2031, %v2335
  %v2848 = vsub.f32 %v2036, %v2336
  %v2849 = vsub.f32 %v2039, %v2337
  %v2850 = vsub.f32 %v2044, %v2338
  %v2851 = vsub.f32 %v2047, %v2339
  %v2852 = vsub.f32 %v2052, %v2340
  %v2853 = vsub.f32 %v2055, %v2341
  %v2854 = vsub.f32 %v2060, %v2342
  %v2855 = vsub.f32 %v2063, %v2343
  %v2856 = vsub.f32 %v2068, %v2344
  %v2857 = vsub.f32 %v2071, %v2345
  %v2858 = vsub.f32 %v2076, %v2346
  %v2859 = vsub.f32 %v2079, %v2347
  %v2860 = vsub.f32 %v2084, %v2348
  %v2861 = vsub.f32 %v2087, %v2349
  %v2862 = vsub.f32 %v2092, %v2350
  %v2863 = vsub.f32 %v2095, %v2351
  %v2864 = vsub.f32 %v2100, %v2352
  %v2865 = vsub.f32 %v2103, %v2353
  %v2866 = vsub.f32 %v2108, %v2354
  %v2867 = vsub.f32 %v2111, %v2355
  %v2868 = vsub.f32 %v2116, %v2356
  %v2869 = vsub.f32 %v2119, %v2357
  %v2870 = vsub.f32 %v2124, %v2358
  %v2871 = vsub.f32 %v2127, %v2359
  %v2872 = vsub.f32 %v2132, %v2360
  %v2873 = vsub.f32 %v2135, %v2361
  %v2874 = vsub.f32 %v2140, %v2362
  %v2875 = vsub.f32 %v2143, %v2363
  %v2876 = vsub.f32 %v2148, %v2364
  %v2877 = vsub.f32 %v2151, %v2365
  %v2878 = vsub.f32 %v2156, %v2366
  %v2879 = vsub.f32 %v2159, %v2367
  %v2880 = vsub.f32 %v2164, %v2368
  %v2881 = vsub.f32 %v2167, %v2369
  %v2882 = vsub.f32 %v2172, %v2370
  %v2883 = vsub.f32 %v2175, %v2371
  %v2884 = vadd.f32 %v2756, 1e-05
  %v2885 = vadd.f32 %v2757, 1e-05
  %v2886 = vadd.f32 %v2758, 1e-05
  %v2887 = vadd.f32 %v2759, 1e-05
  %v2888 = vadd.f32 %v2760, 1e-05
  %v2889 = vadd.f32 %v2761, 1e-05
  %v2890 = vadd.f32 %v2762, 1e-05
  %v2891 = vadd.f32 %v2763, 1e-05
  %v2892 = vadd.f32 %v2764, 1e-05
  %v2893 = vadd.f32 %v2765, 1e-05
  %v2894 = vadd.f32 %v2766, 1e-05
  %v2895 = vadd.f32 %v2767, 1e-05
  %v2896 = vadd.f32 %v2768, 1e-05
  %v2897 = vadd.f32 %v2769, 1e-05
  %v2898 = vadd.f32 %v2770, 1e-05
  %v2899 = vadd.f32 %v2771, 1e-05
  %v2900 = vadd.f32 %v2772, 1e-05
  %v2901 = vadd.f32 %v2773, 1e-05
  %v2902 = vadd.f32 %v2774, 1e-05
  %v2903 = vadd.f32 %v2775, 1e-05
  %v2904 = vadd.f32 %v2776, 1e-05
  %v2905 = vadd.f32 %v2777, 1e-05
  %v2906 = vadd.f32 %v2778, 1e-05
  %v2907 = vadd.f32 %v2779, 1e-05
  %v2908 = vadd.f32 %v2780, 1e-05
  %v2909 = vadd.f32 %v2781, 1e-05
  %v2910 = vadd.f32 %v2782, 1e-05
  %v2911 = vadd.f32 %v2783, 1e-05
  %v2912 = vadd.f32 %v2784, 1e-05
  %v2913 = vadd.f32 %v2785, 1e-05
  %v2914 = vadd.f32 %v2786, 1e-05
  %v2915 = vadd.f32 %v2787, 1e-05
  %v2916 = vadd.f32 %v2788, 1e-05
  %v2917 = vadd.f32 %v2789, 1e-05
  %v2918 = vadd.f32 %v2790, 1e-05
  %v2919 = vadd.f32 %v2791, 1e-05
  %v2920 = vadd.f32 %v2792, 1e-05
  %v2921 = vadd.f32 %v2793, 1e-05
  %v2922 = vadd.f32 %v2794, 1e-05
  %v2923 = vadd.f32 %v2795, 1e-05
  %v2924 = vadd.f32 %v2796, 1e-05
  %v2925 = vadd.f32 %v2797, 1e-05
  %v2926 = vadd.f32 %v2798, 1e-05
  %v2927 = vadd.f32 %v2799, 1e-05
  %v2928 = vadd.f32 %v2800, 1e-05
  %v2929 = vadd.f32 %v2801, 1e-05
  %v2930 = vadd.f32 %v2802, 1e-05
  %v2931 = vadd.f32 %v2803, 1e-05
  %v2932 = vadd.f32 %v2804, 1e-05
  %v2933 = vadd.f32 %v2805, 1e-05
  %v2934 = vadd.f32 %v2806, 1e-05
  %v2935 = vadd.f32 %v2807, 1e-05
  %v2936 = vadd.f32 %v2808, 1e-05
  %v2937 = vadd.f32 %v2809, 1e-05
  %v2938 = vadd.f32 %v2810, 1e-05
  %v2939 = vadd.f32 %v2811, 1e-05
  %v2940 = vadd.f32 %v2812, 1e-05
  %v2941 = vadd.f32 %v2813, 1e-05
  %v2942 = vadd.f32 %v2814, 1e-05
  %v2943 = vadd.f32 %v2815, 1e-05
  %v2944 = vadd.f32 %v2816, 1e-05
  %v2945 = vadd.f32 %v2817, 1e-05
  %v2946 = vadd.f32 %v2818, 1e-05
  %v2947 = vadd.f32 %v2819, 1e-05
  %v2948 = vrsqrt.pop %v2884
  %v2949 = vrsqrt.pop %v2885
  %v2950 = vrsqrt.pop %v2886
  %v2951 = vrsqrt.pop %v2887
  %v2952 = vrsqrt.pop %v2888
  %v2953 = vrsqrt.pop %v2889
  %v2954 = vrsqrt.pop %v2890
  %v2955 = vrsqrt.pop %v2891
  %v2956 = vrsqrt.pop %v2892
  %v2957 = vrsqrt.pop %v2893
  %v2958 = vrsqrt.pop %v2894
  %v2959 = vrsqrt.pop %v2895
  %v2960 = vrsqrt.pop %v2896
  %v2961 = vrsqrt.pop %v2897
  %v2962 = vrsqrt.pop %v2898
  %v2963 = vrsqrt.pop %v2899
  %v2964 = vrsqrt.pop %v2900
  %v2965 = vrsqrt.pop %v2901
  %v2966 = vrsqrt.pop %v2902
  %v2967 = vrsqrt.pop %v2903
  %v2968 = vrsqrt.pop %v2904
  %v2969 = vrsqrt.pop %v2905
  %v2970 = vrsqrt.pop %v2906
  %v2971 = vrsqrt.pop %v2907
  %v2972 = vrsqrt.pop %v2908
  %v2973 = vrsqrt.pop %v2909
  %v2974 = vrsqrt.pop %v2910
  %v2975 = vrsqrt.pop %v2911
  %v2976 = vrsqrt.pop %v2912
  %v2977 = vrsqrt.pop %v2913
  %v2978 = vrsqrt.pop %v2914
  %v2979 = vrsqrt.pop %v2915
  %v2980 = vrsqrt.pop %v2916
  %v2981 = vrsqrt.pop %v2917
  %v2982 = vrsqrt.pop %v2918
  %v2983 = vrsqrt.pop %v2919
  %v2984 = vrsqrt.pop %v2920
  %v2985 = vrsqrt.pop %v2921
  %v2986 = vrsqrt.pop %v2922
  %v2987 = vrsqrt.pop %v2923
  %v2988 = vrsqrt.pop %v2924
  %v2989 = vrsqrt.pop %v2925
  %v2990 = vrsqrt.pop %v2926
  %v2991 = vrsqrt.pop %v2927
  %v2992 = vrsqrt.pop %v2928
  %v2993 = vrsqrt.pop %v2929
  %v2994 = vrsqrt.pop %v2930
  %v2995 = vrsqrt.pop %v2931
  %v2996 = vrsqrt.pop %v2932
  %v2997 = vrsqrt.pop %v2933
  %v2998 = vrsqrt.pop %v2934
  %v2999 = vrsqrt.pop %v2935
  %v3000 = vrsqrt.pop %v2936
  %v3001 = vrsqrt.pop %v2937
  %v3002 = vrsqrt.pop %v2938
  %v3003 = vrsqrt.pop %v2939
  %v3004 = vrsqrt.pop %v2940
  %v3005 = vrsqrt.pop %v2941
  %v3006 = vrsqrt.pop %v2942
  %v3007 = vrsqrt.pop %v2943
  %v3008 = vrsqrt.pop %v2944
  %v3009 = vrsqrt.pop %v2945
  %v3010 = vrsqrt.pop %v2946
  %v3011 = vrsqrt.pop %v2947
  %v3012 = vmul.f32 %v2820, %v2948
  %v3013 = vmul.f32 %v2821, %v2949
  %v3014 = vmul.f32 %v2822, %v2950
  %v3015 = vmul.f32 %v2823, %v2951
  %v3016 = vmul.f32 %v2824, %v2952
  %v3017 = vmul.f32 %v2825, %v2953
  %v3018 = vmul.f32 %v2826, %v2954
  %v3019 = vmul.f32 %v2827, %v2955
  %v3020 = vmul.f32 %v2828, %v2956
  %v3021 = vmul.f32 %v2829, %v2957
  %v3022 = vmul.f32 %v2830, %v2958
  %v3023 = vmul.f32 %v2831, %v2959
  %v3024 = vmul.f32 %v2832, %v2960
  %v3025 = vmul.f32 %v2833, %v2961
  %v3026 = vmul.f32 %v2834, %v2962
  %v3027 = vmul.f32 %v2835, %v2963
  %v3028 = vmul.f32 %v2836, %v2964
  %v3029 = vmul.f32 %v2837, %v2965
  %v3030 = vmul.f32 %v2838, %v2966
  %v3031 = vmul.f32 %v2839, %v2967
  %v3032 = vmul.f32 %v2840, %v2968
  %v3033 = vmul.f32 %v2841, %v2969
  %v3034 = vmul.f32 %v2842, %v2970
  %v3035 = vmul.f32 %v2843, %v2971
  %v3036 = vmul.f32 %v2844, %v2972
  %v3037 = vmul.f32 %v2845, %v2973
  %v3038 = vmul.f32 %v2846, %v2974
  %v3039 = vmul.f32 %v2847, %v2975
  %v3040 = vmul.f32 %v2848, %v2976
  %v3041 = vmul.f32 %v2849, %v2977
  %v3042 = vmul.f32 %v2850, %v2978
  %v3043 = vmul.f32 %v2851, %v2979
  %v3044 = vmul.f32 %v2852, %v2980
  %v3045 = vmul.f32 %v2853, %v2981
  %v3046 = vmul.f32 %v2854, %v2982
  %v3047 = vmul.f32 %v2855, %v2983
  %v3048 = vmul.f32 %v2856, %v2984
  %v3049 = vmul.f32 %v2857, %v2985
  %v3050 = vmul.f32 %v2858, %v2986
  %v3051 = vmul.f32 %v2859, %v2987
  %v3052 = vmul.f32 %v2860, %v2988
  %v3053 = vmul.f32 %v2861, %v2989
  %v3054 = vmul.f32 %v2862, %v2990
  %v3055 = vmul.f32 %v2863, %v2991
  %v3056 = vmul.f32 %v2864, %v2992
  %v3057 = vmul.f32 %v2865, %v2993
  %v3058 = vmul.f32 %v2866, %v2994
  %v3059 = vmul.f32 %v2867, %v2995
  %v3060 = vmul.f32 %v2868, %v2996
  %v3061 = vmul.f32 %v2869, %v2997
  %v3062 = vmul.f32 %v2870, %v2998
  %v3063 = vmul.f32 %v2871, %v2999
  %v3064 = vmul.f32 %v2872, %v3000
  %v3065 = vmul.f32 %v2873, %v3001
  %v3066 = vmul.f32 %v2874, %v3002
  %v3067 = vmul.f32 %v2875, %v3003
  %v3068 = vmul.f32 %v2876, %v3004
  %v3069 = vmul.f32 %v2877, %v3005
  %v3070 = vmul.f32 %v2878, %v3006
  %v3071 = vmul.f32 %v2879, %v3007
  %v3072 = vmul.f32 %v2880, %v3008
  %v3073 = vmul.f32 %v2881, %v3009
  %v3074 = vmul.f32 %v2882, %v3010
  %v3075 = vmul.f32 %v2883, %v3011
  %v3077 = vlaneseq
  %v3078 = vshrl.u32 %v3077, 7
  %v3079 = vsub.s32 0, %v3078
  %v3080 = vrot.slane %v2178, %v3079
  %v3082 = vmul.f32 %v3012, %v3080
  %v3083 = vmul.f32 %v3013, %v3080
  %v3084 = vmul.f32 %v3014, %v3080
  %v3085 = vmul.f32 %v3015, %v3080
  %v3086 = vmul.f32 %v3016, %v3080
  %v3087 = vmul.f32 %v3017, %v3080
  %v3088 = vmul.f32 %v3018, %v3080
  %v3089 = vmul.f32 %v3019, %v3080
  %v3090 = vmul.f32 %v3020, %v3080
  %v3091 = vmul.f32 %v3021, %v3080
  %v3092 = vmul.f32 %v3022, %v3080
  %v3093 = vmul.f32 %v3023, %v3080
  %v3094 = vmul.f32 %v3024, %v3080
  %v3095 = vmul.f32 %v3025, %v3080
  %v3096 = vmul.f32 %v3026, %v3080
  %v3097 = vmul.f32 %v3027, %v3080
  %v3098 = vmul.f32 %v3028, %v3080
  %v3099 = vmul.f32 %v3029, %v3080
  %v3100 = vmul.f32 %v3030, %v3080
  %v3101 = vmul.f32 %v3031, %v3080
  %v3102 = vmul.f32 %v3032, %v3080
  %v3103 = vmul.f32 %v3033, %v3080
  %v3104 = vmul.f32 %v3034, %v3080
  %v3105 = vmul.f32 %v3035, %v3080
  %v3106 = vmul.f32 %v3036, %v3080
  %v3107 = vmul.f32 %v3037, %v3080
  %v3108 = vmul.f32 %v3038, %v3080
  %v3109 = vmul.f32 %v3039, %v3080
  %v3110 = vmul.f32 %v3040, %v3080
  %v3111 = vmul.f32 %v3041, %v3080
  %v3112 = vmul.f32 %v3042, %v3080
  %v3113 = vmul.f32 %v3043, %v3080
  %v3114 = vmul.f32 %v3044, %v3080
  %v3115 = vmul.f32 %v3045, %v3080
  %v3116 = vmul.f32 %v3046, %v3080
  %v3117 = vmul.f32 %v3047, %v3080
  %v3118 = vmul.f32 %v3048, %v3080
  %v3119 = vmul.f32 %v3049, %v3080
  %v3120 = vmul.f32 %v3050, %v3080
  %v3121 = vmul.f32 %v3051, %v3080
  %v3122 = vmul.f32 %v3052, %v3080
  %v3123 = vmul.f32 %v3053, %v3080
  %v3124 = vmul.f32 %v3054, %v3080
  %v3125 = vmul.f32 %v3055, %v3080
  %v3126 = vmul.f32 %v3056, %v3080
  %v3127 = vmul.f32 %v3057, %v3080
  %v3128 = vmul.f32 %v3058, %v3080
  %v3129 = vmul.f32 %v3059, %v3080
  %v3130 = vmul.f32 %v3060, %v3080
  %v3131 = vmul.f32 %v3061, %v3080
  %v3132 = vmul.f32 %v3062, %v3080
  %v3133 = vmul.f32 %v3063, %v3080
  %v3134 = vmul.f32 %v3064, %v3080
  %v3135 = vmul.f32 %v3065, %v3080
  %v3136 = vmul.f32 %v3066, %v3080
  %v3137 = vmul.f32 %v3067, %v3080
  %v3138 = vmul.f32 %v3068, %v3080
  %v3139 = vmul.f32 %v3069, %v3080
  %v3140 = vmul.f32 %v3070, %v3080
  %v3141 = vmul.f32 %v3071, %v3080
  %v3142 = vmul.f32 %v3072, %v3080
  %v3143 = vmul.f32 %v3073, %v3080
  %v3144 = vmul.f32 %v3074, %v3080
  %v3145 = vmul.f32 %v3075, %v3080
  %v3147 = vlaneseq
  %v3148 = vshrl.u32 %v3147, 7
  %v3149 = vsub.s32 0, %v3148
  %v3150 = vrot.slane %v2179, %v3149
  %v3152 = vadd.f32 %v3082, %v3150
  %v3153 = vadd.f32 %v3083, %v3150
  %v3154 = vadd.f32 %v3084, %v3150
  %v3155 = vadd.f32 %v3085, %v3150
  %v3156 = vadd.f32 %v3086, %v3150
  %v3157 = vadd.f32 %v3087, %v3150
  %v3158 = vadd.f32 %v3088, %v3150
  %v3159 = vadd.f32 %v3089, %v3150
  %v3160 = vadd.f32 %v3090, %v3150
  %v3161 = vadd.f32 %v3091, %v3150
  %v3162 = vadd.f32 %v3092, %v3150
  %v3163 = vadd.f32 %v3093, %v3150
  %v3164 = vadd.f32 %v3094, %v3150
  %v3165 = vadd.f32 %v3095, %v3150
  %v3166 = vadd.f32 %v3096, %v3150
  %v3167 = vadd.f32 %v3097, %v3150
  %v3168 = vadd.f32 %v3098, %v3150
  %v3169 = vadd.f32 %v3099, %v3150
  %v3170 = vadd.f32 %v3100, %v3150
  %v3171 = vadd.f32 %v3101, %v3150
  %v3172 = vadd.f32 %v3102, %v3150
  %v3173 = vadd.f32 %v3103, %v3150
  %v3174 = vadd.f32 %v3104, %v3150
  %v3175 = vadd.f32 %v3105, %v3150
  %v3176 = vadd.f32 %v3106, %v3150
  %v3177 = vadd.f32 %v3107, %v3150
  %v3178 = vadd.f32 %v3108, %v3150
  %v3179 = vadd.f32 %v3109, %v3150
  %v3180 = vadd.f32 %v3110, %v3150
  %v3181 = vadd.f32 %v3111, %v3150
  %v3182 = vadd.f32 %v3112, %v3150
  %v3183 = vadd.f32 %v3113, %v3150
  %v3184 = vadd.f32 %v3114, %v3150
  %v3185 = vadd.f32 %v3115, %v3150
  %v3186 = vadd.f32 %v3116, %v3150
  %v3187 = vadd.f32 %v3117, %v3150
  %v3188 = vadd.f32 %v3118, %v3150
  %v3189 = vadd.f32 %v3119, %v3150
  %v3190 = vadd.f32 %v3120, %v3150
  %v3191 = vadd.f32 %v3121, %v3150
  %v3192 = vadd.f32 %v3122, %v3150
  %v3193 = vadd.f32 %v3123, %v3150
  %v3194 = vadd.f32 %v3124, %v3150
  %v3195 = vadd.f32 %v3125, %v3150
  %v3196 = vadd.f32 %v3126, %v3150
  %v3197 = vadd.f32 %v3127, %v3150
  %v3198 = vadd.f32 %v3128, %v3150
  %v3199 = vadd.f32 %v3129, %v3150
  %v3200 = vadd.f32 %v3130, %v3150
  %v3201 = vadd.f32 %v3131, %v3150
  %v3202 = vadd.f32 %v3132, %v3150
  %v3203 = vadd.f32 %v3133, %v3150
  %v3204 = vadd.f32 %v3134, %v3150
  %v3205 = vadd.f32 %v3135, %v3150
  %v3206 = vadd.f32 %v3136, %v3150
  %v3207 = vadd.f32 %v3137, %v3150
  %v3208 = vadd.f32 %v3138, %v3150
  %v3209 = vadd.f32 %v3139, %v3150
  %v3210 = vadd.f32 %v3140, %v3150
  %v3211 = vadd.f32 %v3141, %v3150
  %v3212 = vadd.f32 %v3142, %v3150
  %v3213 = vadd.f32 %v3143, %v3150
  %v3214 = vadd.f32 %v3144, %v3150
  %v3215 = vadd.f32 %v3145, %v3150
  %v3216 = vmax.f32 %v3152, 0.0
  %v3217 = vmax.f32 %v3153, 0.0
  %v3218 = vmax.f32 %v3154, 0.0
  %v3219 = vmax.f32 %v3155, 0.0
  %v3220 = vmax.f32 %v3156, 0.0
  %v3221 = vmax.f32 %v3157, 0.0
  %v3222 = vmax.f32 %v3158, 0.0
  %v3223 = vmax.f32 %v3159, 0.0
  %v3224 = vmax.f32 %v3160, 0.0
  %v3225 = vmax.f32 %v3161, 0.0
  %v3226 = vmax.f32 %v3162, 0.0
  %v3227 = vmax.f32 %v3163, 0.0
  %v3228 = vmax.f32 %v3164, 0.0
  %v3229 = vmax.f32 %v3165, 0.0
  %v3230 = vmax.f32 %v3166, 0.0
  %v3231 = vmax.f32 %v3167, 0.0
  %v3232 = vmax.f32 %v3168, 0.0
  %v3233 = vmax.f32 %v3169, 0.0
  %v3234 = vmax.f32 %v3170, 0.0
  %v3235 = vmax.f32 %v3171, 0.0
  %v3236 = vmax.f32 %v3172, 0.0
  %v3237 = vmax.f32 %v3173, 0.0
  %v3238 = vmax.f32 %v3174, 0.0
  %v3239 = vmax.f32 %v3175, 0.0
  %v3240 = vmax.f32 %v3176, 0.0
  %v3241 = vmax.f32 %v3177, 0.0
  %v3242 = vmax.f32 %v3178, 0.0
  %v3243 = vmax.f32 %v3179, 0.0
  %v3244 = vmax.f32 %v3180, 0.0
  %v3245 = vmax.f32 %v3181, 0.0
  %v3246 = vmax.f32 %v3182, 0.0
  %v3247 = vmax.f32 %v3183, 0.0
  %v3248 = vmax.f32 %v3184, 0.0
  %v3249 = vmax.f32 %v3185, 0.0
  %v3250 = vmax.f32 %v3186, 0.0
  %v3251 = vmax.f32 %v3187, 0.0
  %v3252 = vmax.f32 %v3188, 0.0
  %v3253 = vmax.f32 %v3189, 0.0
  %v3254 = vmax.f32 %v3190, 0.0
  %v3255 = vmax.f32 %v3191, 0.0
  %v3256 = vmax.f32 %v3192, 0.0
  %v3257 = vmax.f32 %v3193, 0.0
  %v3258 = vmax.f32 %v3194, 0.0
  %v3259 = vmax.f32 %v3195, 0.0
  %v3260 = vmax.f32 %v3196, 0.0
  %v3261 = vmax.f32 %v3197, 0.0
  %v3262 = vmax.f32 %v3198, 0.0
  %v3263 = vmax.f32 %v3199, 0.0
  %v3264 = vmax.f32 %v3200, 0.0
  %v3265 = vmax.f32 %v3201, 0.0
  %v3266 = vmax.f32 %v3202, 0.0
  %v3267 = vmax.f32 %v3203, 0.0
  %v3268 = vmax.f32 %v3204, 0.0
  %v3269 = vmax.f32 %v3205, 0.0
  %v3270 = vmax.f32 %v3206, 0.0
  %v3271 = vmax.f32 %v3207, 0.0
  %v3272 = vmax.f32 %v3208, 0.0
  %v3273 = vmax.f32 %v3209, 0.0
  %v3274 = vmax.f32 %v3210, 0.0
  %v3275 = vmax.f32 %v3211, 0.0
  %v3276 = vmax.f32 %v3212, 0.0
  %v3277 = vmax.f32 %v3213, 0.0
  %v3278 = vmax.f32 %v3214, 0.0
  %v3279 = vmax.f32 %v3215, 0.0
  %v3280 = vpack.c.bf16 %v3217, %v3216
  %v3281 = vpack.c.bf16 %v3219, %v3218
  %v3282 = vpack.c.bf16 %v3221, %v3220
  %v3283 = vpack.c.bf16 %v3223, %v3222
  %v3284 = vpack.c.bf16 %v3225, %v3224
  %v3285 = vpack.c.bf16 %v3227, %v3226
  %v3286 = vpack.c.bf16 %v3229, %v3228
  %v3287 = vpack.c.bf16 %v3231, %v3230
  %v3288 = vpack.c.bf16 %v3233, %v3232
  %v3289 = vpack.c.bf16 %v3235, %v3234
  %v3290 = vpack.c.bf16 %v3237, %v3236
  %v3291 = vpack.c.bf16 %v3239, %v3238
  %v3292 = vpack.c.bf16 %v3241, %v3240
  %v3293 = vpack.c.bf16 %v3243, %v3242
  %v3294 = vpack.c.bf16 %v3245, %v3244
  %v3295 = vpack.c.bf16 %v3247, %v3246
  %v3296 = vpack.c.bf16 %v3249, %v3248
  %v3297 = vpack.c.bf16 %v3251, %v3250
  %v3298 = vpack.c.bf16 %v3253, %v3252
  %v3299 = vpack.c.bf16 %v3255, %v3254
  %v3300 = vpack.c.bf16 %v3257, %v3256
  %v3301 = vpack.c.bf16 %v3259, %v3258
  %v3302 = vpack.c.bf16 %v3261, %v3260
  %v3303 = vpack.c.bf16 %v3263, %v3262
  %v3304 = vpack.c.bf16 %v3265, %v3264
  %v3305 = vpack.c.bf16 %v3267, %v3266
  %v3306 = vpack.c.bf16 %v3269, %v3268
  %v3307 = vpack.c.bf16 %v3271, %v3270
  %v3308 = vpack.c.bf16 %v3273, %v3272
  %v3309 = vpack.c.bf16 %v3275, %v3274
  %v3310 = vpack.c.bf16 %v3277, %v3276
  %v3311 = vpack.c.bf16 %v3279, %v3278
  %v3312 = vld [vmem:[%s9] sm:$0xf]
  %v3313 = vld [vmem:[%s9 + $0x4] sm:$0xf]
  %v3314 = vld [vmem:[%s9 + $0x8] sm:$0xf]
  %v3315 = vld [vmem:[%s9 + $0xc] sm:$0xf]
  %v3316 = vld [vmem:[%s9 + $0x10] sm:$0xf]
  %v3317 = vld [vmem:[%s9 + $0x14] sm:$0xf]
  %v3318 = vld [vmem:[%s9 + $0x18] sm:$0xf]
  %v3319 = vld [vmem:[%s9 + $0x1c] sm:$0xf]
  %v3320 = vld [vmem:[%s9 + $0x20] sm:$0xf]
  %v3321 = vld [vmem:[%s9 + $0x24] sm:$0xf]
  %v3322 = vld [vmem:[%s9 + $0x28] sm:$0xf]
  %v3323 = vld [vmem:[%s9 + $0x2c] sm:$0xf]
  %v3324 = vld [vmem:[%s9 + $0x30] sm:$0xf]
  %v3325 = vld [vmem:[%s9 + $0x34] sm:$0xf]
  %v3326 = vld [vmem:[%s9 + $0x38] sm:$0xf]
  %v3327 = vld [vmem:[%s9 + $0x3c] sm:$0xf]
  %v3328 = vld [vmem:[%s10] sm:$0x1]
  %v3330 = vlaneseq
  %v3331 = vshrl.u32 %v3330, 7
  %v3332 = vsub.s32 0, %v3331
  %v3333 = vrot.slane %v3328, %v3332
  %v3351 = vunpack.c.l.b16 %v3312
  %v3352 = vunpack.c.l.b16 %v3313
  %v3353 = vunpack.c.l.b16 %v3314
  %v3354 = vunpack.c.l.b16 %v3315
  %v3355 = vunpack.c.l.b16 %v3316
  %v3356 = vunpack.c.l.b16 %v3317
  %v3357 = vunpack.c.l.b16 %v3318
  %v3358 = vunpack.c.l.b16 %v3319
  %v3359 = vunpack.c.l.b16 %v3320
  %v3360 = vunpack.c.l.b16 %v3321
  %v3361 = vunpack.c.l.b16 %v3322
  %v3362 = vunpack.c.l.b16 %v3323
  %v3363 = vunpack.c.l.b16 %v3324
  %v3364 = vunpack.c.l.b16 %v3325
  %v3365 = vunpack.c.l.b16 %v3326
  %v3366 = vunpack.c.l.b16 %v3327
  %v3367 = vpack.c.b16 %v3352, %v3351
  %v3368 = vpack.c.b16 %v3354, %v3353
  %v3369 = vpack.c.b16 %v3356, %v3355
  %v3370 = vpack.c.b16 %v3358, %v3357
  %v3371 = vpack.c.b16 %v3360, %v3359
  %v3372 = vpack.c.b16 %v3362, %v3361
  %v3373 = vpack.c.b16 %v3364, %v3363
  %v3374 = vpack.c.b16 %v3366, %v3365
  %3383 = vmatprep.subr.bf16.mxu0 0
  %3384 = vmatpush1.bf16.msra.mxu0 %v3374
  %3385 = vmatprep.subr.bf16.mxu0 0
  %3386 = vmatpush1.bf16.msra.mxu0 %v3373
  %3387 = vmatprep.subr.bf16.mxu0 0
  %3388 = vmatpush1.bf16.msra.mxu0 %v3372
  %3389 = vmatprep.subr.bf16.mxu0 0
  %3390 = vmatpush1.bf16.msra.mxu0 %v3371
  %3391 = vmatprep.subr.bf16.mxu0 0
  %3392 = vmatpush1.bf16.msra.mxu0 %v3370
  %3393 = vmatprep.subr.bf16.mxu0 0
  %3394 = vmatpush1.bf16.msra.mxu0 %v3369
  %3395 = vmatprep.subr.bf16.mxu0 0
  %3396 = vmatpush1.bf16.msra.mxu0 %v3368
  %3397 = vmatprep.subr.bf16.mxu0 0
  %3398 = vmatpush1.bf16.msra.mxu0 %v3367
  %3399 = vmatprep.subr.bf16.mxu0 0
  %3400 = vmatpush2.bf16.msra.mxu0 0
  %3401 = vmatprep.subr.bf16.mxu0 0
  %3402 = vmatpush2.bf16.msra.mxu0 0
  %3403 = vmatprep.subr.bf16.mxu0 0
  %3404 = vmatpush2.bf16.msra.mxu0 0
  %3405 = vmatprep.subr.bf16.mxu0 0
  %3406 = vmatpush2.bf16.msra.mxu0 0
  %3407 = vmatprep.subr.bf16.mxu0 0
  %3408 = vmatpush2.bf16.msra.mxu0 0
  %3409 = vmatprep.subr.bf16.mxu0 0
  %3410 = vmatpush2.bf16.msra.mxu0 0
  %3411 = vmatprep.subr.bf16.mxu0 0
  %3412 = vmatpush2.bf16.msra.mxu0 0
  %3413 = vmatprep.subr.bf16.mxu0 0
  %3414 = vmatpush2.bf16.msra.mxu0 0
  %3415 = vmatprep.mubr.bf16.mxu0 0
  %3416 = vmatmul.mubr.bf16.gmra.mxu0 %v3280
  %v3417 = vpop.f32.mrf.mxu0
  %v3418 = vadd.f32 %v3333, %v3417
  %v3419 = vpop.f32.mrf.mxu0
  %v3420 = vpop.f32.mrf.mxu0
  %v3421 = vadd.f32 %v3333, %v3420
  %v3422 = vpop.f32.mrf.mxu0
  %3423 = vmatprep.mubr.bf16.mxu0 0
  %3424 = vmatmul.mubr.bf16.gmra.mxu0 %v3281
  %v3425 = vpop.f32.mrf.mxu0
  %v3426 = vadd.f32 %v3333, %v3425
  %v3427 = vpop.f32.mrf.mxu0
  %v3428 = vpop.f32.mrf.mxu0
  %v3429 = vadd.f32 %v3333, %v3428
  %v3430 = vpop.f32.mrf.mxu0
  %3431 = vmatprep.mubr.bf16.mxu0 0
  %3432 = vmatmul.mubr.bf16.gmra.mxu0 %v3282
  %v3433 = vpop.f32.mrf.mxu0
  %v3434 = vadd.f32 %v3333, %v3433
  %v3435 = vpop.f32.mrf.mxu0
  %v3436 = vpop.f32.mrf.mxu0
  %v3437 = vadd.f32 %v3333, %v3436
  %v3438 = vpop.f32.mrf.mxu0
  %3439 = vmatprep.mubr.bf16.mxu0 0
  %3440 = vmatmul.mubr.bf16.gmra.mxu0 %v3283
  %v3441 = vpop.f32.mrf.mxu0
  %v3442 = vadd.f32 %v3333, %v3441
  %v3443 = vpop.f32.mrf.mxu0
  %v3444 = vpop.f32.mrf.mxu0
  %v3445 = vadd.f32 %v3333, %v3444
  %v3446 = vpop.f32.mrf.mxu0
  %3447 = vmatprep.mubr.bf16.mxu0 0
  %3448 = vmatmul.mubr.bf16.gmra.mxu0 %v3284
  %v3449 = vpop.f32.mrf.mxu0
  %v3450 = vadd.f32 %v3333, %v3449
  %v3451 = vpop.f32.mrf.mxu0
  %v3452 = vpop.f32.mrf.mxu0
  %v3453 = vadd.f32 %v3333, %v3452
  %v3454 = vpop.f32.mrf.mxu0
  %3455 = vmatprep.mubr.bf16.mxu0 0
  %3456 = vmatmul.mubr.bf16.gmra.mxu0 %v3285
  %v3457 = vpop.f32.mrf.mxu0
  %v3458 = vadd.f32 %v3333, %v3457
  %v3459 = vpop.f32.mrf.mxu0
  %v3460 = vpop.f32.mrf.mxu0
  %v3461 = vadd.f32 %v3333, %v3460
  %v3462 = vpop.f32.mrf.mxu0
  %3463 = vmatprep.mubr.bf16.mxu0 0
  %3464 = vmatmul.mubr.bf16.gmra.mxu0 %v3286
  %v3465 = vpop.f32.mrf.mxu0
  %v3466 = vadd.f32 %v3333, %v3465
  %v3467 = vpop.f32.mrf.mxu0
  %v3468 = vpop.f32.mrf.mxu0
  %v3469 = vadd.f32 %v3333, %v3468
  %v3470 = vpop.f32.mrf.mxu0
  %3471 = vmatprep.mubr.bf16.mxu0 0
  %3472 = vmatmul.mubr.bf16.gmra.mxu0 %v3287
  %v3473 = vpop.f32.mrf.mxu0
  %v3474 = vadd.f32 %v3333, %v3473
  %v3475 = vpop.f32.mrf.mxu0
  %v3476 = vpop.f32.mrf.mxu0
  %v3477 = vadd.f32 %v3333, %v3476
  %v3478 = vpop.f32.mrf.mxu0
  %3479 = vmatprep.mubr.bf16.mxu0 0
  %3480 = vmatmul.mubr.bf16.gmra.mxu0 %v3288
  %v3481 = vpop.f32.mrf.mxu0
  %v3482 = vadd.f32 %v3333, %v3481
  %v3483 = vpop.f32.mrf.mxu0
  %v3484 = vpop.f32.mrf.mxu0
  %v3485 = vadd.f32 %v3333, %v3484
  %v3486 = vpop.f32.mrf.mxu0
  %3487 = vmatprep.mubr.bf16.mxu0 0
  %3488 = vmatmul.mubr.bf16.gmra.mxu0 %v3289
  %v3489 = vpop.f32.mrf.mxu0
  %v3490 = vadd.f32 %v3333, %v3489
  %v3491 = vpop.f32.mrf.mxu0
  %v3492 = vpop.f32.mrf.mxu0
  %v3493 = vadd.f32 %v3333, %v3492
  %v3494 = vpop.f32.mrf.mxu0
  %3495 = vmatprep.mubr.bf16.mxu0 0
  %3496 = vmatmul.mubr.bf16.gmra.mxu0 %v3290
  %v3497 = vpop.f32.mrf.mxu0
  %v3498 = vadd.f32 %v3333, %v3497
  %v3499 = vpop.f32.mrf.mxu0
  %v3500 = vpop.f32.mrf.mxu0
  %v3501 = vadd.f32 %v3333, %v3500
  %v3502 = vpop.f32.mrf.mxu0
  %3503 = vmatprep.mubr.bf16.mxu0 0
  %3504 = vmatmul.mubr.bf16.gmra.mxu0 %v3291
  %v3505 = vpop.f32.mrf.mxu0
  %v3506 = vadd.f32 %v3333, %v3505
  %v3507 = vpop.f32.mrf.mxu0
  %v3508 = vpop.f32.mrf.mxu0
  %v3509 = vadd.f32 %v3333, %v3508
  %v3510 = vpop.f32.mrf.mxu0
  %3511 = vmatprep.mubr.bf16.mxu0 0
  %3512 = vmatmul.mubr.bf16.gmra.mxu0 %v3292
  %v3513 = vpop.f32.mrf.mxu0
  %v3514 = vadd.f32 %v3333, %v3513
  %v3515 = vpop.f32.mrf.mxu0
  %v3516 = vpop.f32.mrf.mxu0
  %v3517 = vadd.f32 %v3333, %v3516
  %v3518 = vpop.f32.mrf.mxu0
  %3519 = vmatprep.mubr.bf16.mxu0 0
  %3520 = vmatmul.mubr.bf16.gmra.mxu0 %v3293
  %v3521 = vpop.f32.mrf.mxu0
  %v3522 = vadd.f32 %v3333, %v3521
  %v3523 = vpop.f32.mrf.mxu0
  %v3524 = vpop.f32.mrf.mxu0
  %v3525 = vadd.f32 %v3333, %v3524
  %v3526 = vpop.f32.mrf.mxu0
  %3527 = vmatprep.mubr.bf16.mxu0 0
  %3528 = vmatmul.mubr.bf16.gmra.mxu0 %v3294
  %v3529 = vpop.f32.mrf.mxu0
  %v3530 = vadd.f32 %v3333, %v3529
  %v3531 = vpop.f32.mrf.mxu0
  %v3532 = vpop.f32.mrf.mxu0
  %v3533 = vadd.f32 %v3333, %v3532
  %v3534 = vpop.f32.mrf.mxu0
  %3535 = vmatprep.mubr.bf16.mxu0 0
  %3536 = vmatmul.mubr.bf16.gmra.mxu0 %v3295
  %v3537 = vpop.f32.mrf.mxu0
  %v3538 = vadd.f32 %v3333, %v3537
  %v3539 = vpop.f32.mrf.mxu0
  %v3540 = vpop.f32.mrf.mxu0
  %v3541 = vadd.f32 %v3333, %v3540
  %v3542 = vpop.f32.mrf.mxu0
  %3543 = vmatprep.mubr.bf16.mxu0 0
  %3544 = vmatmul.mubr.bf16.gmra.mxu0 %v3296
  %v3545 = vpop.f32.mrf.mxu0
  %v3546 = vadd.f32 %v3333, %v3545
  %v3547 = vpop.f32.mrf.mxu0
  %v3548 = vpop.f32.mrf.mxu0
  %v3549 = vadd.f32 %v3333, %v3548
  %v3550 = vpop.f32.mrf.mxu0
  %3551 = vmatprep.mubr.bf16.mxu0 0
  %3552 = vmatmul.mubr.bf16.gmra.mxu0 %v3297
  %v3553 = vpop.f32.mrf.mxu0
  %v3554 = vadd.f32 %v3333, %v3553
  %v3555 = vpop.f32.mrf.mxu0
  %v3556 = vpop.f32.mrf.mxu0
  %v3557 = vadd.f32 %v3333, %v3556
  %v3558 = vpop.f32.mrf.mxu0
  %3559 = vmatprep.mubr.bf16.mxu0 0
  %3560 = vmatmul.mubr.bf16.gmra.mxu0 %v3298
  %v3561 = vpop.f32.mrf.mxu0
  %v3562 = vadd.f32 %v3333, %v3561
  %v3563 = vpop.f32.mrf.mxu0
  %v3564 = vpop.f32.mrf.mxu0
  %v3565 = vadd.f32 %v3333, %v3564
  %v3566 = vpop.f32.mrf.mxu0
  %3567 = vmatprep.mubr.bf16.mxu0 0
  %3568 = vmatmul.mubr.bf16.gmra.mxu0 %v3299
  %v3569 = vpop.f32.mrf.mxu0
  %v3570 = vadd.f32 %v3333, %v3569
  %v3571 = vpop.f32.mrf.mxu0
  %v3572 = vpop.f32.mrf.mxu0
  %v3573 = vadd.f32 %v3333, %v3572
  %v3574 = vpop.f32.mrf.mxu0
  %3575 = vmatprep.mubr.bf16.mxu0 0
  %3576 = vmatmul.mubr.bf16.gmra.mxu0 %v3300
  %v3577 = vpop.f32.mrf.mxu0
  %v3578 = vadd.f32 %v3333, %v3577
  %v3579 = vpop.f32.mrf.mxu0
  %v3580 = vpop.f32.mrf.mxu0
  %v3581 = vadd.f32 %v3333, %v3580
  %v3582 = vpop.f32.mrf.mxu0
  %3583 = vmatprep.mubr.bf16.mxu0 0
  %3584 = vmatmul.mubr.bf16.gmra.mxu0 %v3301
  %v3585 = vpop.f32.mrf.mxu0
  %v3586 = vadd.f32 %v3333, %v3585
  %v3587 = vpop.f32.mrf.mxu0
  %v3588 = vpop.f32.mrf.mxu0
  %v3589 = vadd.f32 %v3333, %v3588
  %v3590 = vpop.f32.mrf.mxu0
  %3591 = vmatprep.mubr.bf16.mxu0 0
  %3592 = vmatmul.mubr.bf16.gmra.mxu0 %v3302
  %v3593 = vpop.f32.mrf.mxu0
  %v3594 = vadd.f32 %v3333, %v3593
  %v3595 = vpop.f32.mrf.mxu0
  %v3596 = vpop.f32.mrf.mxu0
  %v3597 = vadd.f32 %v3333, %v3596
  %v3598 = vpop.f32.mrf.mxu0
  %3599 = vmatprep.mubr.bf16.mxu0 0
  %3600 = vmatmul.mubr.bf16.gmra.mxu0 %v3303
  %v3601 = vpop.f32.mrf.mxu0
  %v3602 = vadd.f32 %v3333, %v3601
  %v3603 = vpop.f32.mrf.mxu0
  %v3604 = vpop.f32.mrf.mxu0
  %v3605 = vadd.f32 %v3333, %v3604
  %v3606 = vpop.f32.mrf.mxu0
  %3607 = vmatprep.mubr.bf16.mxu0 0
  %3608 = vmatmul.mubr.bf16.gmra.mxu0 %v3304
  %v3609 = vpop.f32.mrf.mxu0
  %v3610 = vadd.f32 %v3333, %v3609
  %v3611 = vpop.f32.mrf.mxu0
  %v3612 = vpop.f32.mrf.mxu0
  %v3613 = vadd.f32 %v3333, %v3612
  %v3614 = vpop.f32.mrf.mxu0
  %3615 = vmatprep.mubr.bf16.mxu0 0
  %3616 = vmatmul.mubr.bf16.gmra.mxu0 %v3305
  %v3617 = vpop.f32.mrf.mxu0
  %v3618 = vadd.f32 %v3333, %v3617
  %v3619 = vpop.f32.mrf.mxu0
  %v3620 = vpop.f32.mrf.mxu0
  %v3621 = vadd.f32 %v3333, %v3620
  %v3622 = vpop.f32.mrf.mxu0
  %3623 = vmatprep.mubr.bf16.mxu0 0
  %3624 = vmatmul.mubr.bf16.gmra.mxu0 %v3306
  %v3625 = vpop.f32.mrf.mxu0
  %v3626 = vadd.f32 %v3333, %v3625
  %v3627 = vpop.f32.mrf.mxu0
  %v3628 = vpop.f32.mrf.mxu0
  %v3629 = vadd.f32 %v3333, %v3628
  %v3630 = vpop.f32.mrf.mxu0
  %3631 = vmatprep.mubr.bf16.mxu0 0
  %3632 = vmatmul.mubr.bf16.gmra.mxu0 %v3307
  %v3633 = vpop.f32.mrf.mxu0
  %v3634 = vadd.f32 %v3333, %v3633
  %v3635 = vpop.f32.mrf.mxu0
  %v3636 = vpop.f32.mrf.mxu0
  %v3637 = vadd.f32 %v3333, %v3636
  %v3638 = vpop.f32.mrf.mxu0
  %3639 = vmatprep.mubr.bf16.mxu0 0
  %3640 = vmatmul.mubr.bf16.gmra.mxu0 %v3308
  %v3641 = vpop.f32.mrf.mxu0
  %v3642 = vadd.f32 %v3333, %v3641
  %v3643 = vpop.f32.mrf.mxu0
  %v3644 = vpop.f32.mrf.mxu0
  %v3645 = vadd.f32 %v3333, %v3644
  %v3646 = vpop.f32.mrf.mxu0
  %3647 = vmatprep.mubr.bf16.mxu0 0
  %3648 = vmatmul.mubr.bf16.gmra.mxu0 %v3309
  %v3649 = vpop.f32.mrf.mxu0
  %v3650 = vadd.f32 %v3333, %v3649
  %v3651 = vpop.f32.mrf.mxu0
  %v3652 = vpop.f32.mrf.mxu0
  %v3653 = vadd.f32 %v3333, %v3652
  %v3654 = vpop.f32.mrf.mxu0
  %3655 = vmatprep.mubr.bf16.mxu0 0
  %3656 = vmatmul.mubr.bf16.gmra.mxu0 %v3310
  %v3657 = vpop.f32.mrf.mxu0
  %v3658 = vadd.f32 %v3333, %v3657
  %v3659 = vpop.f32.mrf.mxu0
  %v3660 = vpop.f32.mrf.mxu0
  %v3661 = vadd.f32 %v3333, %v3660
  %v3662 = vpop.f32.mrf.mxu0
  %3663 = vmatprep.mubr.bf16.mxu0 0
  %3664 = vmatmul.mubr.bf16.gmra.mxu0 %v3311
  %v3665 = vpop.f32.mrf.mxu0
  %v3666 = vadd.f32 %v3333, %v3665
  %v3667 = vpop.f32.mrf.mxu0
  %v3668 = vpop.f32.mrf.mxu0
  %v3669 = vadd.f32 %v3333, %v3668
  %v3670 = vpop.f32.mrf.mxu0
  %3671 = vdwg.mxu0
  %v3672 = vld [vmem:[%s11] sm:$0x1]
  %v3673 = vld [vmem:[%s12] sm:$0x1]
  %3674 = vadd.xlane.f32.xlu0 %v3418
  %v3675 = vpop.xlane.xlu0 %3674
  %3676 = vadd.xlane.f32.xlu0 %v3421
  %v3677 = vpop.xlane.xlu0 %3676
  %3678 = vadd.xlane.f32.xlu0 %v3426
  %v3679 = vpop.xlane.xlu0 %3678
  %3680 = vadd.xlane.f32.xlu0 %v3429
  %v3681 = vpop.xlane.xlu0 %3680
  %3682 = vadd.xlane.f32.xlu0 %v3434
  %v3683 = vpop.xlane.xlu0 %3682
  %3684 = vadd.xlane.f32.xlu0 %v3437
  %v3685 = vpop.xlane.xlu0 %3684
  %3686 = vadd.xlane.f32.xlu0 %v3442
  %v3687 = vpop.xlane.xlu0 %3686
  %3688 = vadd.xlane.f32.xlu0 %v3445
  %v3689 = vpop.xlane.xlu0 %3688
  %3690 = vadd.xlane.f32.xlu0 %v3450
  %v3691 = vpop.xlane.xlu0 %3690
  %3692 = vadd.xlane.f32.xlu0 %v3453
  %v3693 = vpop.xlane.xlu0 %3692
  %3694 = vadd.xlane.f32.xlu0 %v3458
  %v3695 = vpop.xlane.xlu0 %3694
  %3696 = vadd.xlane.f32.xlu0 %v3461
  %v3697 = vpop.xlane.xlu0 %3696
  %3698 = vadd.xlane.f32.xlu0 %v3466
  %v3699 = vpop.xlane.xlu0 %3698
  %3700 = vadd.xlane.f32.xlu0 %v3469
  %v3701 = vpop.xlane.xlu0 %3700
  %3702 = vadd.xlane.f32.xlu0 %v3474
  %v3703 = vpop.xlane.xlu0 %3702
  %3704 = vadd.xlane.f32.xlu0 %v3477
  %v3705 = vpop.xlane.xlu0 %3704
  %3706 = vadd.xlane.f32.xlu0 %v3482
  %v3707 = vpop.xlane.xlu0 %3706
  %3708 = vadd.xlane.f32.xlu0 %v3485
  %v3709 = vpop.xlane.xlu0 %3708
  %3710 = vadd.xlane.f32.xlu0 %v3490
  %v3711 = vpop.xlane.xlu0 %3710
  %3712 = vadd.xlane.f32.xlu0 %v3493
  %v3713 = vpop.xlane.xlu0 %3712
  %3714 = vadd.xlane.f32.xlu0 %v3498
  %v3715 = vpop.xlane.xlu0 %3714
  %3716 = vadd.xlane.f32.xlu0 %v3501
  %v3717 = vpop.xlane.xlu0 %3716
  %3718 = vadd.xlane.f32.xlu0 %v3506
  %v3719 = vpop.xlane.xlu0 %3718
  %3720 = vadd.xlane.f32.xlu0 %v3509
  %v3721 = vpop.xlane.xlu0 %3720
  %3722 = vadd.xlane.f32.xlu0 %v3514
  %v3723 = vpop.xlane.xlu0 %3722
  %3724 = vadd.xlane.f32.xlu0 %v3517
  %v3725 = vpop.xlane.xlu0 %3724
  %3726 = vadd.xlane.f32.xlu0 %v3522
  %v3727 = vpop.xlane.xlu0 %3726
  %3728 = vadd.xlane.f32.xlu0 %v3525
  %v3729 = vpop.xlane.xlu0 %3728
  %3730 = vadd.xlane.f32.xlu0 %v3530
  %v3731 = vpop.xlane.xlu0 %3730
  %3732 = vadd.xlane.f32.xlu0 %v3533
  %v3733 = vpop.xlane.xlu0 %3732
  %3734 = vadd.xlane.f32.xlu0 %v3538
  %v3735 = vpop.xlane.xlu0 %3734
  %3736 = vadd.xlane.f32.xlu0 %v3541
  %v3737 = vpop.xlane.xlu0 %3736
  %3738 = vadd.xlane.f32.xlu0 %v3546
  %v3739 = vpop.xlane.xlu0 %3738
  %3740 = vadd.xlane.f32.xlu0 %v3549
  %v3741 = vpop.xlane.xlu0 %3740
  %3742 = vadd.xlane.f32.xlu0 %v3554
  %v3743 = vpop.xlane.xlu0 %3742
  %3744 = vadd.xlane.f32.xlu0 %v3557
  %v3745 = vpop.xlane.xlu0 %3744
  %3746 = vadd.xlane.f32.xlu0 %v3562
  %v3747 = vpop.xlane.xlu0 %3746
  %3748 = vadd.xlane.f32.xlu0 %v3565
  %v3749 = vpop.xlane.xlu0 %3748
  %3750 = vadd.xlane.f32.xlu0 %v3570
  %v3751 = vpop.xlane.xlu0 %3750
  %3752 = vadd.xlane.f32.xlu0 %v3573
  %v3753 = vpop.xlane.xlu0 %3752
  %3754 = vadd.xlane.f32.xlu0 %v3578
  %v3755 = vpop.xlane.xlu0 %3754
  %3756 = vadd.xlane.f32.xlu0 %v3581
  %v3757 = vpop.xlane.xlu0 %3756
  %3758 = vadd.xlane.f32.xlu0 %v3586
  %v3759 = vpop.xlane.xlu0 %3758
  %3760 = vadd.xlane.f32.xlu0 %v3589
  %v3761 = vpop.xlane.xlu0 %3760
  %3762 = vadd.xlane.f32.xlu0 %v3594
  %v3763 = vpop.xlane.xlu0 %3762
  %3764 = vadd.xlane.f32.xlu0 %v3597
  %v3765 = vpop.xlane.xlu0 %3764
  %3766 = vadd.xlane.f32.xlu0 %v3602
  %v3767 = vpop.xlane.xlu0 %3766
  %3768 = vadd.xlane.f32.xlu0 %v3605
  %v3769 = vpop.xlane.xlu0 %3768
  %3770 = vadd.xlane.f32.xlu0 %v3610
  %v3771 = vpop.xlane.xlu0 %3770
  %3772 = vadd.xlane.f32.xlu0 %v3613
  %v3773 = vpop.xlane.xlu0 %3772
  %3774 = vadd.xlane.f32.xlu0 %v3618
  %v3775 = vpop.xlane.xlu0 %3774
  %3776 = vadd.xlane.f32.xlu0 %v3621
  %v3777 = vpop.xlane.xlu0 %3776
  %3778 = vadd.xlane.f32.xlu0 %v3626
  %v3779 = vpop.xlane.xlu0 %3778
  %3780 = vadd.xlane.f32.xlu0 %v3629
  %v3781 = vpop.xlane.xlu0 %3780
  %3782 = vadd.xlane.f32.xlu0 %v3634
  %v3783 = vpop.xlane.xlu0 %3782
  %3784 = vadd.xlane.f32.xlu0 %v3637
  %v3785 = vpop.xlane.xlu0 %3784
  %3786 = vadd.xlane.f32.xlu0 %v3642
  %v3787 = vpop.xlane.xlu0 %3786
  %3788 = vadd.xlane.f32.xlu0 %v3645
  %v3789 = vpop.xlane.xlu0 %3788
  %3790 = vadd.xlane.f32.xlu0 %v3650
  %v3791 = vpop.xlane.xlu0 %3790
  %3792 = vadd.xlane.f32.xlu0 %v3653
  %v3793 = vpop.xlane.xlu0 %3792
  %3794 = vadd.xlane.f32.xlu0 %v3658
  %v3795 = vpop.xlane.xlu0 %3794
  %3796 = vadd.xlane.f32.xlu0 %v3661
  %v3797 = vpop.xlane.xlu0 %3796
  %3798 = vadd.xlane.f32.xlu0 %v3666
  %v3799 = vpop.xlane.xlu0 %3798
  %3800 = vadd.xlane.f32.xlu0 %v3669
  %v3801 = vpop.xlane.xlu0 %3800
  %v3802 = vmul.f32 %v3675, 0.015625
  %v3803 = vmul.f32 %v3677, 0.015625
  %v3804 = vmul.f32 %v3679, 0.015625
  %v3805 = vmul.f32 %v3681, 0.015625
  %v3806 = vmul.f32 %v3683, 0.015625
  %v3807 = vmul.f32 %v3685, 0.015625
  %v3808 = vmul.f32 %v3687, 0.015625
  %v3809 = vmul.f32 %v3689, 0.015625
  %v3810 = vmul.f32 %v3691, 0.015625
  %v3811 = vmul.f32 %v3693, 0.015625
  %v3812 = vmul.f32 %v3695, 0.015625
  %v3813 = vmul.f32 %v3697, 0.015625
  %v3814 = vmul.f32 %v3699, 0.015625
  %v3815 = vmul.f32 %v3701, 0.015625
  %v3816 = vmul.f32 %v3703, 0.015625
  %v3817 = vmul.f32 %v3705, 0.015625
  %v3818 = vmul.f32 %v3707, 0.015625
  %v3819 = vmul.f32 %v3709, 0.015625
  %v3820 = vmul.f32 %v3711, 0.015625
  %v3821 = vmul.f32 %v3713, 0.015625
  %v3822 = vmul.f32 %v3715, 0.015625
  %v3823 = vmul.f32 %v3717, 0.015625
  %v3824 = vmul.f32 %v3719, 0.015625
  %v3825 = vmul.f32 %v3721, 0.015625
  %v3826 = vmul.f32 %v3723, 0.015625
  %v3827 = vmul.f32 %v3725, 0.015625
  %v3828 = vmul.f32 %v3727, 0.015625
  %v3829 = vmul.f32 %v3729, 0.015625
  %v3830 = vmul.f32 %v3731, 0.015625
  %v3831 = vmul.f32 %v3733, 0.015625
  %v3832 = vmul.f32 %v3735, 0.015625
  %v3833 = vmul.f32 %v3737, 0.015625
  %v3834 = vmul.f32 %v3739, 0.015625
  %v3835 = vmul.f32 %v3741, 0.015625
  %v3836 = vmul.f32 %v3743, 0.015625
  %v3837 = vmul.f32 %v3745, 0.015625
  %v3838 = vmul.f32 %v3747, 0.015625
  %v3839 = vmul.f32 %v3749, 0.015625
  %v3840 = vmul.f32 %v3751, 0.015625
  %v3841 = vmul.f32 %v3753, 0.015625
  %v3842 = vmul.f32 %v3755, 0.015625
  %v3843 = vmul.f32 %v3757, 0.015625
  %v3844 = vmul.f32 %v3759, 0.015625
  %v3845 = vmul.f32 %v3761, 0.015625
  %v3846 = vmul.f32 %v3763, 0.015625
  %v3847 = vmul.f32 %v3765, 0.015625
  %v3848 = vmul.f32 %v3767, 0.015625
  %v3849 = vmul.f32 %v3769, 0.015625
  %v3850 = vmul.f32 %v3771, 0.015625
  %v3851 = vmul.f32 %v3773, 0.015625
  %v3852 = vmul.f32 %v3775, 0.015625
  %v3853 = vmul.f32 %v3777, 0.015625
  %v3854 = vmul.f32 %v3779, 0.015625
  %v3855 = vmul.f32 %v3781, 0.015625
  %v3856 = vmul.f32 %v3783, 0.015625
  %v3857 = vmul.f32 %v3785, 0.015625
  %v3858 = vmul.f32 %v3787, 0.015625
  %v3859 = vmul.f32 %v3789, 0.015625
  %v3860 = vmul.f32 %v3791, 0.015625
  %v3861 = vmul.f32 %v3793, 0.015625
  %v3862 = vmul.f32 %v3795, 0.015625
  %v3863 = vmul.f32 %v3797, 0.015625
  %v3864 = vmul.f32 %v3799, 0.015625
  %v3865 = vmul.f32 %v3801, 0.015625
  %v3866 = vmul.f32 %v3418, %v3418
  %v3867 = vmul.f32 %v3421, %v3421
  %v3868 = vmul.f32 %v3426, %v3426
  %v3869 = vmul.f32 %v3429, %v3429
  %v3870 = vmul.f32 %v3434, %v3434
  %v3871 = vmul.f32 %v3437, %v3437
  %v3872 = vmul.f32 %v3442, %v3442
  %v3873 = vmul.f32 %v3445, %v3445
  %v3874 = vmul.f32 %v3450, %v3450
  %v3875 = vmul.f32 %v3453, %v3453
  %v3876 = vmul.f32 %v3458, %v3458
  %v3877 = vmul.f32 %v3461, %v3461
  %v3878 = vmul.f32 %v3466, %v3466
  %v3879 = vmul.f32 %v3469, %v3469
  %v3880 = vmul.f32 %v3474, %v3474
  %v3881 = vmul.f32 %v3477, %v3477
  %v3882 = vmul.f32 %v3482, %v3482
  %v3883 = vmul.f32 %v3485, %v3485
  %v3884 = vmul.f32 %v3490, %v3490
  %v3885 = vmul.f32 %v3493, %v3493
  %v3886 = vmul.f32 %v3498, %v3498
  %v3887 = vmul.f32 %v3501, %v3501
  %v3888 = vmul.f32 %v3506, %v3506
  %v3889 = vmul.f32 %v3509, %v3509
  %v3890 = vmul.f32 %v3514, %v3514
  %v3891 = vmul.f32 %v3517, %v3517
  %v3892 = vmul.f32 %v3522, %v3522
  %v3893 = vmul.f32 %v3525, %v3525
  %v3894 = vmul.f32 %v3530, %v3530
  %v3895 = vmul.f32 %v3533, %v3533
  %v3896 = vmul.f32 %v3538, %v3538
  %v3897 = vmul.f32 %v3541, %v3541
  %v3898 = vmul.f32 %v3546, %v3546
  %v3899 = vmul.f32 %v3549, %v3549
  %v3900 = vmul.f32 %v3554, %v3554
  %v3901 = vmul.f32 %v3557, %v3557
  %v3902 = vmul.f32 %v3562, %v3562
  %v3903 = vmul.f32 %v3565, %v3565
  %v3904 = vmul.f32 %v3570, %v3570
  %v3905 = vmul.f32 %v3573, %v3573
  %v3906 = vmul.f32 %v3578, %v3578
  %v3907 = vmul.f32 %v3581, %v3581
  %v3908 = vmul.f32 %v3586, %v3586
  %v3909 = vmul.f32 %v3589, %v3589
  %v3910 = vmul.f32 %v3594, %v3594
  %v3911 = vmul.f32 %v3597, %v3597
  %v3912 = vmul.f32 %v3602, %v3602
  %v3913 = vmul.f32 %v3605, %v3605
  %v3914 = vmul.f32 %v3610, %v3610
  %v3915 = vmul.f32 %v3613, %v3613
  %v3916 = vmul.f32 %v3618, %v3618
  %v3917 = vmul.f32 %v3621, %v3621
  %v3918 = vmul.f32 %v3626, %v3626
  %v3919 = vmul.f32 %v3629, %v3629
  %v3920 = vmul.f32 %v3634, %v3634
  %v3921 = vmul.f32 %v3637, %v3637
  %v3922 = vmul.f32 %v3642, %v3642
  %v3923 = vmul.f32 %v3645, %v3645
  %v3924 = vmul.f32 %v3650, %v3650
  %v3925 = vmul.f32 %v3653, %v3653
  %v3926 = vmul.f32 %v3658, %v3658
  %v3927 = vmul.f32 %v3661, %v3661
  %v3928 = vmul.f32 %v3666, %v3666
  %v3929 = vmul.f32 %v3669, %v3669
  %3930 = vadd.xlane.f32.xlu0 %v3866
  %v3931 = vpop.xlane.xlu0 %3930
  %3932 = vadd.xlane.f32.xlu0 %v3867
  %v3933 = vpop.xlane.xlu0 %3932
  %3934 = vadd.xlane.f32.xlu0 %v3868
  %v3935 = vpop.xlane.xlu0 %3934
  %3936 = vadd.xlane.f32.xlu0 %v3869
  %v3937 = vpop.xlane.xlu0 %3936
  %3938 = vadd.xlane.f32.xlu0 %v3870
  %v3939 = vpop.xlane.xlu0 %3938
  %3940 = vadd.xlane.f32.xlu0 %v3871
  %v3941 = vpop.xlane.xlu0 %3940
  %3942 = vadd.xlane.f32.xlu0 %v3872
  %v3943 = vpop.xlane.xlu0 %3942
  %3944 = vadd.xlane.f32.xlu0 %v3873
  %v3945 = vpop.xlane.xlu0 %3944
  %3946 = vadd.xlane.f32.xlu0 %v3874
  %v3947 = vpop.xlane.xlu0 %3946
  %3948 = vadd.xlane.f32.xlu0 %v3875
  %v3949 = vpop.xlane.xlu0 %3948
  %3950 = vadd.xlane.f32.xlu0 %v3876
  %v3951 = vpop.xlane.xlu0 %3950
  %3952 = vadd.xlane.f32.xlu0 %v3877
  %v3953 = vpop.xlane.xlu0 %3952
  %3954 = vadd.xlane.f32.xlu0 %v3878
  %v3955 = vpop.xlane.xlu0 %3954
  %3956 = vadd.xlane.f32.xlu0 %v3879
  %v3957 = vpop.xlane.xlu0 %3956
  %3958 = vadd.xlane.f32.xlu0 %v3880
  %v3959 = vpop.xlane.xlu0 %3958
  %3960 = vadd.xlane.f32.xlu0 %v3881
  %v3961 = vpop.xlane.xlu0 %3960
  %3962 = vadd.xlane.f32.xlu0 %v3882
  %v3963 = vpop.xlane.xlu0 %3962
  %3964 = vadd.xlane.f32.xlu0 %v3883
  %v3965 = vpop.xlane.xlu0 %3964
  %3966 = vadd.xlane.f32.xlu0 %v3884
  %v3967 = vpop.xlane.xlu0 %3966
  %3968 = vadd.xlane.f32.xlu0 %v3885
  %v3969 = vpop.xlane.xlu0 %3968
  %3970 = vadd.xlane.f32.xlu0 %v3886
  %v3971 = vpop.xlane.xlu0 %3970
  %3972 = vadd.xlane.f32.xlu0 %v3887
  %v3973 = vpop.xlane.xlu0 %3972
  %3974 = vadd.xlane.f32.xlu0 %v3888
  %v3975 = vpop.xlane.xlu0 %3974
  %3976 = vadd.xlane.f32.xlu0 %v3889
  %v3977 = vpop.xlane.xlu0 %3976
  %3978 = vadd.xlane.f32.xlu0 %v3890
  %v3979 = vpop.xlane.xlu0 %3978
  %3980 = vadd.xlane.f32.xlu0 %v3891
  %v3981 = vpop.xlane.xlu0 %3980
  %3982 = vadd.xlane.f32.xlu0 %v3892
  %v3983 = vpop.xlane.xlu0 %3982
  %3984 = vadd.xlane.f32.xlu0 %v3893
  %v3985 = vpop.xlane.xlu0 %3984
  %3986 = vadd.xlane.f32.xlu0 %v3894
  %v3987 = vpop.xlane.xlu0 %3986
  %3988 = vadd.xlane.f32.xlu0 %v3895
  %v3989 = vpop.xlane.xlu0 %3988
  %3990 = vadd.xlane.f32.xlu0 %v3896
  %v3991 = vpop.xlane.xlu0 %3990
  %3992 = vadd.xlane.f32.xlu0 %v3897
  %v3993 = vpop.xlane.xlu0 %3992
  %3994 = vadd.xlane.f32.xlu0 %v3898
  %v3995 = vpop.xlane.xlu0 %3994
  %3996 = vadd.xlane.f32.xlu0 %v3899
  %v3997 = vpop.xlane.xlu0 %3996
  %3998 = vadd.xlane.f32.xlu0 %v3900
  %v3999 = vpop.xlane.xlu0 %3998
  %4000 = vadd.xlane.f32.xlu0 %v3901
  %v4001 = vpop.xlane.xlu0 %4000
  %4002 = vadd.xlane.f32.xlu0 %v3902
  %v4003 = vpop.xlane.xlu0 %4002
  %4004 = vadd.xlane.f32.xlu0 %v3903
  %v4005 = vpop.xlane.xlu0 %4004
  %4006 = vadd.xlane.f32.xlu0 %v3904
  %v4007 = vpop.xlane.xlu0 %4006
  %4008 = vadd.xlane.f32.xlu0 %v3905
  %v4009 = vpop.xlane.xlu0 %4008
  %4010 = vadd.xlane.f32.xlu0 %v3906
  %v4011 = vpop.xlane.xlu0 %4010
  %4012 = vadd.xlane.f32.xlu0 %v3907
  %v4013 = vpop.xlane.xlu0 %4012
  %4014 = vadd.xlane.f32.xlu0 %v3908
  %v4015 = vpop.xlane.xlu0 %4014
  %4016 = vadd.xlane.f32.xlu0 %v3909
  %v4017 = vpop.xlane.xlu0 %4016
  %4018 = vadd.xlane.f32.xlu0 %v3910
  %v4019 = vpop.xlane.xlu0 %4018
  %4020 = vadd.xlane.f32.xlu0 %v3911
  %v4021 = vpop.xlane.xlu0 %4020
  %4022 = vadd.xlane.f32.xlu0 %v3912
  %v4023 = vpop.xlane.xlu0 %4022
  %4024 = vadd.xlane.f32.xlu0 %v3913
  %v4025 = vpop.xlane.xlu0 %4024
  %4026 = vadd.xlane.f32.xlu0 %v3914
  %v4027 = vpop.xlane.xlu0 %4026
  %4028 = vadd.xlane.f32.xlu0 %v3915
  %v4029 = vpop.xlane.xlu0 %4028
  %4030 = vadd.xlane.f32.xlu0 %v3916
  %v4031 = vpop.xlane.xlu0 %4030
  %4032 = vadd.xlane.f32.xlu0 %v3917
  %v4033 = vpop.xlane.xlu0 %4032
  %4034 = vadd.xlane.f32.xlu0 %v3918
  %v4035 = vpop.xlane.xlu0 %4034
  %4036 = vadd.xlane.f32.xlu0 %v3919
  %v4037 = vpop.xlane.xlu0 %4036
  %4038 = vadd.xlane.f32.xlu0 %v3920
  %v4039 = vpop.xlane.xlu0 %4038
  %4040 = vadd.xlane.f32.xlu0 %v3921
  %v4041 = vpop.xlane.xlu0 %4040
  %4042 = vadd.xlane.f32.xlu0 %v3922
  %v4043 = vpop.xlane.xlu0 %4042
  %4044 = vadd.xlane.f32.xlu0 %v3923
  %v4045 = vpop.xlane.xlu0 %4044
  %4046 = vadd.xlane.f32.xlu0 %v3924
  %v4047 = vpop.xlane.xlu0 %4046
  %4048 = vadd.xlane.f32.xlu0 %v3925
  %v4049 = vpop.xlane.xlu0 %4048
  %4050 = vadd.xlane.f32.xlu0 %v3926
  %v4051 = vpop.xlane.xlu0 %4050
  %4052 = vadd.xlane.f32.xlu0 %v3927
  %v4053 = vpop.xlane.xlu0 %4052
  %4054 = vadd.xlane.f32.xlu0 %v3928
  %v4055 = vpop.xlane.xlu0 %4054
  %4056 = vadd.xlane.f32.xlu0 %v3929
  %v4057 = vpop.xlane.xlu0 %4056
  %v4058 = vmul.f32 %v3931, 0.015625
  %v4059 = vmul.f32 %v3933, 0.015625
  %v4060 = vmul.f32 %v3935, 0.015625
  %v4061 = vmul.f32 %v3937, 0.015625
  %v4062 = vmul.f32 %v3939, 0.015625
  %v4063 = vmul.f32 %v3941, 0.015625
  %v4064 = vmul.f32 %v3943, 0.015625
  %v4065 = vmul.f32 %v3945, 0.015625
  %v4066 = vmul.f32 %v3947, 0.015625
  %v4067 = vmul.f32 %v3949, 0.015625
  %v4068 = vmul.f32 %v3951, 0.015625
  %v4069 = vmul.f32 %v3953, 0.015625
  %v4070 = vmul.f32 %v3955, 0.015625
  %v4071 = vmul.f32 %v3957, 0.015625
  %v4072 = vmul.f32 %v3959, 0.015625
  %v4073 = vmul.f32 %v3961, 0.015625
  %v4074 = vmul.f32 %v3963, 0.015625
  %v4075 = vmul.f32 %v3965, 0.015625
  %v4076 = vmul.f32 %v3967, 0.015625
  %v4077 = vmul.f32 %v3969, 0.015625
  %v4078 = vmul.f32 %v3971, 0.015625
  %v4079 = vmul.f32 %v3973, 0.015625
  %v4080 = vmul.f32 %v3975, 0.015625
  %v4081 = vmul.f32 %v3977, 0.015625
  %v4082 = vmul.f32 %v3979, 0.015625
  %v4083 = vmul.f32 %v3981, 0.015625
  %v4084 = vmul.f32 %v3983, 0.015625
  %v4085 = vmul.f32 %v3985, 0.015625
  %v4086 = vmul.f32 %v3987, 0.015625
  %v4087 = vmul.f32 %v3989, 0.015625
  %v4088 = vmul.f32 %v3991, 0.015625
  %v4089 = vmul.f32 %v3993, 0.015625
  %v4090 = vmul.f32 %v3995, 0.015625
  %v4091 = vmul.f32 %v3997, 0.015625
  %v4092 = vmul.f32 %v3999, 0.015625
  %v4093 = vmul.f32 %v4001, 0.015625
  %v4094 = vmul.f32 %v4003, 0.015625
  %v4095 = vmul.f32 %v4005, 0.015625
  %v4096 = vmul.f32 %v4007, 0.015625
  %v4097 = vmul.f32 %v4009, 0.015625
  %v4098 = vmul.f32 %v4011, 0.015625
  %v4099 = vmul.f32 %v4013, 0.015625
  %v4100 = vmul.f32 %v4015, 0.015625
  %v4101 = vmul.f32 %v4017, 0.015625
  %v4102 = vmul.f32 %v4019, 0.015625
  %v4103 = vmul.f32 %v4021, 0.015625
  %v4104 = vmul.f32 %v4023, 0.015625
  %v4105 = vmul.f32 %v4025, 0.015625
  %v4106 = vmul.f32 %v4027, 0.015625
  %v4107 = vmul.f32 %v4029, 0.015625
  %v4108 = vmul.f32 %v4031, 0.015625
  %v4109 = vmul.f32 %v4033, 0.015625
  %v4110 = vmul.f32 %v4035, 0.015625
  %v4111 = vmul.f32 %v4037, 0.015625
  %v4112 = vmul.f32 %v4039, 0.015625
  %v4113 = vmul.f32 %v4041, 0.015625
  %v4114 = vmul.f32 %v4043, 0.015625
  %v4115 = vmul.f32 %v4045, 0.015625
  %v4116 = vmul.f32 %v4047, 0.015625
  %v4117 = vmul.f32 %v4049, 0.015625
  %v4118 = vmul.f32 %v4051, 0.015625
  %v4119 = vmul.f32 %v4053, 0.015625
  %v4120 = vmul.f32 %v4055, 0.015625
  %v4121 = vmul.f32 %v4057, 0.015625
  %v4122 = vmul.f32 %v3802, %v3802
  %v4123 = vmul.f32 %v3803, %v3803
  %v4124 = vmul.f32 %v3804, %v3804
  %v4125 = vmul.f32 %v3805, %v3805
  %v4126 = vmul.f32 %v3806, %v3806
  %v4127 = vmul.f32 %v3807, %v3807
  %v4128 = vmul.f32 %v3808, %v3808
  %v4129 = vmul.f32 %v3809, %v3809
  %v4130 = vmul.f32 %v3810, %v3810
  %v4131 = vmul.f32 %v3811, %v3811
  %v4132 = vmul.f32 %v3812, %v3812
  %v4133 = vmul.f32 %v3813, %v3813
  %v4134 = vmul.f32 %v3814, %v3814
  %v4135 = vmul.f32 %v3815, %v3815
  %v4136 = vmul.f32 %v3816, %v3816
  %v4137 = vmul.f32 %v3817, %v3817
  %v4138 = vmul.f32 %v3818, %v3818
  %v4139 = vmul.f32 %v3819, %v3819
  %v4140 = vmul.f32 %v3820, %v3820
  %v4141 = vmul.f32 %v3821, %v3821
  %v4142 = vmul.f32 %v3822, %v3822
  %v4143 = vmul.f32 %v3823, %v3823
  %v4144 = vmul.f32 %v3824, %v3824
  %v4145 = vmul.f32 %v3825, %v3825
  %v4146 = vmul.f32 %v3826, %v3826
  %v4147 = vmul.f32 %v3827, %v3827
  %v4148 = vmul.f32 %v3828, %v3828
  %v4149 = vmul.f32 %v3829, %v3829
  %v4150 = vmul.f32 %v3830, %v3830
  %v4151 = vmul.f32 %v3831, %v3831
  %v4152 = vmul.f32 %v3832, %v3832
  %v4153 = vmul.f32 %v3833, %v3833
  %v4154 = vmul.f32 %v3834, %v3834
  %v4155 = vmul.f32 %v3835, %v3835
  %v4156 = vmul.f32 %v3836, %v3836
  %v4157 = vmul.f32 %v3837, %v3837
  %v4158 = vmul.f32 %v3838, %v3838
  %v4159 = vmul.f32 %v3839, %v3839
  %v4160 = vmul.f32 %v3840, %v3840
  %v4161 = vmul.f32 %v3841, %v3841
  %v4162 = vmul.f32 %v3842, %v3842
  %v4163 = vmul.f32 %v3843, %v3843
  %v4164 = vmul.f32 %v3844, %v3844
  %v4165 = vmul.f32 %v3845, %v3845
  %v4166 = vmul.f32 %v3846, %v3846
  %v4167 = vmul.f32 %v3847, %v3847
  %v4168 = vmul.f32 %v3848, %v3848
  %v4169 = vmul.f32 %v3849, %v3849
  %v4170 = vmul.f32 %v3850, %v3850
  %v4171 = vmul.f32 %v3851, %v3851
  %v4172 = vmul.f32 %v3852, %v3852
  %v4173 = vmul.f32 %v3853, %v3853
  %v4174 = vmul.f32 %v3854, %v3854
  %v4175 = vmul.f32 %v3855, %v3855
  %v4176 = vmul.f32 %v3856, %v3856
  %v4177 = vmul.f32 %v3857, %v3857
  %v4178 = vmul.f32 %v3858, %v3858
  %v4179 = vmul.f32 %v3859, %v3859
  %v4180 = vmul.f32 %v3860, %v3860
  %v4181 = vmul.f32 %v3861, %v3861
  %v4182 = vmul.f32 %v3862, %v3862
  %v4183 = vmul.f32 %v3863, %v3863
  %v4184 = vmul.f32 %v3864, %v3864
  %v4185 = vmul.f32 %v3865, %v3865
  %v4186 = vsub.f32 %v4058, %v4122
  %v4187 = vsub.f32 %v4059, %v4123
  %v4188 = vsub.f32 %v4060, %v4124
  %v4189 = vsub.f32 %v4061, %v4125
  %v4190 = vsub.f32 %v4062, %v4126
  %v4191 = vsub.f32 %v4063, %v4127
  %v4192 = vsub.f32 %v4064, %v4128
  %v4193 = vsub.f32 %v4065, %v4129
  %v4194 = vsub.f32 %v4066, %v4130
  %v4195 = vsub.f32 %v4067, %v4131
  %v4196 = vsub.f32 %v4068, %v4132
  %v4197 = vsub.f32 %v4069, %v4133
  %v4198 = vsub.f32 %v4070, %v4134
  %v4199 = vsub.f32 %v4071, %v4135
  %v4200 = vsub.f32 %v4072, %v4136
  %v4201 = vsub.f32 %v4073, %v4137
  %v4202 = vsub.f32 %v4074, %v4138
  %v4203 = vsub.f32 %v4075, %v4139
  %v4204 = vsub.f32 %v4076, %v4140
  %v4205 = vsub.f32 %v4077, %v4141
  %v4206 = vsub.f32 %v4078, %v4142
  %v4207 = vsub.f32 %v4079, %v4143
  %v4208 = vsub.f32 %v4080, %v4144
  %v4209 = vsub.f32 %v4081, %v4145
  %v4210 = vsub.f32 %v4082, %v4146
  %v4211 = vsub.f32 %v4083, %v4147
  %v4212 = vsub.f32 %v4084, %v4148
  %v4213 = vsub.f32 %v4085, %v4149
  %v4214 = vsub.f32 %v4086, %v4150
  %v4215 = vsub.f32 %v4087, %v4151
  %v4216 = vsub.f32 %v4088, %v4152
  %v4217 = vsub.f32 %v4089, %v4153
  %v4218 = vsub.f32 %v4090, %v4154
  %v4219 = vsub.f32 %v4091, %v4155
  %v4220 = vsub.f32 %v4092, %v4156
  %v4221 = vsub.f32 %v4093, %v4157
  %v4222 = vsub.f32 %v4094, %v4158
  %v4223 = vsub.f32 %v4095, %v4159
  %v4224 = vsub.f32 %v4096, %v4160
  %v4225 = vsub.f32 %v4097, %v4161
  %v4226 = vsub.f32 %v4098, %v4162
  %v4227 = vsub.f32 %v4099, %v4163
  %v4228 = vsub.f32 %v4100, %v4164
  %v4229 = vsub.f32 %v4101, %v4165
  %v4230 = vsub.f32 %v4102, %v4166
  %v4231 = vsub.f32 %v4103, %v4167
  %v4232 = vsub.f32 %v4104, %v4168
  %v4233 = vsub.f32 %v4105, %v4169
  %v4234 = vsub.f32 %v4106, %v4170
  %v4235 = vsub.f32 %v4107, %v4171
  %v4236 = vsub.f32 %v4108, %v4172
  %v4237 = vsub.f32 %v4109, %v4173
  %v4238 = vsub.f32 %v4110, %v4174
  %v4239 = vsub.f32 %v4111, %v4175
  %v4240 = vsub.f32 %v4112, %v4176
  %v4241 = vsub.f32 %v4113, %v4177
  %v4242 = vsub.f32 %v4114, %v4178
  %v4243 = vsub.f32 %v4115, %v4179
  %v4244 = vsub.f32 %v4116, %v4180
  %v4245 = vsub.f32 %v4117, %v4181
  %v4246 = vsub.f32 %v4118, %v4182
  %v4247 = vsub.f32 %v4119, %v4183
  %v4248 = vsub.f32 %v4120, %v4184
  %v4249 = vsub.f32 %v4121, %v4185
  %v4250 = vmax.f32 %v4186, 0.0
  %v4251 = vmax.f32 %v4187, 0.0
  %v4252 = vmax.f32 %v4188, 0.0
  %v4253 = vmax.f32 %v4189, 0.0
  %v4254 = vmax.f32 %v4190, 0.0
  %v4255 = vmax.f32 %v4191, 0.0
  %v4256 = vmax.f32 %v4192, 0.0
  %v4257 = vmax.f32 %v4193, 0.0
  %v4258 = vmax.f32 %v4194, 0.0
  %v4259 = vmax.f32 %v4195, 0.0
  %v4260 = vmax.f32 %v4196, 0.0
  %v4261 = vmax.f32 %v4197, 0.0
  %v4262 = vmax.f32 %v4198, 0.0
  %v4263 = vmax.f32 %v4199, 0.0
  %v4264 = vmax.f32 %v4200, 0.0
  %v4265 = vmax.f32 %v4201, 0.0
  %v4266 = vmax.f32 %v4202, 0.0
  %v4267 = vmax.f32 %v4203, 0.0
  %v4268 = vmax.f32 %v4204, 0.0
  %v4269 = vmax.f32 %v4205, 0.0
  %v4270 = vmax.f32 %v4206, 0.0
  %v4271 = vmax.f32 %v4207, 0.0
  %v4272 = vmax.f32 %v4208, 0.0
  %v4273 = vmax.f32 %v4209, 0.0
  %v4274 = vmax.f32 %v4210, 0.0
  %v4275 = vmax.f32 %v4211, 0.0
  %v4276 = vmax.f32 %v4212, 0.0
  %v4277 = vmax.f32 %v4213, 0.0
  %v4278 = vmax.f32 %v4214, 0.0
  %v4279 = vmax.f32 %v4215, 0.0
  %v4280 = vmax.f32 %v4216, 0.0
  %v4281 = vmax.f32 %v4217, 0.0
  %v4282 = vmax.f32 %v4218, 0.0
  %v4283 = vmax.f32 %v4219, 0.0
  %v4284 = vmax.f32 %v4220, 0.0
  %v4285 = vmax.f32 %v4221, 0.0
  %v4286 = vmax.f32 %v4222, 0.0
  %v4287 = vmax.f32 %v4223, 0.0
  %v4288 = vmax.f32 %v4224, 0.0
  %v4289 = vmax.f32 %v4225, 0.0
  %v4290 = vmax.f32 %v4226, 0.0
  %v4291 = vmax.f32 %v4227, 0.0
  %v4292 = vmax.f32 %v4228, 0.0
  %v4293 = vmax.f32 %v4229, 0.0
  %v4294 = vmax.f32 %v4230, 0.0
  %v4295 = vmax.f32 %v4231, 0.0
  %v4296 = vmax.f32 %v4232, 0.0
  %v4297 = vmax.f32 %v4233, 0.0
  %v4298 = vmax.f32 %v4234, 0.0
  %v4299 = vmax.f32 %v4235, 0.0
  %v4300 = vmax.f32 %v4236, 0.0
  %v4301 = vmax.f32 %v4237, 0.0
  %v4302 = vmax.f32 %v4238, 0.0
  %v4303 = vmax.f32 %v4239, 0.0
  %v4304 = vmax.f32 %v4240, 0.0
  %v4305 = vmax.f32 %v4241, 0.0
  %v4306 = vmax.f32 %v4242, 0.0
  %v4307 = vmax.f32 %v4243, 0.0
  %v4308 = vmax.f32 %v4244, 0.0
  %v4309 = vmax.f32 %v4245, 0.0
  %v4310 = vmax.f32 %v4246, 0.0
  %v4311 = vmax.f32 %v4247, 0.0
  %v4312 = vmax.f32 %v4248, 0.0
  %v4313 = vmax.f32 %v4249, 0.0
  %v4314 = vsub.f32 %v3418, %v3802
  %v4315 = vsub.f32 %v3421, %v3803
  %v4316 = vsub.f32 %v3426, %v3804
  %v4317 = vsub.f32 %v3429, %v3805
  %v4318 = vsub.f32 %v3434, %v3806
  %v4319 = vsub.f32 %v3437, %v3807
  %v4320 = vsub.f32 %v3442, %v3808
  %v4321 = vsub.f32 %v3445, %v3809
  %v4322 = vsub.f32 %v3450, %v3810
  %v4323 = vsub.f32 %v3453, %v3811
  %v4324 = vsub.f32 %v3458, %v3812
  %v4325 = vsub.f32 %v3461, %v3813
  %v4326 = vsub.f32 %v3466, %v3814
  %v4327 = vsub.f32 %v3469, %v3815
  %v4328 = vsub.f32 %v3474, %v3816
  %v4329 = vsub.f32 %v3477, %v3817
  %v4330 = vsub.f32 %v3482, %v3818
  %v4331 = vsub.f32 %v3485, %v3819
  %v4332 = vsub.f32 %v3490, %v3820
  %v4333 = vsub.f32 %v3493, %v3821
  %v4334 = vsub.f32 %v3498, %v3822
  %v4335 = vsub.f32 %v3501, %v3823
  %v4336 = vsub.f32 %v3506, %v3824
  %v4337 = vsub.f32 %v3509, %v3825
  %v4338 = vsub.f32 %v3514, %v3826
  %v4339 = vsub.f32 %v3517, %v3827
  %v4340 = vsub.f32 %v3522, %v3828
  %v4341 = vsub.f32 %v3525, %v3829
  %v4342 = vsub.f32 %v3530, %v3830
  %v4343 = vsub.f32 %v3533, %v3831
  %v4344 = vsub.f32 %v3538, %v3832
  %v4345 = vsub.f32 %v3541, %v3833
  %v4346 = vsub.f32 %v3546, %v3834
  %v4347 = vsub.f32 %v3549, %v3835
  %v4348 = vsub.f32 %v3554, %v3836
  %v4349 = vsub.f32 %v3557, %v3837
  %v4350 = vsub.f32 %v3562, %v3838
  %v4351 = vsub.f32 %v3565, %v3839
  %v4352 = vsub.f32 %v3570, %v3840
  %v4353 = vsub.f32 %v3573, %v3841
  %v4354 = vsub.f32 %v3578, %v3842
  %v4355 = vsub.f32 %v3581, %v3843
  %v4356 = vsub.f32 %v3586, %v3844
  %v4357 = vsub.f32 %v3589, %v3845
  %v4358 = vsub.f32 %v3594, %v3846
  %v4359 = vsub.f32 %v3597, %v3847
  %v4360 = vsub.f32 %v3602, %v3848
  %v4361 = vsub.f32 %v3605, %v3849
  %v4362 = vsub.f32 %v3610, %v3850
  %v4363 = vsub.f32 %v3613, %v3851
  %v4364 = vsub.f32 %v3618, %v3852
  %v4365 = vsub.f32 %v3621, %v3853
  %v4366 = vsub.f32 %v3626, %v3854
  %v4367 = vsub.f32 %v3629, %v3855
  %v4368 = vsub.f32 %v3634, %v3856
  %v4369 = vsub.f32 %v3637, %v3857
  %v4370 = vsub.f32 %v3642, %v3858
  %v4371 = vsub.f32 %v3645, %v3859
  %v4372 = vsub.f32 %v3650, %v3860
  %v4373 = vsub.f32 %v3653, %v3861
  %v4374 = vsub.f32 %v3658, %v3862
  %v4375 = vsub.f32 %v3661, %v3863
  %v4376 = vsub.f32 %v3666, %v3864
  %v4377 = vsub.f32 %v3669, %v3865
  %v4378 = vadd.f32 %v4250, 1e-05
  %v4379 = vadd.f32 %v4251, 1e-05
  %v4380 = vadd.f32 %v4252, 1e-05
  %v4381 = vadd.f32 %v4253, 1e-05
  %v4382 = vadd.f32 %v4254, 1e-05
  %v4383 = vadd.f32 %v4255, 1e-05
  %v4384 = vadd.f32 %v4256, 1e-05
  %v4385 = vadd.f32 %v4257, 1e-05
  %v4386 = vadd.f32 %v4258, 1e-05
  %v4387 = vadd.f32 %v4259, 1e-05
  %v4388 = vadd.f32 %v4260, 1e-05
  %v4389 = vadd.f32 %v4261, 1e-05
  %v4390 = vadd.f32 %v4262, 1e-05
  %v4391 = vadd.f32 %v4263, 1e-05
  %v4392 = vadd.f32 %v4264, 1e-05
  %v4393 = vadd.f32 %v4265, 1e-05
  %v4394 = vadd.f32 %v4266, 1e-05
  %v4395 = vadd.f32 %v4267, 1e-05
  %v4396 = vadd.f32 %v4268, 1e-05
  %v4397 = vadd.f32 %v4269, 1e-05
  %v4398 = vadd.f32 %v4270, 1e-05
  %v4399 = vadd.f32 %v4271, 1e-05
  %v4400 = vadd.f32 %v4272, 1e-05
  %v4401 = vadd.f32 %v4273, 1e-05
  %v4402 = vadd.f32 %v4274, 1e-05
  %v4403 = vadd.f32 %v4275, 1e-05
  %v4404 = vadd.f32 %v4276, 1e-05
  %v4405 = vadd.f32 %v4277, 1e-05
  %v4406 = vadd.f32 %v4278, 1e-05
  %v4407 = vadd.f32 %v4279, 1e-05
  %v4408 = vadd.f32 %v4280, 1e-05
  %v4409 = vadd.f32 %v4281, 1e-05
  %v4410 = vadd.f32 %v4282, 1e-05
  %v4411 = vadd.f32 %v4283, 1e-05
  %v4412 = vadd.f32 %v4284, 1e-05
  %v4413 = vadd.f32 %v4285, 1e-05
  %v4414 = vadd.f32 %v4286, 1e-05
  %v4415 = vadd.f32 %v4287, 1e-05
  %v4416 = vadd.f32 %v4288, 1e-05
  %v4417 = vadd.f32 %v4289, 1e-05
  %v4418 = vadd.f32 %v4290, 1e-05
  %v4419 = vadd.f32 %v4291, 1e-05
  %v4420 = vadd.f32 %v4292, 1e-05
  %v4421 = vadd.f32 %v4293, 1e-05
  %v4422 = vadd.f32 %v4294, 1e-05
  %v4423 = vadd.f32 %v4295, 1e-05
  %v4424 = vadd.f32 %v4296, 1e-05
  %v4425 = vadd.f32 %v4297, 1e-05
  %v4426 = vadd.f32 %v4298, 1e-05
  %v4427 = vadd.f32 %v4299, 1e-05
  %v4428 = vadd.f32 %v4300, 1e-05
  %v4429 = vadd.f32 %v4301, 1e-05
  %v4430 = vadd.f32 %v4302, 1e-05
  %v4431 = vadd.f32 %v4303, 1e-05
  %v4432 = vadd.f32 %v4304, 1e-05
  %v4433 = vadd.f32 %v4305, 1e-05
  %v4434 = vadd.f32 %v4306, 1e-05
  %v4435 = vadd.f32 %v4307, 1e-05
  %v4436 = vadd.f32 %v4308, 1e-05
  %v4437 = vadd.f32 %v4309, 1e-05
  %v4438 = vadd.f32 %v4310, 1e-05
  %v4439 = vadd.f32 %v4311, 1e-05
  %v4440 = vadd.f32 %v4312, 1e-05
  %v4441 = vadd.f32 %v4313, 1e-05
  %v4442 = vrsqrt.pop %v4378
  %v4443 = vrsqrt.pop %v4379
  %v4444 = vrsqrt.pop %v4380
  %v4445 = vrsqrt.pop %v4381
  %v4446 = vrsqrt.pop %v4382
  %v4447 = vrsqrt.pop %v4383
  %v4448 = vrsqrt.pop %v4384
  %v4449 = vrsqrt.pop %v4385
  %v4450 = vrsqrt.pop %v4386
  %v4451 = vrsqrt.pop %v4387
  %v4452 = vrsqrt.pop %v4388
  %v4453 = vrsqrt.pop %v4389
  %v4454 = vrsqrt.pop %v4390
  %v4455 = vrsqrt.pop %v4391
  %v4456 = vrsqrt.pop %v4392
  %v4457 = vrsqrt.pop %v4393
  %v4458 = vrsqrt.pop %v4394
  %v4459 = vrsqrt.pop %v4395
  %v4460 = vrsqrt.pop %v4396
  %v4461 = vrsqrt.pop %v4397
  %v4462 = vrsqrt.pop %v4398
  %v4463 = vrsqrt.pop %v4399
  %v4464 = vrsqrt.pop %v4400
  %v4465 = vrsqrt.pop %v4401
  %v4466 = vrsqrt.pop %v4402
  %v4467 = vrsqrt.pop %v4403
  %v4468 = vrsqrt.pop %v4404
  %v4469 = vrsqrt.pop %v4405
  %v4470 = vrsqrt.pop %v4406
  %v4471 = vrsqrt.pop %v4407
  %v4472 = vrsqrt.pop %v4408
  %v4473 = vrsqrt.pop %v4409
  %v4474 = vrsqrt.pop %v4410
  %v4475 = vrsqrt.pop %v4411
  %v4476 = vrsqrt.pop %v4412
  %v4477 = vrsqrt.pop %v4413
  %v4478 = vrsqrt.pop %v4414
  %v4479 = vrsqrt.pop %v4415
  %v4480 = vrsqrt.pop %v4416
  %v4481 = vrsqrt.pop %v4417
  %v4482 = vrsqrt.pop %v4418
  %v4483 = vrsqrt.pop %v4419
  %v4484 = vrsqrt.pop %v4420
  %v4485 = vrsqrt.pop %v4421
  %v4486 = vrsqrt.pop %v4422
  %v4487 = vrsqrt.pop %v4423
  %v4488 = vrsqrt.pop %v4424
  %v4489 = vrsqrt.pop %v4425
  %v4490 = vrsqrt.pop %v4426
  %v4491 = vrsqrt.pop %v4427
  %v4492 = vrsqrt.pop %v4428
  %v4493 = vrsqrt.pop %v4429
  %v4494 = vrsqrt.pop %v4430
  %v4495 = vrsqrt.pop %v4431
  %v4496 = vrsqrt.pop %v4432
  %v4497 = vrsqrt.pop %v4433
  %v4498 = vrsqrt.pop %v4434
  %v4499 = vrsqrt.pop %v4435
  %v4500 = vrsqrt.pop %v4436
  %v4501 = vrsqrt.pop %v4437
  %v4502 = vrsqrt.pop %v4438
  %v4503 = vrsqrt.pop %v4439
  %v4504 = vrsqrt.pop %v4440
  %v4505 = vrsqrt.pop %v4441
  %v4506 = vmul.f32 %v4314, %v4442
  %v4507 = vmul.f32 %v4315, %v4443
  %v4508 = vmul.f32 %v4316, %v4444
  %v4509 = vmul.f32 %v4317, %v4445
  %v4510 = vmul.f32 %v4318, %v4446
  %v4511 = vmul.f32 %v4319, %v4447
  %v4512 = vmul.f32 %v4320, %v4448
  %v4513 = vmul.f32 %v4321, %v4449
  %v4514 = vmul.f32 %v4322, %v4450
  %v4515 = vmul.f32 %v4323, %v4451
  %v4516 = vmul.f32 %v4324, %v4452
  %v4517 = vmul.f32 %v4325, %v4453
  %v4518 = vmul.f32 %v4326, %v4454
  %v4519 = vmul.f32 %v4327, %v4455
  %v4520 = vmul.f32 %v4328, %v4456
  %v4521 = vmul.f32 %v4329, %v4457
  %v4522 = vmul.f32 %v4330, %v4458
  %v4523 = vmul.f32 %v4331, %v4459
  %v4524 = vmul.f32 %v4332, %v4460
  %v4525 = vmul.f32 %v4333, %v4461
  %v4526 = vmul.f32 %v4334, %v4462
  %v4527 = vmul.f32 %v4335, %v4463
  %v4528 = vmul.f32 %v4336, %v4464
  %v4529 = vmul.f32 %v4337, %v4465
  %v4530 = vmul.f32 %v4338, %v4466
  %v4531 = vmul.f32 %v4339, %v4467
  %v4532 = vmul.f32 %v4340, %v4468
  %v4533 = vmul.f32 %v4341, %v4469
  %v4534 = vmul.f32 %v4342, %v4470
  %v4535 = vmul.f32 %v4343, %v4471
  %v4536 = vmul.f32 %v4344, %v4472
  %v4537 = vmul.f32 %v4345, %v4473
  %v4538 = vmul.f32 %v4346, %v4474
  %v4539 = vmul.f32 %v4347, %v4475
  %v4540 = vmul.f32 %v4348, %v4476
  %v4541 = vmul.f32 %v4349, %v4477
  %v4542 = vmul.f32 %v4350, %v4478
  %v4543 = vmul.f32 %v4351, %v4479
  %v4544 = vmul.f32 %v4352, %v4480
  %v4545 = vmul.f32 %v4353, %v4481
  %v4546 = vmul.f32 %v4354, %v4482
  %v4547 = vmul.f32 %v4355, %v4483
  %v4548 = vmul.f32 %v4356, %v4484
  %v4549 = vmul.f32 %v4357, %v4485
  %v4550 = vmul.f32 %v4358, %v4486
  %v4551 = vmul.f32 %v4359, %v4487
  %v4552 = vmul.f32 %v4360, %v4488
  %v4553 = vmul.f32 %v4361, %v4489
  %v4554 = vmul.f32 %v4362, %v4490
  %v4555 = vmul.f32 %v4363, %v4491
  %v4556 = vmul.f32 %v4364, %v4492
  %v4557 = vmul.f32 %v4365, %v4493
  %v4558 = vmul.f32 %v4366, %v4494
  %v4559 = vmul.f32 %v4367, %v4495
  %v4560 = vmul.f32 %v4368, %v4496
  %v4561 = vmul.f32 %v4369, %v4497
  %v4562 = vmul.f32 %v4370, %v4498
  %v4563 = vmul.f32 %v4371, %v4499
  %v4564 = vmul.f32 %v4372, %v4500
  %v4565 = vmul.f32 %v4373, %v4501
  %v4566 = vmul.f32 %v4374, %v4502
  %v4567 = vmul.f32 %v4375, %v4503
  %v4568 = vmul.f32 %v4376, %v4504
  %v4569 = vmul.f32 %v4377, %v4505
  %v4571 = vlaneseq
  %v4572 = vshrl.u32 %v4571, 7
  %v4573 = vsub.s32 0, %v4572
  %v4574 = vrot.slane %v3672, %v4573
  %v4576 = vmul.f32 %v4506, %v4574
  %v4577 = vmul.f32 %v4507, %v4574
  %v4578 = vmul.f32 %v4508, %v4574
  %v4579 = vmul.f32 %v4509, %v4574
  %v4580 = vmul.f32 %v4510, %v4574
  %v4581 = vmul.f32 %v4511, %v4574
  %v4582 = vmul.f32 %v4512, %v4574
  %v4583 = vmul.f32 %v4513, %v4574
  %v4584 = vmul.f32 %v4514, %v4574
  %v4585 = vmul.f32 %v4515, %v4574
  %v4586 = vmul.f32 %v4516, %v4574
  %v4587 = vmul.f32 %v4517, %v4574
  %v4588 = vmul.f32 %v4518, %v4574
  %v4589 = vmul.f32 %v4519, %v4574
  %v4590 = vmul.f32 %v4520, %v4574
  %v4591 = vmul.f32 %v4521, %v4574
  %v4592 = vmul.f32 %v4522, %v4574
  %v4593 = vmul.f32 %v4523, %v4574
  %v4594 = vmul.f32 %v4524, %v4574
  %v4595 = vmul.f32 %v4525, %v4574
  %v4596 = vmul.f32 %v4526, %v4574
  %v4597 = vmul.f32 %v4527, %v4574
  %v4598 = vmul.f32 %v4528, %v4574
  %v4599 = vmul.f32 %v4529, %v4574
  %v4600 = vmul.f32 %v4530, %v4574
  %v4601 = vmul.f32 %v4531, %v4574
  %v4602 = vmul.f32 %v4532, %v4574
  %v4603 = vmul.f32 %v4533, %v4574
  %v4604 = vmul.f32 %v4534, %v4574
  %v4605 = vmul.f32 %v4535, %v4574
  %v4606 = vmul.f32 %v4536, %v4574
  %v4607 = vmul.f32 %v4537, %v4574
  %v4608 = vmul.f32 %v4538, %v4574
  %v4609 = vmul.f32 %v4539, %v4574
  %v4610 = vmul.f32 %v4540, %v4574
  %v4611 = vmul.f32 %v4541, %v4574
  %v4612 = vmul.f32 %v4542, %v4574
  %v4613 = vmul.f32 %v4543, %v4574
  %v4614 = vmul.f32 %v4544, %v4574
  %v4615 = vmul.f32 %v4545, %v4574
  %v4616 = vmul.f32 %v4546, %v4574
  %v4617 = vmul.f32 %v4547, %v4574
  %v4618 = vmul.f32 %v4548, %v4574
  %v4619 = vmul.f32 %v4549, %v4574
  %v4620 = vmul.f32 %v4550, %v4574
  %v4621 = vmul.f32 %v4551, %v4574
  %v4622 = vmul.f32 %v4552, %v4574
  %v4623 = vmul.f32 %v4553, %v4574
  %v4624 = vmul.f32 %v4554, %v4574
  %v4625 = vmul.f32 %v4555, %v4574
  %v4626 = vmul.f32 %v4556, %v4574
  %v4627 = vmul.f32 %v4557, %v4574
  %v4628 = vmul.f32 %v4558, %v4574
  %v4629 = vmul.f32 %v4559, %v4574
  %v4630 = vmul.f32 %v4560, %v4574
  %v4631 = vmul.f32 %v4561, %v4574
  %v4632 = vmul.f32 %v4562, %v4574
  %v4633 = vmul.f32 %v4563, %v4574
  %v4634 = vmul.f32 %v4564, %v4574
  %v4635 = vmul.f32 %v4565, %v4574
  %v4636 = vmul.f32 %v4566, %v4574
  %v4637 = vmul.f32 %v4567, %v4574
  %v4638 = vmul.f32 %v4568, %v4574
  %v4639 = vmul.f32 %v4569, %v4574
  %v4641 = vlaneseq
  %v4642 = vshrl.u32 %v4641, 7
  %v4643 = vsub.s32 0, %v4642
  %v4644 = vrot.slane %v3673, %v4643
  %v4646 = vadd.f32 %v4576, %v4644
  %v4647 = vadd.f32 %v4577, %v4644
  %v4648 = vadd.f32 %v4578, %v4644
  %v4649 = vadd.f32 %v4579, %v4644
  %v4650 = vadd.f32 %v4580, %v4644
  %v4651 = vadd.f32 %v4581, %v4644
  %v4652 = vadd.f32 %v4582, %v4644
  %v4653 = vadd.f32 %v4583, %v4644
  %v4654 = vadd.f32 %v4584, %v4644
  %v4655 = vadd.f32 %v4585, %v4644
  %v4656 = vadd.f32 %v4586, %v4644
  %v4657 = vadd.f32 %v4587, %v4644
  %v4658 = vadd.f32 %v4588, %v4644
  %v4659 = vadd.f32 %v4589, %v4644
  %v4660 = vadd.f32 %v4590, %v4644
  %v4661 = vadd.f32 %v4591, %v4644
  %v4662 = vadd.f32 %v4592, %v4644
  %v4663 = vadd.f32 %v4593, %v4644
  %v4664 = vadd.f32 %v4594, %v4644
  %v4665 = vadd.f32 %v4595, %v4644
  %v4666 = vadd.f32 %v4596, %v4644
  %v4667 = vadd.f32 %v4597, %v4644
  %v4668 = vadd.f32 %v4598, %v4644
  %v4669 = vadd.f32 %v4599, %v4644
  %v4670 = vadd.f32 %v4600, %v4644
  %v4671 = vadd.f32 %v4601, %v4644
  %v4672 = vadd.f32 %v4602, %v4644
  %v4673 = vadd.f32 %v4603, %v4644
  %v4674 = vadd.f32 %v4604, %v4644
  %v4675 = vadd.f32 %v4605, %v4644
  %v4676 = vadd.f32 %v4606, %v4644
  %v4677 = vadd.f32 %v4607, %v4644
  %v4678 = vadd.f32 %v4608, %v4644
  %v4679 = vadd.f32 %v4609, %v4644
  %v4680 = vadd.f32 %v4610, %v4644
  %v4681 = vadd.f32 %v4611, %v4644
  %v4682 = vadd.f32 %v4612, %v4644
  %v4683 = vadd.f32 %v4613, %v4644
  %v4684 = vadd.f32 %v4614, %v4644
  %v4685 = vadd.f32 %v4615, %v4644
  %v4686 = vadd.f32 %v4616, %v4644
  %v4687 = vadd.f32 %v4617, %v4644
  %v4688 = vadd.f32 %v4618, %v4644
  %v4689 = vadd.f32 %v4619, %v4644
  %v4690 = vadd.f32 %v4620, %v4644
  %v4691 = vadd.f32 %v4621, %v4644
  %v4692 = vadd.f32 %v4622, %v4644
  %v4693 = vadd.f32 %v4623, %v4644
  %v4694 = vadd.f32 %v4624, %v4644
  %v4695 = vadd.f32 %v4625, %v4644
  %v4696 = vadd.f32 %v4626, %v4644
  %v4697 = vadd.f32 %v4627, %v4644
  %v4698 = vadd.f32 %v4628, %v4644
  %v4699 = vadd.f32 %v4629, %v4644
  %v4700 = vadd.f32 %v4630, %v4644
  %v4701 = vadd.f32 %v4631, %v4644
  %v4702 = vadd.f32 %v4632, %v4644
  %v4703 = vadd.f32 %v4633, %v4644
  %v4704 = vadd.f32 %v4634, %v4644
  %v4705 = vadd.f32 %v4635, %v4644
  %v4706 = vadd.f32 %v4636, %v4644
  %v4707 = vadd.f32 %v4637, %v4644
  %v4708 = vadd.f32 %v4638, %v4644
  %v4709 = vadd.f32 %v4639, %v4644
  %v4710 = vmax.f32 %v4646, 0.0
  %v4711 = vmax.f32 %v4647, 0.0
  %v4712 = vmax.f32 %v4648, 0.0
  %v4713 = vmax.f32 %v4649, 0.0
  %v4714 = vmax.f32 %v4650, 0.0
  %v4715 = vmax.f32 %v4651, 0.0
  %v4716 = vmax.f32 %v4652, 0.0
  %v4717 = vmax.f32 %v4653, 0.0
  %v4718 = vmax.f32 %v4654, 0.0
  %v4719 = vmax.f32 %v4655, 0.0
  %v4720 = vmax.f32 %v4656, 0.0
  %v4721 = vmax.f32 %v4657, 0.0
  %v4722 = vmax.f32 %v4658, 0.0
  %v4723 = vmax.f32 %v4659, 0.0
  %v4724 = vmax.f32 %v4660, 0.0
  %v4725 = vmax.f32 %v4661, 0.0
  %v4726 = vmax.f32 %v4662, 0.0
  %v4727 = vmax.f32 %v4663, 0.0
  %v4728 = vmax.f32 %v4664, 0.0
  %v4729 = vmax.f32 %v4665, 0.0
  %v4730 = vmax.f32 %v4666, 0.0
  %v4731 = vmax.f32 %v4667, 0.0
  %v4732 = vmax.f32 %v4668, 0.0
  %v4733 = vmax.f32 %v4669, 0.0
  %v4734 = vmax.f32 %v4670, 0.0
  %v4735 = vmax.f32 %v4671, 0.0
  %v4736 = vmax.f32 %v4672, 0.0
  %v4737 = vmax.f32 %v4673, 0.0
  %v4738 = vmax.f32 %v4674, 0.0
  %v4739 = vmax.f32 %v4675, 0.0
  %v4740 = vmax.f32 %v4676, 0.0
  %v4741 = vmax.f32 %v4677, 0.0
  %v4742 = vmax.f32 %v4678, 0.0
  %v4743 = vmax.f32 %v4679, 0.0
  %v4744 = vmax.f32 %v4680, 0.0
  %v4745 = vmax.f32 %v4681, 0.0
  %v4746 = vmax.f32 %v4682, 0.0
  %v4747 = vmax.f32 %v4683, 0.0
  %v4748 = vmax.f32 %v4684, 0.0
  %v4749 = vmax.f32 %v4685, 0.0
  %v4750 = vmax.f32 %v4686, 0.0
  %v4751 = vmax.f32 %v4687, 0.0
  %v4752 = vmax.f32 %v4688, 0.0
  %v4753 = vmax.f32 %v4689, 0.0
  %v4754 = vmax.f32 %v4690, 0.0
  %v4755 = vmax.f32 %v4691, 0.0
  %v4756 = vmax.f32 %v4692, 0.0
  %v4757 = vmax.f32 %v4693, 0.0
  %v4758 = vmax.f32 %v4694, 0.0
  %v4759 = vmax.f32 %v4695, 0.0
  %v4760 = vmax.f32 %v4696, 0.0
  %v4761 = vmax.f32 %v4697, 0.0
  %v4762 = vmax.f32 %v4698, 0.0
  %v4763 = vmax.f32 %v4699, 0.0
  %v4764 = vmax.f32 %v4700, 0.0
  %v4765 = vmax.f32 %v4701, 0.0
  %v4766 = vmax.f32 %v4702, 0.0
  %v4767 = vmax.f32 %v4703, 0.0
  %v4768 = vmax.f32 %v4704, 0.0
  %v4769 = vmax.f32 %v4705, 0.0
  %v4770 = vmax.f32 %v4706, 0.0
  %v4771 = vmax.f32 %v4707, 0.0
  %v4772 = vmax.f32 %v4708, 0.0
  %v4773 = vmax.f32 %v4709, 0.0
  %v4774 = vpack.c.bf16 %v4711, %v4710
  %v4775 = vpack.c.bf16 %v4713, %v4712
  %v4776 = vpack.c.bf16 %v4715, %v4714
  %v4777 = vpack.c.bf16 %v4717, %v4716
  %v4778 = vpack.c.bf16 %v4719, %v4718
  %v4779 = vpack.c.bf16 %v4721, %v4720
  %v4780 = vpack.c.bf16 %v4723, %v4722
  %v4781 = vpack.c.bf16 %v4725, %v4724
  %v4782 = vpack.c.bf16 %v4727, %v4726
  %v4783 = vpack.c.bf16 %v4729, %v4728
  %v4784 = vpack.c.bf16 %v4731, %v4730
  %v4785 = vpack.c.bf16 %v4733, %v4732
  %v4786 = vpack.c.bf16 %v4735, %v4734
  %v4787 = vpack.c.bf16 %v4737, %v4736
  %v4788 = vpack.c.bf16 %v4739, %v4738
  %v4789 = vpack.c.bf16 %v4741, %v4740
  %v4790 = vpack.c.bf16 %v4743, %v4742
  %v4791 = vpack.c.bf16 %v4745, %v4744
  %v4792 = vpack.c.bf16 %v4747, %v4746
  %v4793 = vpack.c.bf16 %v4749, %v4748
  %v4794 = vpack.c.bf16 %v4751, %v4750
  %v4795 = vpack.c.bf16 %v4753, %v4752
  %v4796 = vpack.c.bf16 %v4755, %v4754
  %v4797 = vpack.c.bf16 %v4757, %v4756
  %v4798 = vpack.c.bf16 %v4759, %v4758
  %v4799 = vpack.c.bf16 %v4761, %v4760
  %v4800 = vpack.c.bf16 %v4763, %v4762
  %v4801 = vpack.c.bf16 %v4765, %v4764
  %v4802 = vpack.c.bf16 %v4767, %v4766
  %v4803 = vpack.c.bf16 %v4769, %v4768
  %v4804 = vpack.c.bf16 %v4771, %v4770
  %v4805 = vpack.c.bf16 %v4773, %v4772
  %v4806 = vld [vmem:[%s13] sm:$0xf]
  %v4807 = vld [vmem:[%s13 + $0x4] sm:$0xf]
  %v4808 = vld [vmem:[%s13 + $0x8] sm:$0xf]
  %v4809 = vld [vmem:[%s13 + $0xc] sm:$0xf]
  %v4810 = vld [vmem:[%s13 + $0x10] sm:$0xf]
  %v4811 = vld [vmem:[%s13 + $0x14] sm:$0xf]
  %v4812 = vld [vmem:[%s13 + $0x18] sm:$0xf]
  %v4813 = vld [vmem:[%s13 + $0x1c] sm:$0xf]
  %v4814 = vld [vmem:[%s13 + $0x20] sm:$0xf]
  %v4815 = vld [vmem:[%s13 + $0x24] sm:$0xf]
  %v4816 = vld [vmem:[%s13 + $0x28] sm:$0xf]
  %v4817 = vld [vmem:[%s13 + $0x2c] sm:$0xf]
  %v4818 = vld [vmem:[%s13 + $0x30] sm:$0xf]
  %v4819 = vld [vmem:[%s13 + $0x34] sm:$0xf]
  %v4820 = vld [vmem:[%s13 + $0x38] sm:$0xf]
  %v4821 = vld [vmem:[%s13 + $0x3c] sm:$0xf]
  %v4822 = vld [vmem:[%s14] sm:$0x1]
  %v4824 = vlaneseq
  %v4825 = vshrl.u32 %v4824, 7
  %v4826 = vsub.s32 0, %v4825
  %v4827 = vrot.slane %v4822, %v4826
  %v4845 = vunpack.c.l.b16 %v4806
  %v4846 = vunpack.c.l.b16 %v4807
  %v4847 = vunpack.c.l.b16 %v4808
  %v4848 = vunpack.c.l.b16 %v4809
  %v4849 = vunpack.c.l.b16 %v4810
  %v4850 = vunpack.c.l.b16 %v4811
  %v4851 = vunpack.c.l.b16 %v4812
  %v4852 = vunpack.c.l.b16 %v4813
  %v4853 = vunpack.c.l.b16 %v4814
  %v4854 = vunpack.c.l.b16 %v4815
  %v4855 = vunpack.c.l.b16 %v4816
  %v4856 = vunpack.c.l.b16 %v4817
  %v4857 = vunpack.c.l.b16 %v4818
  %v4858 = vunpack.c.l.b16 %v4819
  %v4859 = vunpack.c.l.b16 %v4820
  %v4860 = vunpack.c.l.b16 %v4821
  %v4861 = vpack.c.b16 %v4846, %v4845
  %v4862 = vpack.c.b16 %v4848, %v4847
  %v4863 = vpack.c.b16 %v4850, %v4849
  %v4864 = vpack.c.b16 %v4852, %v4851
  %v4865 = vpack.c.b16 %v4854, %v4853
  %v4866 = vpack.c.b16 %v4856, %v4855
  %v4867 = vpack.c.b16 %v4858, %v4857
  %v4868 = vpack.c.b16 %v4860, %v4859
  %4877 = vmatprep.subr.bf16.mxu0 0
  %4878 = vmatpush1.bf16.msra.mxu0 %v4868
  %4879 = vmatprep.subr.bf16.mxu0 0
  %4880 = vmatpush1.bf16.msra.mxu0 %v4867
  %4881 = vmatprep.subr.bf16.mxu0 0
  %4882 = vmatpush1.bf16.msra.mxu0 %v4866
  %4883 = vmatprep.subr.bf16.mxu0 0
  %4884 = vmatpush1.bf16.msra.mxu0 %v4865
  %4885 = vmatprep.subr.bf16.mxu0 0
  %4886 = vmatpush1.bf16.msra.mxu0 %v4864
  %4887 = vmatprep.subr.bf16.mxu0 0
  %4888 = vmatpush1.bf16.msra.mxu0 %v4863
  %4889 = vmatprep.subr.bf16.mxu0 0
  %4890 = vmatpush1.bf16.msra.mxu0 %v4862
  %4891 = vmatprep.subr.bf16.mxu0 0
  %4892 = vmatpush1.bf16.msra.mxu0 %v4861
  %4893 = vmatprep.subr.bf16.mxu0 0
  %4894 = vmatpush2.bf16.msra.mxu0 0
  %4895 = vmatprep.subr.bf16.mxu0 0
  %4896 = vmatpush2.bf16.msra.mxu0 0
  %4897 = vmatprep.subr.bf16.mxu0 0
  %4898 = vmatpush2.bf16.msra.mxu0 0
  %4899 = vmatprep.subr.bf16.mxu0 0
  %4900 = vmatpush2.bf16.msra.mxu0 0
  %4901 = vmatprep.subr.bf16.mxu0 0
  %4902 = vmatpush2.bf16.msra.mxu0 0
  %4903 = vmatprep.subr.bf16.mxu0 0
  %4904 = vmatpush2.bf16.msra.mxu0 0
  %4905 = vmatprep.subr.bf16.mxu0 0
  %4906 = vmatpush2.bf16.msra.mxu0 0
  %4907 = vmatprep.subr.bf16.mxu0 0
  %4908 = vmatpush2.bf16.msra.mxu0 0
  %4909 = vmatprep.mubr.bf16.mxu0 0
  %4910 = vmatmul.mubr.bf16.gmra.mxu0 %v4774
  %v4911 = vpop.f32.mrf.mxu0
  %v4912 = vadd.f32 %v4827, %v4911
  %v4913 = vpop.f32.mrf.mxu0
  %v4914 = vpop.f32.mrf.mxu0
  %v4915 = vadd.f32 %v4827, %v4914
  %v4916 = vpop.f32.mrf.mxu0
  %4917 = vmatprep.mubr.bf16.mxu0 0
  %4918 = vmatmul.mubr.bf16.gmra.mxu0 %v4775
  %v4919 = vpop.f32.mrf.mxu0
  %v4920 = vadd.f32 %v4827, %v4919
  %v4921 = vpop.f32.mrf.mxu0
  %v4922 = vpop.f32.mrf.mxu0
  %v4923 = vadd.f32 %v4827, %v4922
  %v4924 = vpop.f32.mrf.mxu0
  %4925 = vmatprep.mubr.bf16.mxu0 0
  %4926 = vmatmul.mubr.bf16.gmra.mxu0 %v4776
  %v4927 = vpop.f32.mrf.mxu0
  %v4928 = vadd.f32 %v4827, %v4927
  %v4929 = vpop.f32.mrf.mxu0
  %v4930 = vpop.f32.mrf.mxu0
  %v4931 = vadd.f32 %v4827, %v4930
  %v4932 = vpop.f32.mrf.mxu0
  %4933 = vmatprep.mubr.bf16.mxu0 0
  %4934 = vmatmul.mubr.bf16.gmra.mxu0 %v4777
  %v4935 = vpop.f32.mrf.mxu0
  %v4936 = vadd.f32 %v4827, %v4935
  %v4937 = vpop.f32.mrf.mxu0
  %v4938 = vpop.f32.mrf.mxu0
  %v4939 = vadd.f32 %v4827, %v4938
  %v4940 = vpop.f32.mrf.mxu0
  %4941 = vmatprep.mubr.bf16.mxu0 0
  %4942 = vmatmul.mubr.bf16.gmra.mxu0 %v4778
  %v4943 = vpop.f32.mrf.mxu0
  %v4944 = vadd.f32 %v4827, %v4943
  %v4945 = vpop.f32.mrf.mxu0
  %v4946 = vpop.f32.mrf.mxu0
  %v4947 = vadd.f32 %v4827, %v4946
  %v4948 = vpop.f32.mrf.mxu0
  %4949 = vmatprep.mubr.bf16.mxu0 0
  %4950 = vmatmul.mubr.bf16.gmra.mxu0 %v4779
  %v4951 = vpop.f32.mrf.mxu0
  %v4952 = vadd.f32 %v4827, %v4951
  %v4953 = vpop.f32.mrf.mxu0
  %v4954 = vpop.f32.mrf.mxu0
  %v4955 = vadd.f32 %v4827, %v4954
  %v4956 = vpop.f32.mrf.mxu0
  %4957 = vmatprep.mubr.bf16.mxu0 0
  %4958 = vmatmul.mubr.bf16.gmra.mxu0 %v4780
  %v4959 = vpop.f32.mrf.mxu0
  %v4960 = vadd.f32 %v4827, %v4959
  %v4961 = vpop.f32.mrf.mxu0
  %v4962 = vpop.f32.mrf.mxu0
  %v4963 = vadd.f32 %v4827, %v4962
  %v4964 = vpop.f32.mrf.mxu0
  %4965 = vmatprep.mubr.bf16.mxu0 0
  %4966 = vmatmul.mubr.bf16.gmra.mxu0 %v4781
  %v4967 = vpop.f32.mrf.mxu0
  %v4968 = vadd.f32 %v4827, %v4967
  %v4969 = vpop.f32.mrf.mxu0
  %v4970 = vpop.f32.mrf.mxu0
  %v4971 = vadd.f32 %v4827, %v4970
  %v4972 = vpop.f32.mrf.mxu0
  %4973 = vmatprep.mubr.bf16.mxu0 0
  %4974 = vmatmul.mubr.bf16.gmra.mxu0 %v4782
  %v4975 = vpop.f32.mrf.mxu0
  %v4976 = vadd.f32 %v4827, %v4975
  %v4977 = vpop.f32.mrf.mxu0
  %v4978 = vpop.f32.mrf.mxu0
  %v4979 = vadd.f32 %v4827, %v4978
  %v4980 = vpop.f32.mrf.mxu0
  %4981 = vmatprep.mubr.bf16.mxu0 0
  %4982 = vmatmul.mubr.bf16.gmra.mxu0 %v4783
  %v4983 = vpop.f32.mrf.mxu0
  %v4984 = vadd.f32 %v4827, %v4983
  %v4985 = vpop.f32.mrf.mxu0
  %v4986 = vpop.f32.mrf.mxu0
  %v4987 = vadd.f32 %v4827, %v4986
  %v4988 = vpop.f32.mrf.mxu0
  %4989 = vmatprep.mubr.bf16.mxu0 0
  %4990 = vmatmul.mubr.bf16.gmra.mxu0 %v4784
  %v4991 = vpop.f32.mrf.mxu0
  %v4992 = vadd.f32 %v4827, %v4991
  %v4993 = vpop.f32.mrf.mxu0
  %v4994 = vpop.f32.mrf.mxu0
  %v4995 = vadd.f32 %v4827, %v4994
  %v4996 = vpop.f32.mrf.mxu0
  %4997 = vmatprep.mubr.bf16.mxu0 0
  %4998 = vmatmul.mubr.bf16.gmra.mxu0 %v4785
  %v4999 = vpop.f32.mrf.mxu0
  %v5000 = vadd.f32 %v4827, %v4999
  %v5001 = vpop.f32.mrf.mxu0
  %v5002 = vpop.f32.mrf.mxu0
  %v5003 = vadd.f32 %v4827, %v5002
  %v5004 = vpop.f32.mrf.mxu0
  %5005 = vmatprep.mubr.bf16.mxu0 0
  %5006 = vmatmul.mubr.bf16.gmra.mxu0 %v4786
  %v5007 = vpop.f32.mrf.mxu0
  %v5008 = vadd.f32 %v4827, %v5007
  %v5009 = vpop.f32.mrf.mxu0
  %v5010 = vpop.f32.mrf.mxu0
  %v5011 = vadd.f32 %v4827, %v5010
  %v5012 = vpop.f32.mrf.mxu0
  %5013 = vmatprep.mubr.bf16.mxu0 0
  %5014 = vmatmul.mubr.bf16.gmra.mxu0 %v4787
  %v5015 = vpop.f32.mrf.mxu0
  %v5016 = vadd.f32 %v4827, %v5015
  %v5017 = vpop.f32.mrf.mxu0
  %v5018 = vpop.f32.mrf.mxu0
  %v5019 = vadd.f32 %v4827, %v5018
  %v5020 = vpop.f32.mrf.mxu0
  %5021 = vmatprep.mubr.bf16.mxu0 0
  %5022 = vmatmul.mubr.bf16.gmra.mxu0 %v4788
  %v5023 = vpop.f32.mrf.mxu0
  %v5024 = vadd.f32 %v4827, %v5023
  %v5025 = vpop.f32.mrf.mxu0
  %v5026 = vpop.f32.mrf.mxu0
  %v5027 = vadd.f32 %v4827, %v5026
  %v5028 = vpop.f32.mrf.mxu0
  %5029 = vmatprep.mubr.bf16.mxu0 0
  %5030 = vmatmul.mubr.bf16.gmra.mxu0 %v4789
  %v5031 = vpop.f32.mrf.mxu0
  %v5032 = vadd.f32 %v4827, %v5031
  %v5033 = vpop.f32.mrf.mxu0
  %v5034 = vpop.f32.mrf.mxu0
  %v5035 = vadd.f32 %v4827, %v5034
  %v5036 = vpop.f32.mrf.mxu0
  %5037 = vmatprep.mubr.bf16.mxu0 0
  %5038 = vmatmul.mubr.bf16.gmra.mxu0 %v4790
  %v5039 = vpop.f32.mrf.mxu0
  %v5040 = vadd.f32 %v4827, %v5039
  %v5041 = vpop.f32.mrf.mxu0
  %v5042 = vpop.f32.mrf.mxu0
  %v5043 = vadd.f32 %v4827, %v5042
  %v5044 = vpop.f32.mrf.mxu0
  %5045 = vmatprep.mubr.bf16.mxu0 0
  %5046 = vmatmul.mubr.bf16.gmra.mxu0 %v4791
  %v5047 = vpop.f32.mrf.mxu0
  %v5048 = vadd.f32 %v4827, %v5047
  %v5049 = vpop.f32.mrf.mxu0
  %v5050 = vpop.f32.mrf.mxu0
  %v5051 = vadd.f32 %v4827, %v5050
  %v5052 = vpop.f32.mrf.mxu0
  %5053 = vmatprep.mubr.bf16.mxu0 0
  %5054 = vmatmul.mubr.bf16.gmra.mxu0 %v4792
  %v5055 = vpop.f32.mrf.mxu0
  %v5056 = vadd.f32 %v4827, %v5055
  %v5057 = vpop.f32.mrf.mxu0
  %v5058 = vpop.f32.mrf.mxu0
  %v5059 = vadd.f32 %v4827, %v5058
  %v5060 = vpop.f32.mrf.mxu0
  %5061 = vmatprep.mubr.bf16.mxu0 0
  %5062 = vmatmul.mubr.bf16.gmra.mxu0 %v4793
  %v5063 = vpop.f32.mrf.mxu0
  %v5064 = vadd.f32 %v4827, %v5063
  %v5065 = vpop.f32.mrf.mxu0
  %v5066 = vpop.f32.mrf.mxu0
  %v5067 = vadd.f32 %v4827, %v5066
  %v5068 = vpop.f32.mrf.mxu0
  %5069 = vmatprep.mubr.bf16.mxu0 0
  %5070 = vmatmul.mubr.bf16.gmra.mxu0 %v4794
  %v5071 = vpop.f32.mrf.mxu0
  %v5072 = vadd.f32 %v4827, %v5071
  %v5073 = vpop.f32.mrf.mxu0
  %v5074 = vpop.f32.mrf.mxu0
  %v5075 = vadd.f32 %v4827, %v5074
  %v5076 = vpop.f32.mrf.mxu0
  %5077 = vmatprep.mubr.bf16.mxu0 0
  %5078 = vmatmul.mubr.bf16.gmra.mxu0 %v4795
  %v5079 = vpop.f32.mrf.mxu0
  %v5080 = vadd.f32 %v4827, %v5079
  %v5081 = vpop.f32.mrf.mxu0
  %v5082 = vpop.f32.mrf.mxu0
  %v5083 = vadd.f32 %v4827, %v5082
  %v5084 = vpop.f32.mrf.mxu0
  %5085 = vmatprep.mubr.bf16.mxu0 0
  %5086 = vmatmul.mubr.bf16.gmra.mxu0 %v4796
  %v5087 = vpop.f32.mrf.mxu0
  %v5088 = vadd.f32 %v4827, %v5087
  %v5089 = vpop.f32.mrf.mxu0
  %v5090 = vpop.f32.mrf.mxu0
  %v5091 = vadd.f32 %v4827, %v5090
  %v5092 = vpop.f32.mrf.mxu0
  %5093 = vmatprep.mubr.bf16.mxu0 0
  %5094 = vmatmul.mubr.bf16.gmra.mxu0 %v4797
  %v5095 = vpop.f32.mrf.mxu0
  %v5096 = vadd.f32 %v4827, %v5095
  %v5097 = vpop.f32.mrf.mxu0
  %v5098 = vpop.f32.mrf.mxu0
  %v5099 = vadd.f32 %v4827, %v5098
  %v5100 = vpop.f32.mrf.mxu0
  %5101 = vmatprep.mubr.bf16.mxu0 0
  %5102 = vmatmul.mubr.bf16.gmra.mxu0 %v4798
  %v5103 = vpop.f32.mrf.mxu0
  %v5104 = vadd.f32 %v4827, %v5103
  %v5105 = vpop.f32.mrf.mxu0
  %v5106 = vpop.f32.mrf.mxu0
  %v5107 = vadd.f32 %v4827, %v5106
  %v5108 = vpop.f32.mrf.mxu0
  %5109 = vmatprep.mubr.bf16.mxu0 0
  %5110 = vmatmul.mubr.bf16.gmra.mxu0 %v4799
  %v5111 = vpop.f32.mrf.mxu0
  %v5112 = vadd.f32 %v4827, %v5111
  %v5113 = vpop.f32.mrf.mxu0
  %v5114 = vpop.f32.mrf.mxu0
  %v5115 = vadd.f32 %v4827, %v5114
  %v5116 = vpop.f32.mrf.mxu0
  %5117 = vmatprep.mubr.bf16.mxu0 0
  %5118 = vmatmul.mubr.bf16.gmra.mxu0 %v4800
  %v5119 = vpop.f32.mrf.mxu0
  %v5120 = vadd.f32 %v4827, %v5119
  %v5121 = vpop.f32.mrf.mxu0
  %v5122 = vpop.f32.mrf.mxu0
  %v5123 = vadd.f32 %v4827, %v5122
  %v5124 = vpop.f32.mrf.mxu0
  %5125 = vmatprep.mubr.bf16.mxu0 0
  %5126 = vmatmul.mubr.bf16.gmra.mxu0 %v4801
  %v5127 = vpop.f32.mrf.mxu0
  %v5128 = vadd.f32 %v4827, %v5127
  %v5129 = vpop.f32.mrf.mxu0
  %v5130 = vpop.f32.mrf.mxu0
  %v5131 = vadd.f32 %v4827, %v5130
  %v5132 = vpop.f32.mrf.mxu0
  %5133 = vmatprep.mubr.bf16.mxu0 0
  %5134 = vmatmul.mubr.bf16.gmra.mxu0 %v4802
  %v5135 = vpop.f32.mrf.mxu0
  %v5136 = vadd.f32 %v4827, %v5135
  %v5137 = vpop.f32.mrf.mxu0
  %v5138 = vpop.f32.mrf.mxu0
  %v5139 = vadd.f32 %v4827, %v5138
  %v5140 = vpop.f32.mrf.mxu0
  %5141 = vmatprep.mubr.bf16.mxu0 0
  %5142 = vmatmul.mubr.bf16.gmra.mxu0 %v4803
  %v5143 = vpop.f32.mrf.mxu0
  %v5144 = vadd.f32 %v4827, %v5143
  %v5145 = vpop.f32.mrf.mxu0
  %v5146 = vpop.f32.mrf.mxu0
  %v5147 = vadd.f32 %v4827, %v5146
  %v5148 = vpop.f32.mrf.mxu0
  %5149 = vmatprep.mubr.bf16.mxu0 0
  %5150 = vmatmul.mubr.bf16.gmra.mxu0 %v4804
  %v5151 = vpop.f32.mrf.mxu0
  %v5152 = vadd.f32 %v4827, %v5151
  %v5153 = vpop.f32.mrf.mxu0
  %v5154 = vpop.f32.mrf.mxu0
  %v5155 = vadd.f32 %v4827, %v5154
  %v5156 = vpop.f32.mrf.mxu0
  %5157 = vmatprep.mubr.bf16.mxu0 0
  %5158 = vmatmul.mubr.bf16.gmra.mxu0 %v4805
  %v5159 = vpop.f32.mrf.mxu0
  %v5160 = vadd.f32 %v4827, %v5159
  %v5161 = vpop.f32.mrf.mxu0
  %v5162 = vpop.f32.mrf.mxu0
  %v5163 = vadd.f32 %v4827, %v5162
  %v5164 = vpop.f32.mrf.mxu0
  %5165 = vdwg.mxu0
  %v5166 = vpack.c.bf16 %v4915, %v4912
  %v5167 = vpack.c.bf16 %v4923, %v4920
  %v5168 = vpack.c.bf16 %v4931, %v4928
  %v5169 = vpack.c.bf16 %v4939, %v4936
  %v5170 = vpack.c.bf16 %v4947, %v4944
  %v5171 = vpack.c.bf16 %v4955, %v4952
  %v5172 = vpack.c.bf16 %v4963, %v4960
  %v5173 = vpack.c.bf16 %v4971, %v4968
  %v5174 = vpack.c.bf16 %v4979, %v4976
  %v5175 = vpack.c.bf16 %v4987, %v4984
  %v5176 = vpack.c.bf16 %v4995, %v4992
  %v5177 = vpack.c.bf16 %v5003, %v5000
  %v5178 = vpack.c.bf16 %v5011, %v5008
  %v5179 = vpack.c.bf16 %v5019, %v5016
  %v5180 = vpack.c.bf16 %v5027, %v5024
  %v5181 = vpack.c.bf16 %v5035, %v5032
  %v5182 = vpack.c.bf16 %v5043, %v5040
  %v5183 = vpack.c.bf16 %v5051, %v5048
  %v5184 = vpack.c.bf16 %v5059, %v5056
  %v5185 = vpack.c.bf16 %v5067, %v5064
  %v5186 = vpack.c.bf16 %v5075, %v5072
  %v5187 = vpack.c.bf16 %v5083, %v5080
  %v5188 = vpack.c.bf16 %v5091, %v5088
  %v5189 = vpack.c.bf16 %v5099, %v5096
  %v5190 = vpack.c.bf16 %v5107, %v5104
  %v5191 = vpack.c.bf16 %v5115, %v5112
  %v5192 = vpack.c.bf16 %v5123, %v5120
  %v5193 = vpack.c.bf16 %v5131, %v5128
  %v5194 = vpack.c.bf16 %v5139, %v5136
  %v5195 = vpack.c.bf16 %v5147, %v5144
  %v5196 = vpack.c.bf16 %v5155, %v5152
  %v5197 = vpack.c.bf16 %v5163, %v5160
  %v5230 = vunpack.c.l.b16 %v5166
  %v5231 = vunpack.c.h.b16 %v5166
  %v5232 = vunpack.c.l.b16 %v5167
  %v5233 = vunpack.c.h.b16 %v5167
  %v5234 = vunpack.c.l.b16 %v5168
  %v5235 = vunpack.c.h.b16 %v5168
  %v5236 = vunpack.c.l.b16 %v5169
  %v5237 = vunpack.c.h.b16 %v5169
  %v5238 = vunpack.c.l.b16 %v5170
  %v5239 = vunpack.c.h.b16 %v5170
  %v5240 = vunpack.c.l.b16 %v5171
  %v5241 = vunpack.c.h.b16 %v5171
  %v5242 = vunpack.c.l.b16 %v5172
  %v5243 = vunpack.c.h.b16 %v5172
  %v5244 = vunpack.c.l.b16 %v5173
  %v5245 = vunpack.c.h.b16 %v5173
  %v5246 = vunpack.c.l.b16 %v5174
  %v5247 = vunpack.c.h.b16 %v5174
  %v5248 = vunpack.c.l.b16 %v5175
  %v5249 = vunpack.c.h.b16 %v5175
  %v5250 = vunpack.c.l.b16 %v5176
  %v5251 = vunpack.c.h.b16 %v5176
  %v5252 = vunpack.c.l.b16 %v5177
  %v5253 = vunpack.c.h.b16 %v5177
  %v5254 = vunpack.c.l.b16 %v5178
  %v5255 = vunpack.c.h.b16 %v5178
  %v5256 = vunpack.c.l.b16 %v5179
  %v5257 = vunpack.c.h.b16 %v5179
  %v5258 = vunpack.c.l.b16 %v5180
  %v5259 = vunpack.c.h.b16 %v5180
  %v5260 = vunpack.c.l.b16 %v5181
  %v5261 = vunpack.c.h.b16 %v5181
  %v5262 = vunpack.c.l.b16 %v5182
  %v5263 = vunpack.c.h.b16 %v5182
  %v5264 = vunpack.c.l.b16 %v5183
  %v5265 = vunpack.c.h.b16 %v5183
  %v5266 = vunpack.c.l.b16 %v5184
  %v5267 = vunpack.c.h.b16 %v5184
  %v5268 = vunpack.c.l.b16 %v5185
  %v5269 = vunpack.c.h.b16 %v5185
  %v5270 = vunpack.c.l.b16 %v5186
  %v5271 = vunpack.c.h.b16 %v5186
  %v5272 = vunpack.c.l.b16 %v5187
  %v5273 = vunpack.c.h.b16 %v5187
  %v5274 = vunpack.c.l.b16 %v5188
  %v5275 = vunpack.c.h.b16 %v5188
  %v5276 = vunpack.c.l.b16 %v5189
  %v5277 = vunpack.c.h.b16 %v5189
  %v5278 = vunpack.c.l.b16 %v5190
  %v5279 = vunpack.c.h.b16 %v5190
  %v5280 = vunpack.c.l.b16 %v5191
  %v5281 = vunpack.c.h.b16 %v5191
  %v5282 = vunpack.c.l.b16 %v5192
  %v5283 = vunpack.c.h.b16 %v5192
  %v5284 = vunpack.c.l.b16 %v5193
  %v5285 = vunpack.c.h.b16 %v5193
  %v5286 = vunpack.c.l.b16 %v5194
  %v5287 = vunpack.c.h.b16 %v5194
  %v5288 = vunpack.c.l.b16 %v5195
  %v5289 = vunpack.c.h.b16 %v5195
  %v5290 = vunpack.c.l.b16 %v5196
  %v5291 = vunpack.c.h.b16 %v5196
  %v5292 = vunpack.c.l.b16 %v5197
  %v5293 = vunpack.c.h.b16 %v5197
  %v5294 = vpack.c.b16 %v5230, %v5230
  %v5295 = vpack.c.b16 %v5231, %v5231
  %v5296 = vpack.c.b16 %v5232, %v5232
  %v5297 = vpack.c.b16 %v5233, %v5233
  %v5298 = vpack.c.b16 %v5234, %v5234
  %v5299 = vpack.c.b16 %v5235, %v5235
  %v5300 = vpack.c.b16 %v5236, %v5236
  %v5301 = vpack.c.b16 %v5237, %v5237
  %v5302 = vpack.c.b16 %v5238, %v5238
  %v5303 = vpack.c.b16 %v5239, %v5239
  %v5304 = vpack.c.b16 %v5240, %v5240
  %v5305 = vpack.c.b16 %v5241, %v5241
  %v5306 = vpack.c.b16 %v5242, %v5242
  %v5307 = vpack.c.b16 %v5243, %v5243
  %v5308 = vpack.c.b16 %v5244, %v5244
  %v5309 = vpack.c.b16 %v5245, %v5245
  %v5310 = vpack.c.b16 %v5246, %v5246
  %v5311 = vpack.c.b16 %v5247, %v5247
  %v5312 = vpack.c.b16 %v5248, %v5248
  %v5313 = vpack.c.b16 %v5249, %v5249
  %v5314 = vpack.c.b16 %v5250, %v5250
  %v5315 = vpack.c.b16 %v5251, %v5251
  %v5316 = vpack.c.b16 %v5252, %v5252
  %v5317 = vpack.c.b16 %v5253, %v5253
  %v5318 = vpack.c.b16 %v5254, %v5254
  %v5319 = vpack.c.b16 %v5255, %v5255
  %v5320 = vpack.c.b16 %v5256, %v5256
  %v5321 = vpack.c.b16 %v5257, %v5257
  %v5322 = vpack.c.b16 %v5258, %v5258
  %v5323 = vpack.c.b16 %v5259, %v5259
  %v5324 = vpack.c.b16 %v5260, %v5260
  %v5325 = vpack.c.b16 %v5261, %v5261
  %v5326 = vpack.c.b16 %v5262, %v5262
  %v5327 = vpack.c.b16 %v5263, %v5263
  %v5328 = vpack.c.b16 %v5264, %v5264
  %v5329 = vpack.c.b16 %v5265, %v5265
  %v5330 = vpack.c.b16 %v5266, %v5266
  %v5331 = vpack.c.b16 %v5267, %v5267
  %v5332 = vpack.c.b16 %v5268, %v5268
  %v5333 = vpack.c.b16 %v5269, %v5269
  %v5334 = vpack.c.b16 %v5270, %v5270
  %v5335 = vpack.c.b16 %v5271, %v5271
  %v5336 = vpack.c.b16 %v5272, %v5272
  %v5337 = vpack.c.b16 %v5273, %v5273
  %v5338 = vpack.c.b16 %v5274, %v5274
  %v5339 = vpack.c.b16 %v5275, %v5275
  %v5340 = vpack.c.b16 %v5276, %v5276
  %v5341 = vpack.c.b16 %v5277, %v5277
  %v5342 = vpack.c.b16 %v5278, %v5278
  %v5343 = vpack.c.b16 %v5279, %v5279
  %v5344 = vpack.c.b16 %v5280, %v5280
  %v5345 = vpack.c.b16 %v5281, %v5281
  %v5346 = vpack.c.b16 %v5282, %v5282
  %v5347 = vpack.c.b16 %v5283, %v5283
  %v5348 = vpack.c.b16 %v5284, %v5284
  %v5349 = vpack.c.b16 %v5285, %v5285
  %v5350 = vpack.c.b16 %v5286, %v5286
  %v5351 = vpack.c.b16 %v5287, %v5287
  %v5352 = vpack.c.b16 %v5288, %v5288
  %v5353 = vpack.c.b16 %v5289, %v5289
  %v5354 = vpack.c.b16 %v5290, %v5290
  %v5355 = vpack.c.b16 %v5291, %v5291
  %v5356 = vpack.c.b16 %v5292, %v5292
  %v5357 = vpack.c.b16 %v5293, %v5293
  %5422 = vst [vmem:[%s15] sm:$0xf] %v5294
  %5423 = vst [vmem:[%s15 + $0x4] sm:$0xf] %v5295
  %5424 = vst [vmem:[%s15 + $0x8] sm:$0xf] %v5296
  %5425 = vst [vmem:[%s15 + $0xc] sm:$0xf] %v5297
  %5426 = vst [vmem:[%s15 + $0x10] sm:$0xf] %v5298
  %5427 = vst [vmem:[%s15 + $0x14] sm:$0xf] %v5299
  %5428 = vst [vmem:[%s15 + $0x18] sm:$0xf] %v5300
  %5429 = vst [vmem:[%s15 + $0x1c] sm:$0xf] %v5301
  %5430 = vst [vmem:[%s15 + $0x20] sm:$0xf] %v5302
  %5431 = vst [vmem:[%s15 + $0x24] sm:$0xf] %v5303
  %5432 = vst [vmem:[%s15 + $0x28] sm:$0xf] %v5304
  %5433 = vst [vmem:[%s15 + $0x2c] sm:$0xf] %v5305
  %5434 = vst [vmem:[%s15 + $0x30] sm:$0xf] %v5306
  %5435 = vst [vmem:[%s15 + $0x34] sm:$0xf] %v5307
  %5436 = vst [vmem:[%s15 + $0x38] sm:$0xf] %v5308
  %5437 = vst [vmem:[%s15 + $0x3c] sm:$0xf] %v5309
  %5438 = vst [vmem:[%s15 + $0x40] sm:$0xf] %v5310
  %5439 = vst [vmem:[%s15 + $0x44] sm:$0xf] %v5311
  %5440 = vst [vmem:[%s15 + $0x48] sm:$0xf] %v5312
  %5441 = vst [vmem:[%s15 + $0x4c] sm:$0xf] %v5313
  %5442 = vst [vmem:[%s15 + $0x50] sm:$0xf] %v5314
  %5443 = vst [vmem:[%s15 + $0x54] sm:$0xf] %v5315
  %5444 = vst [vmem:[%s15 + $0x58] sm:$0xf] %v5316
  %5445 = vst [vmem:[%s15 + $0x5c] sm:$0xf] %v5317
  %5446 = vst [vmem:[%s15 + $0x60] sm:$0xf] %v5318
  %5447 = vst [vmem:[%s15 + $0x64] sm:$0xf] %v5319
  %5448 = vst [vmem:[%s15 + $0x68] sm:$0xf] %v5320
  %5449 = vst [vmem:[%s15 + $0x6c] sm:$0xf] %v5321
  %5450 = vst [vmem:[%s15 + $0x70] sm:$0xf] %v5322
  %5451 = vst [vmem:[%s15 + $0x74] sm:$0xf] %v5323
  %5452 = vst [vmem:[%s15 + $0x78] sm:$0xf] %v5324
  %5453 = vst [vmem:[%s15 + $0x7c] sm:$0xf] %v5325
  %5454 = vst [vmem:[%s15 + $0x80] sm:$0xf] %v5326
  %5455 = vst [vmem:[%s15 + $0x84] sm:$0xf] %v5327
  %5456 = vst [vmem:[%s15 + $0x88] sm:$0xf] %v5328
  %5457 = vst [vmem:[%s15 + $0x8c] sm:$0xf] %v5329
  %5458 = vst [vmem:[%s15 + $0x90] sm:$0xf] %v5330
  %5459 = vst [vmem:[%s15 + $0x94] sm:$0xf] %v5331
  %5460 = vst [vmem:[%s15 + $0x98] sm:$0xf] %v5332
  %5461 = vst [vmem:[%s15 + $0x9c] sm:$0xf] %v5333
  %5462 = vst [vmem:[%s15 + $0xa0] sm:$0xf] %v5334
  %5463 = vst [vmem:[%s15 + $0xa4] sm:$0xf] %v5335
  %5464 = vst [vmem:[%s15 + $0xa8] sm:$0xf] %v5336
  %5465 = vst [vmem:[%s15 + $0xac] sm:$0xf] %v5337
  %5466 = vst [vmem:[%s15 + $0xb0] sm:$0xf] %v5338
  %5467 = vst [vmem:[%s15 + $0xb4] sm:$0xf] %v5339
  %5468 = vst [vmem:[%s15 + $0xb8] sm:$0xf] %v5340
  %5469 = vst [vmem:[%s15 + $0xbc] sm:$0xf] %v5341
  %5470 = vst [vmem:[%s15 + $0xc0] sm:$0xf] %v5342
  %5471 = vst [vmem:[%s15 + $0xc4] sm:$0xf] %v5343
  %5472 = vst [vmem:[%s15 + $0xc8] sm:$0xf] %v5344
  %5473 = vst [vmem:[%s15 + $0xcc] sm:$0xf] %v5345
  %5474 = vst [vmem:[%s15 + $0xd0] sm:$0xf] %v5346
  %5475 = vst [vmem:[%s15 + $0xd4] sm:$0xf] %v5347
  %5476 = vst [vmem:[%s15 + $0xd8] sm:$0xf] %v5348
  %5477 = vst [vmem:[%s15 + $0xdc] sm:$0xf] %v5349
  %5478 = vst [vmem:[%s15 + $0xe0] sm:$0xf] %v5350
  %5479 = vst [vmem:[%s15 + $0xe4] sm:$0xf] %v5351
  %5480 = vst [vmem:[%s15 + $0xe8] sm:$0xf] %v5352
  %5481 = vst [vmem:[%s15 + $0xec] sm:$0xf] %v5353
  %5482 = vst [vmem:[%s15 + $0xf0] sm:$0xf] %v5354
  %5483 = vst [vmem:[%s15 + $0xf4] sm:$0xf] %v5355
  %5484 = vst [vmem:[%s15 + $0xf8] sm:$0xf] %v5356
  %5485 = vst [vmem:[%s15 + $0xfc] sm:$0xf] %v5357
  // Predicated region
  $region62: #{forward.1} parent=0 // pred_check
    _
  $region63: #{forward.1} parent=0 // pred_check_branch
    %5487 = sbr.rel (0) target = $region65
  $region64: #{forward.1} parent=0 // pred_region
    _
  $region65: #{forward.1} parent=0 // pred_fallthru
    _
  // Predicated region
  $region66: #{forward.1} parent=0 // pred_check
    _
  $region67: #{forward.1} parent=0 // pred_check_branch
    %5489 = sbr.rel (0) target = $region69
  $region68: #{forward.1} parent=0 // pred_region
    _
  $region69: #{forward.1} parent=0 // pred_fallthru
    _

</llo_original>
